<compile_context>
chip_gen: v7x
topology: tpu7x:2x2x1
jax: 0.10.0
libtpu: 0.0.40
codegen_flags: <defaults>
</compile_context>

<pallas_src>
import functools

import jax
import jax.numpy as jnp
from jax.experimental import pallas as pl
from jax.experimental.pallas import tpu as pltpu

EPS = 1e-5  # nn.BatchNorm2d default eps


# ----------------------------- Pallas kernels ------------------------------
#
# Layout used by all kernels (per image n):
#   "flat padded image"  : (C, Lp)  with Lp = (H + 2 + 1) * (W + 2);  the image
#                          is zero padded by 1 (plus one guard row at the
#                          bottom) and flattened over (H', W').
#   "wide conv output"   : (Cout, Lo) with Lo = H * (W + 2); wide index
#                          j = ho*(W+2) + wo', columns wo' >= W are garbage and
#                          are discarded / masked for statistics.
# A 3x3 stride-1 conv is then  sum over 9 taps of
#   W_tap (Cout, Cin) @ act[:, off : off + Lo],   off = dy*(W+2) + dx.


def _x_stats_kernel(xf_ref, m_ref, st_ref):
    """Per-image, per-channel sum and sum-of-squares of the (masked) input."""
    x = xf_ref[0] * m_ref[...]                                  # (Cin, Lp)
    st_ref[0] = jnp.concatenate(
        [jnp.sum(x, axis=1, keepdims=True),
         jnp.sum(x * x, axis=1, keepdims=True)], axis=1)        # (Cin, 2)


def _fused_conv1_skip_kernel(xf_ref, m_ref, keep_ref, sc1_ref, sh1_ref,
                             w1_ref, b1_ref, ws_ref, bs_ref,
                             y1_ref, sk_ref, st_ref, *, wp):
    """conv1(relu(BN1(x))) and conv_skip(x), plus BN2 / skip-BN statistics."""
    cout = y1_ref.shape[1]
    lo = y1_ref.shape[2]

    xf = xf_ref[0]                                              # (Cin, Lp)
    # BN1 affine + ReLU fused; re-zero the padded border via the interior mask.
    act = jnp.maximum(xf * sc1_ref[...] + sh1_ref[...], 0.0) * m_ref[...]

    acc1 = jnp.zeros((cout, lo), jnp.float32)
    accs = jnp.zeros((cout, lo), jnp.float32)
    for t in range(9):                                          # unrolled taps
        dy, dx = divmod(t, 3)
        off = dy * wp + dx
        acc1 = acc1 + jnp.dot(w1_ref[t], act[:, off:off + lo],
                              preferred_element_type=jnp.float32)
        accs = accs + jnp.dot(ws_ref[t], xf[:, off:off + lo],
                              preferred_element_type=jnp.float32)

    y1 = acc1 + b1_ref[...]                                     # conv1 output (wide)
    sk = accs + bs_ref[...]                                     # skip conv output (wide)
    y1_ref[0] = y1
    sk_ref[0] = sk

    # Fused BN statistics over the positions actually kept by the conv
    # (valid columns + stride subsampling), encoded in keep_ref.
    keep = keep_ref[...]
    y1m = y1 * keep
    skm = sk * keep
    st_ref[0] = jnp.concatenate(
        [jnp.sum(y1m, axis=1, keepdims=True),
         jnp.sum(y1m * y1, axis=1, keepdims=True),
         jnp.sum(skm, axis=1, keepdims=True),
         jnp.sum(skm * sk, axis=1, keepdims=True)], axis=1)     # (Cout, 4)


def _fused_conv2_add_kernel(yf_ref, m_ref, sc2_ref, sh2_ref, w2_ref, b2_ref,
                            skw_ref, scs_ref, shs_ref, o_ref, *, wp):
    """conv2(relu(BN2(y1))) + bias + skip-BN affine + residual add."""
    cout = o_ref.shape[1]
    lo = o_ref.shape[2]

    yf = yf_ref[0]                                              # (Cout, Lp2)
    act = jnp.maximum(yf * sc2_ref[...] + sh2_ref[...], 0.0) * m_ref[...]

    acc = jnp.zeros((cout, lo), jnp.float32)
    for t in range(9):
        dy, dx = divmod(t, 3)
        off = dy * wp + dx
        acc = acc + jnp.dot(w2_ref[t], act[:, off:off + lo],
                            preferred_element_type=jnp.float32)

    # bias + (skip-BN affine of the skip conv output) + residual add, fused.
    o_ref[0] = acc + b2_ref[...] + skw_ref[0] * scs_ref[...] + shs_ref[...]


# ----------------------------- wrapper helpers ------------------------------

def _flat_pad(x4d, pad):
    """Zero-pad H by (pad, pad+1) (extra guard row) and W by (pad, pad), flatten."""
    n, c, h, w = x4d.shape
    xp = jnp.pad(x4d, ((0, 0), (0, 0), (pad, pad + 1), (pad, pad)))
    return xp.reshape(n, c, (h + 2 * pad + 1) * (w + 2 * pad))


def _interior_mask(h, w, pad):
    """1.0 on real data positions of the flat-padded layout, 0.0 on padding."""
    hp, wp = h + 2 * pad + 1, w + 2 * pad
    hh = jnp.arange(hp)[:, None]
    ww = jnp.arange(wp)[None, :]
    m = (hh >= pad) & (hh < pad + h) & (ww >= pad) & (ww < pad + w)
    return m.astype(jnp.float32).reshape(1, hp * wp)


def _keep_mask(h_valid, w_valid, wp, stride):
    """1.0 on wide-output positions kept by the conv (valid col + stride)."""
    hh = jnp.arange(h_valid)[:, None]
    ww = jnp.arange(wp)[None, :]
    m = (hh % stride == 0) & (ww % stride == 0) & (ww < w_valid)
    return m.astype(jnp.float32).reshape(1, h_valid * wp)


def _bn_scale_shift(sum_, sumsq, count, gamma, beta):
    """Fold train-mode BN (biased variance) into per-channel scale/shift."""
    mean = sum_ / count
    var = jnp.maximum(sumsq / count - mean * mean, 0.0)
    scale = gamma * jax.lax.rsqrt(var + EPS)
    shift = beta - mean * scale
    return scale, shift


def _parallel():
    return pltpu.CompilerParams(dimension_semantics=("parallel",))


# ----------------------------- ResidualConv forward --------------------------

def residual_conv_forward(x_nchw, params, *, stride, padding):
    if padding != 1:
        # For 3x3 convs, the residual add only shape-matches when padding == 1
        # (same constraint the PyTorch module has in practice).
        raise ValueError("ResidualConv Pallas kernel requires padding == 1")

    x = x_nchw.astype(jnp.float32)
    n, cin, h, w = x.shape
    cout = params["w1"].shape[0]
    s = stride

    wp1 = w + 2                      # padded width (= wide output width)
    lp1 = (h + 3) * wp1              # flat padded length (1 guard row)
    lo1 = h * wp1                    # wide output length (stride-1 rows)
    ho = (h - 1) // s + 1            # final output spatial dims
    wo = (w - 1) // s + 1

    xf = _flat_pad(x, 1)                                   # (N, Cin, Lp1)
    m1 = _interior_mask(h, w, 1)                           # (1, Lp1)
    keep1 = _keep_mask(h, w, wp1, s)                       # (1, Lo1)

    # ---- pass 0: BN1 statistics of x (sum / sum of squares per channel) ----
    st_x = pl.pallas_call(
        _x_stats_kernel,
        out_shape=jax.ShapeDtypeStruct((n, cin, 2), jnp.float32),
        grid=(n,),
        in_specs=[
            pl.BlockSpec((1, cin, lp1), lambda i: (i, 0, 0)),
            pl.BlockSpec((1, lp1), lambda i: (0, 0)),
        ],
        out_specs=pl.BlockSpec((1, cin, 2), lambda i: (i, 0, 0)),
        compiler_params=_parallel(),
    )(xf, m1)
    st_x = jnp.sum(st_x, axis=0)                           # (Cin, 2)
    sc1, sh1 = _bn_scale_shift(st_x[:, 0], st_x[:, 1], n * h * w,
                               params["g1"], params["be1"])

    # ---- pass 1: fused BN1+ReLU -> conv1, and conv_skip, + BN2/BNs stats ----
    w1t = jnp.transpose(params["w1"], (2, 3, 0, 1)).reshape(9, cout, cin)
    wst = jnp.transpose(params["ws"], (2, 3, 0, 1)).reshape(9, cout, cin)
    kern1 = functools.partial(_fused_conv1_skip_kernel, wp=wp1)
    y1w, skw, st = pl.pallas_call(
        kern1,
        out_shape=(jax.ShapeDtypeStruct((n, cout, lo1), jnp.float32),
                   jax.ShapeDtypeStruct((n, cout, lo1), jnp.float32),
                   jax.ShapeDtypeStruct((n, cout, 4), jnp.float32)),
        grid=(n,),
        in_specs=[
            pl.BlockSpec((1, cin, lp1), lambda i: (i, 0, 0)),   # xf
            pl.BlockSpec((1, lp1), lambda i: (0, 0)),           # interior mask
            pl.BlockSpec((1, lo1), lambda i: (0, 0)),           # keep mask
            pl.BlockSpec((cin, 1), lambda i: (0, 0)),           # BN1 scale
            pl.BlockSpec((cin, 1), lambda i: (0, 0)),           # BN1 shift
            pl.BlockSpec((9, cout, cin), lambda i: (0, 0, 0)),  # w1 taps
            pl.BlockSpec((cout, 1), lambda i: (0, 0)),          # b1
            pl.BlockSpec((9, cout, cin), lambda i: (0, 0, 0)),  # ws taps
            pl.BlockSpec((cout, 1), lambda i: (0, 0)),          # bs
        ],
        out_specs=(pl.BlockSpec((1, cout, lo1), lambda i: (i, 0, 0)),
                   pl.BlockSpec((1, cout, lo1), lambda i: (i, 0, 0)),
                   pl.BlockSpec((1, cout, 4), lambda i: (i, 0, 0))),
        compiler_params=_parallel(),
    )(xf, m1, keep1, sc1.reshape(cin, 1), sh1.reshape(cin, 1),
      w1t, params["b1"].reshape(cout, 1), wst, params["bs"].reshape(cout, 1))

    st = jnp.sum(st, axis=0)                               # (Cout, 4)
    cnt = n * ho * wo
    sc2, sh2 = _bn_scale_shift(st[:, 0], st[:, 1], cnt,
                               params["g2"], params["be2"])
    scs, shs = _bn_scale_shift(st[:, 2], st[:, 3], cnt,
                               params["gs"], params["bes"])

    # Keep the valid / stride-subsampled positions (cheap XLA slicing).
    y1 = y1w.reshape(n, cout, h, wp1)[:, :, ::s, ::s][:, :, :ho, :wo]
    sk = skw.reshape(n, cout, h, wp1)[:, :, ::s, ::s][:, :, :ho, :wo]

    # ---- pass 2: fused BN2+ReLU -> conv2, + skip-BN affine + residual add ---
    wp2 = wo + 2
    lp2 = (ho + 3) * wp2
    lo2 = ho * wp2
    yf = _flat_pad(y1, 1)                                  # (N, Cout, Lp2)
    m2 = _interior_mask(ho, wo, 1)                         # (1, Lp2)
    sk_wide = jnp.pad(sk, ((0, 0), (0, 0), (0, 0), (0, 2))).reshape(n, cout, lo2)
    w2t = jnp.transpose(params["w2"], (2, 3, 0, 1)).reshape(9, cout, cout)

    kern2 = functools.partial(_fused_conv2_add_kernel, wp=wp2)
    outw = pl.pallas_call(
        kern2,
        out_shape=jax.ShapeDtypeStruct((n, cout, lo2), jnp.float32),
        grid=(n,),
        in_specs=[
            pl.BlockSpec((1, cout, lp2), lambda i: (i, 0, 0)),  # y1 flat padded
            pl.BlockSpec((1, lp2), lambda i: (0, 0)),           # interior mask
            pl.BlockSpec((cout, 1), lambda i: (0, 0)),          # BN2 scale
            pl.BlockSpec((cout, 1), lambda i: (0, 0)),          # BN2 shift
            pl.BlockSpec((9, cout, cout), lambda i: (0, 0, 0)), # w2 taps
            pl.BlockSpec((cout, 1), lambda i: (0, 0)),          # b2
            pl.BlockSpec((1, cout, lo2), lambda i: (i, 0, 0)),  # skip (wide)
            pl.BlockSpec((cout, 1), lambda i: (0, 0)),          # skip-BN scale
            pl.BlockSpec((cout, 1), lambda i: (0, 0)),          # skip-BN shift
        ],
        out_specs=pl.BlockSpec((1, cout, lo2), lambda i: (i, 0, 0)),
        compiler_params=_parallel(),
    )(yf, m2, sc2.reshape(cout, 1), sh2.reshape(cout, 1), w2t,
      params["b2"].reshape(cout, 1), sk_wide, scs.reshape(cout, 1),
      shs.reshape(cout, 1))

    # Drop the two garbage columns of the wide layout -> (N, Cout, Ho, Wo).
    return outw.reshape(n, cout, ho, wp2)[:, :, :, :wo]


# ----------------------------- parameters & reference ------------------------

def init_params(key, cin, cout):
    ks = jax.random.split(key, 12)

    def wconv(k, co, ci):
        return 0.1 * jax.random.normal(k, (co, ci, 3, 3), jnp.float32)

    def vec(k, c):
        return 0.1 * jax.random.normal(k, (c,), jnp.float32)

    return dict(
        g1=1.0 + vec(ks[0], cin), be1=vec(ks[1], cin),        # BatchNorm2d(input_dim)
        w1=wconv(ks[2], cout, cin), b1=vec(ks[3], cout),      # Conv2d(in->out, 3, stride, padding)
        g2=1.0 + vec(ks[4], cout), be2=vec(ks[5], cout),      # BatchNorm2d(output_dim)
        w2=wconv(ks[6], cout, cout), b2=vec(ks[7], cout),     # Conv2d(out->out, 3, padding=1)
        ws=wconv(ks[8], cout, cin), bs=vec(ks[9], cout),      # skip Conv2d(in->out, 3, stride, 1)
        gs=1.0 + vec(ks[10], cout), bes=vec(ks[11], cout),    # skip BatchNorm2d(output_dim)
    )


def ref_forward(x, p, stride, padding):
    """Plain-JAX reference (lax.conv) for validation."""
    def bn(t, g, b):
        m = t.mean(axis=(0, 2, 3), keepdims=True)
        v = ((t - m) ** 2).mean(axis=(0, 2, 3), keepdims=True)
        return (t - m) * jax.lax.rsqrt(v + EPS) * g.reshape(1, -1, 1, 1) + b.reshape(1, -1, 1, 1)

    def conv(t, w, b, s, pad):
        o = jax.lax.conv_general_dilated(
            t, w, (s, s), [(pad, pad), (pad, pad)],
            dimension_numbers=("NCHW", "OIHW", "NCHW"))
        return o + b.reshape(1, -1, 1, 1)

    y = jax.nn.relu(bn(x, p["g1"], p["be1"]))
    c1 = conv(y, p["w1"], p["b1"], stride, padding)
    z = jax.nn.relu(bn(c1, p["g2"], p["be2"]))
    block = conv(z, p["w2"], p["b2"], 1, 1)
    skip = bn(conv(x, p["ws"], p["bs"], stride, 1), p["gs"], p["bes"])
    return block + skip


# ----------------------------- main ------------------------------------------

if __name__ == "__main__":
    key = jax.random.PRNGKey(0)
    kx, kp = jax.random.split(key)

    N, CIN, H, W = 2, 4, 16, 16
    COUT, STRIDE, PADDING = 8, 1, 1

    x = jax.random.normal(kx, (N, CIN, H, W), jnp.float32)
    params = init_params(kp, CIN, COUT)

    fwd = jax.jit(functools.partial(residual_conv_forward,
                                    stride=STRIDE, padding=PADDING))
    out = jax.block_until_ready(fwd(x, params))

    ref = ref_forward(x, params, STRIDE, PADDING)
    assert out.shape == ref.shape == (N, COUT, H // STRIDE, W // STRIDE)
    err = float(jnp.max(jnp.abs(out - ref)))
    assert bool(jnp.allclose(out, ref, rtol=5e-2, atol=5e-2)), (
        f"mismatch: max abs err = {err}")

    print("KERNEL_OK")
</pallas_src>

<mosaic_0001>
module attributes {stable_mosaic.version = 11 : i64} {
  func.func @_x_stats_kernel(%arg0: i32, %arg1: memref<1x4x342xf32, #tpu.memory_space<vmem>>, %arg2: memref<1x342xf32, #tpu.memory_space<vmem>>, %arg3: memref<1x4x2xf32, #tpu.memory_space<vmem>>) attributes {dimension_semantics = [#tpu.dimension_semantics<parallel>], iteration_bounds = array<i64: 2>, scalar_prefetch = 0 : i64, scratch_operands = 0 : i64, tpu.core_type = #tpu.core_type<tc>, window_params = [{transform_indices = @transform_0, window_bounds = array<i64: 1, 4, 342>}, {pipeline_mode = #tpu.pipeline_mode<synchronous>, transform_indices = @transform_1, window_bounds = array<i64: 1, 342>}, {transform_indices = @transform_2, window_bounds = array<i64: 1, 4, 2>}]} {
    %c0 = arith.constant 0 : index
    %c0_0 = arith.constant 0 : index
    %c0_1 = arith.constant 0 : index
    %0 = vector.load %arg1[%c0, %c0_0, %c0_1] : memref<1x4x342xf32, #tpu.memory_space<vmem>>, vector<1x4x342xf32>
    %1 = vector.shape_cast %0 : vector<1x4x342xf32> to vector<4x342xf32>
    %c0_2 = arith.constant 0 : index
    %c0_3 = arith.constant 0 : index
    %2 = vector.load %arg2[%c0_2, %c0_3] : memref<1x342xf32, #tpu.memory_space<vmem>>, vector<1x342xf32>
    %3 = vector.broadcast %2 : vector<1x342xf32> to vector<4x342xf32>
    %4 = arith.mulf %1, %3 : vector<4x342xf32>
    %cst = arith.constant dense<0.000000e+00> : vector<4xf32>
    %5 = vector.multi_reduction <add>, %4, %cst [1] : vector<4x342xf32> to vector<4xf32>
    %6 = vector.shape_cast %5 : vector<4xf32> to vector<4x1xf32>
    %7 = arith.mulf %4, %4 : vector<4x342xf32>
    %cst_4 = arith.constant dense<0.000000e+00> : vector<4xf32>
    %8 = vector.multi_reduction <add>, %7, %cst_4 [1] : vector<4x342xf32> to vector<4xf32>
    %9 = vector.shape_cast %8 : vector<4xf32> to vector<4x1xf32>
    %10 = tpu.concatenate %6, %9 in 1 : vector<4x1xf32>, vector<4x1xf32> -> vector<4x2xf32>
    %c0_5 = arith.constant 0 : index
    %c0_6 = arith.constant 0 : index
    %c0_7 = arith.constant 0 : index
    %11 = vector.load %arg3[%c0_5, %c0_6, %c0_7] : memref<1x4x2xf32, #tpu.memory_space<vmem>>, vector<1x4x2xf32>
    %12 = vector.shape_cast %11 : vector<1x4x2xf32> to vector<4x2xf32>
    %13 = vector.shape_cast %10 : vector<4x2xf32> to vector<1x4x2xf32>
    tpu.vector_store %arg3[%c0_5, %c0_6, %c0_7], %13 {strides = array<i32>} : memref<1x4x2xf32, #tpu.memory_space<vmem>>, vector<1x4x2xf32>,
    return
  }
  func.func @transform_0(%arg0: i32) -> (i32, i32, i32) {
    %c0_i32 = arith.constant 0 : i32
    %c0_i32_0 = arith.constant 0 : i32
    %c0_i32_1 = arith.constant 0 : i32
    return %arg0, %c0_i32, %c0_i32_0 : i32, i32, i32
  }
  func.func @transform_1(%arg0: i32) -> (i32, i32) {
    %c0_i32 = arith.constant 0 : i32
    %c0_i32_0 = arith.constant 0 : i32
    %c0_i32_1 = arith.constant 0 : i32
    return %c0_i32, %c0_i32_0 : i32, i32
  }
  func.func @transform_2(%arg0: i32) -> (i32, i32, i32) {
    %c0_i32 = arith.constant 0 : i32
    %c0_i32_0 = arith.constant 0 : i32
    %c0_i32_1 = arith.constant 0 : i32
    return %arg0, %c0_i32, %c0_i32_0 : i32, i32, i32
  }
}

module attributes {stable_mosaic.version = 11 : i64} {
  func.func @_fused_conv1_skip_kernel(%arg0: i32, %arg1: memref<1x4x342xf32, #tpu.memory_space<vmem>>, %arg2: memref<1x342xf32, #tpu.memory_space<vmem>>, %arg3: memref<1x288xf32, #tpu.memory_space<vmem>>, %arg4: memref<4x1xf32, #tpu.memory_space<vmem>>, %arg5: memref<4x1xf32, #tpu.memory_space<vmem>>, %arg6: memref<9x8x4xf32, #tpu.memory_space<vmem>>, %arg7: memref<8x1xf32, #tpu.memory_space<vmem>>, %arg8: memref<9x8x4xf32, #tpu.memory_space<vmem>>, %arg9: memref<8x1xf32, #tpu.memory_space<vmem>>, %arg10: memref<1x8x288xf32, #tpu.memory_space<vmem>>, %arg11: memref<1x8x288xf32, #tpu.memory_space<vmem>>, %arg12: memref<1x8x4xf32, #tpu.memory_space<vmem>>) attributes {dimension_semantics = [#tpu.dimension_semantics<parallel>], iteration_bounds = array<i64: 2>, scalar_prefetch = 0 : i64, scratch_operands = 0 : i64, tpu.core_type = #tpu.core_type<tc>, window_params = [{transform_indices = @transform_0, window_bounds = array<i64: 1, 4, 342>}, {pipeline_mode = #tpu.pipeline_mode<synchronous>, transform_indices = @transform_1, window_bounds = array<i64: 1, 342>}, {pipeline_mode = #tpu.pipeline_mode<synchronous>, transform_indices = @transform_2, window_bounds = array<i64: 1, 288>}, {pipeline_mode = #tpu.pipeline_mode<synchronous>, transform_indices = @transform_3, window_bounds = array<i64: 4, 1>}, {pipeline_mode = #tpu.pipeline_mode<synchronous>, transform_indices = @transform_4, window_bounds = array<i64: 4, 1>}, {pipeline_mode = #tpu.pipeline_mode<synchronous>, transform_indices = @transform_5, window_bounds = array<i64: 9, 8, 4>}, {pipeline_mode = #tpu.pipeline_mode<synchronous>, transform_indices = @transform_6, window_bounds = array<i64: 8, 1>}, {pipeline_mode = #tpu.pipeline_mode<synchronous>, transform_indices = @transform_7, window_bounds = array<i64: 9, 8, 4>}, {pipeline_mode = #tpu.pipeline_mode<synchronous>, transform_indices = @transform_8, window_bounds = array<i64: 8, 1>}, {transform_indices = @transform_9, window_bounds = array<i64: 1, 8, 288>}, {transform_indices = @transform_10, window_bounds = array<i64: 1, 8, 288>}, {transform_indices = @transform_11, window_bounds = array<i64: 1, 8, 4>}]} {
    %c0 = arith.constant 0 : index
    %c0_0 = arith.constant 0 : index
    %c0_1 = arith.constant 0 : index
    %0 = vector.load %arg1[%c0, %c0_0, %c0_1] : memref<1x4x342xf32, #tpu.memory_space<vmem>>, vector<1x4x342xf32>
    %1 = vector.shape_cast %0 : vector<1x4x342xf32> to vector<4x342xf32>
    %c0_2 = arith.constant 0 : index
    %c0_3 = arith.constant 0 : index
    %2 = vector.load %arg4[%c0_2, %c0_3] : memref<4x1xf32, #tpu.memory_space<vmem>>, vector<4x1xf32>
    %3 = vector.broadcast %2 : vector<4x1xf32> to vector<4x342xf32>
    %4 = arith.mulf %1, %3 : vector<4x342xf32>
    %c0_4 = arith.constant 0 : index
    %c0_5 = arith.constant 0 : index
    %5 = vector.load %arg5[%c0_4, %c0_5] : memref<4x1xf32, #tpu.memory_space<vmem>>, vector<4x1xf32>
    %6 = vector.broadcast %5 : vector<4x1xf32> to vector<4x342xf32>
    %7 = arith.addf %4, %6 : vector<4x342xf32>
    %cst = arith.constant 0.000000e+00 : f32
    %8 = vector.broadcast %cst : f32 to vector<4x342xf32>
    %9 = arith.maximumf %7, %8 : vector<4x342xf32>
    %c0_6 = arith.constant 0 : index
    %c0_7 = arith.constant 0 : index
    %10 = vector.load %arg2[%c0_6, %c0_7] : memref<1x342xf32, #tpu.memory_space<vmem>>, vector<1x342xf32>
    %11 = vector.broadcast %10 : vector<1x342xf32> to vector<4x342xf32>
    %12 = arith.mulf %9, %11 : vector<4x342xf32>
    %cst_8 = arith.constant 0.000000e+00 : f32
    %13 = vector.broadcast %cst_8 : f32 to vector<8x288xf32>
    %cst_9 = arith.constant 0.000000e+00 : f32
    %14 = vector.broadcast %cst_9 : f32 to vector<8x288xf32>
    %c0_10 = arith.constant 0 : index
    %c0_11 = arith.constant 0 : index
    %c0_12 = arith.constant 0 : index
    %15 = vector.load %arg6[%c0_10, %c0_11, %c0_12] : memref<9x8x4xf32, #tpu.memory_space<vmem>>, vector<1x8x4xf32>
    %16 = vector.shape_cast %15 : vector<1x8x4xf32> to vector<8x4xf32>
    %17 = vector.extract_strided_slice %12 {offsets = [0, 0], sizes = [4, 288], strides = [1, 1]} : vector<4x342xf32> to vector<4x288xf32>
    %cst_13 = arith.constant dense<0.000000e+00> : vector<8x288xf32>
    %18 = tpu.matmul %16, %17, %cst_13 {dimension_numbers = #tpu.dot_dimension_numbers<[1], [0], [0], [1], [0, 0, 1, 1], [], []>} : vector<8x4xf32>, vector<4x288xf32>, vector<8x288xf32> -> vector<8x288xf32>
    %19 = arith.addf %13, %18 : vector<8x288xf32>
    %c0_14 = arith.constant 0 : index
    %c0_15 = arith.constant 0 : index
    %c0_16 = arith.constant 0 : index
    %20 = vector.load %arg8[%c0_14, %c0_15, %c0_16] : memref<9x8x4xf32, #tpu.memory_space<vmem>>, vector<1x8x4xf32>
    %21 = vector.shape_cast %20 : vector<1x8x4xf32> to vector<8x4xf32>
    %22 = vector.extract_strided_slice %1 {offsets = [0, 0], sizes = [4, 288], strides = [1, 1]} : vector<4x342xf32> to vector<4x288xf32>
    %cst_17 = arith.constant dense<0.000000e+00> : vector<8x288xf32>
    %23 = tpu.matmul %21, %22, %cst_17 {dimension_numbers = #tpu.dot_dimension_numbers<[1], [0], [0], [1], [0, 0, 1, 1], [], []>} : vector<8x4xf32>, vector<4x288xf32>, vector<8x288xf32> -> vector<8x288xf32>
    %24 = arith.addf %14, %23 : vector<8x288xf32>
    %c1 = arith.constant 1 : index
    %c0_18 = arith.constant 0 : index
    %c0_19 = arith.constant 0 : index
    %25 = vector.load %arg6[%c1, %c0_18, %c0_19] : memref<9x8x4xf32, #tpu.memory_space<vmem>>, vector<1x8x4xf32>
    %26 = vector.shape_cast %25 : vector<1x8x4xf32> to vector<8x4xf32>
    %27 = vector.extract_strided_slice %12 {offsets = [0, 1], sizes = [4, 288], strides = [1, 1]} : vector<4x342xf32> to vector<4x288xf32>
    %cst_20 = arith.constant dense<0.000000e+00> : vector<8x288xf32>
    %28 = tpu.matmul %26, %27, %cst_20 {dimension_numbers = #tpu.dot_dimension_numbers<[1], [0], [0], [1], [0, 0, 1, 1], [], []>} : vector<8x4xf32>, vector<4x288xf32>, vector<8x288xf32> -> vector<8x288xf32>
    %29 = arith.addf %19, %28 : vector<8x288xf32>
    %c1_21 = arith.constant 1 : index
    %c0_22 = arith.constant 0 : index
    %c0_23 = arith.constant 0 : index
    %30 = vector.load %arg8[%c1_21, %c0_22, %c0_23] : memref<9x8x4xf32, #tpu.memory_space<vmem>>, vector<1x8x4xf32>
    %31 = vector.shape_cast %30 : vector<1x8x4xf32> to vector<8x4xf32>
    %32 = vector.extract_strided_slice %1 {offsets = [0, 1], sizes = [4, 288], strides = [1, 1]} : vector<4x342xf32> to vector<4x288xf32>
    %cst_24 = arith.constant dense<0.000000e+00> : vector<8x288xf32>
    %33 = tpu.matmul %31, %32, %cst_24 {dimension_numbers = #tpu.dot_dimension_numbers<[1], [0], [0], [1], [0, 0, 1, 1], [], []>} : vector<8x4xf32>, vector<4x288xf32>, vector<8x288xf32> -> vector<8x288xf32>
    %34 = arith.addf %24, %33 : vector<8x288xf32>
    %c2 = arith.constant 2 : index
    %c0_25 = arith.constant 0 : index
    %c0_26 = arith.constant 0 : index
    %35 = vector.load %arg6[%c2, %c0_25, %c0_26] : memref<9x8x4xf32, #tpu.memory_space<vmem>>, vector<1x8x4xf32>
    %36 = vector.shape_cast %35 : vector<1x8x4xf32> to vector<8x4xf32>
    %37 = vector.extract_strided_slice %12 {offsets = [0, 2], sizes = [4, 288], strides = [1, 1]} : vector<4x342xf32> to vector<4x288xf32>
    %cst_27 = arith.constant dense<0.000000e+00> : vector<8x288xf32>
    %38 = tpu.matmul %36, %37, %cst_27 {dimension_numbers = #tpu.dot_dimension_numbers<[1], [0], [0], [1], [0, 0, 1, 1], [], []>} : vector<8x4xf32>, vector<4x288xf32>, vector<8x288xf32> -> vector<8x288xf32>
    %39 = arith.addf %29, %38 : vector<8x288xf32>
    %c2_28 = arith.constant 2 : index
    %c0_29 = arith.constant 0 : index
    %c0_30 = arith.constant 0 : index
    %40 = vector.load %arg8[%c2_28, %c0_29, %c0_30] : memref<9x8x4xf32, #tpu.memory_space<vmem>>, vector<1x8x4xf32>
    %41 = vector.shape_cast %40 : vector<1x8x4xf32> to vector<8x4xf32>
    %42 = vector.extract_strided_slice %1 {offsets = [0, 2], sizes = [4, 288], strides = [1, 1]} : vector<4x342xf32> to vector<4x288xf32>
    %cst_31 = arith.constant dense<0.000000e+00> : vector<8x288xf32>
    %43 = tpu.matmul %41, %42, %cst_31 {dimension_numbers = #tpu.dot_dimension_numbers<[1], [0], [0], [1], [0, 0, 1, 1], [], []>} : vector<8x4xf32>, vector<4x288xf32>, vector<8x288xf32> -> vector<8x288xf32>
    %44 = arith.addf %34, %43 : vector<8x288xf32>
    %c3 = arith.constant 3 : index
    %c0_32 = arith.constant 0 : index
    %c0_33 = arith.constant 0 : index
    %45 = vector.load %arg6[%c3, %c0_32, %c0_33] : memref<9x8x4xf32, #tpu.memory_space<vmem>>, vector<1x8x4xf32>
    %46 = vector.shape_cast %45 : vector<1x8x4xf32> to vector<8x4xf32>
    %47 = vector.extract_strided_slice %12 {offsets = [0, 18], sizes = [4, 288], strides = [1, 1]} : vector<4x342xf32> to vector<4x288xf32>
    %cst_34 = arith.constant dense<0.000000e+00> : vector<8x288xf32>
    %48 = tpu.matmul %46, %47, %cst_34 {dimension_numbers = #tpu.dot_dimension_numbers<[1], [0], [0], [1], [0, 0, 1, 1], [], []>} : vector<8x4xf32>, vector<4x288xf32>, vector<8x288xf32> -> vector<8x288xf32>
    %49 = arith.addf %39, %48 : vector<8x288xf32>
    %c3_35 = arith.constant 3 : index
    %c0_36 = arith.constant 0 : index
    %c0_37 = arith.constant 0 : index
    %50 = vector.load %arg8[%c3_35, %c0_36, %c0_37] : memref<9x8x4xf32, #tpu.memory_space<vmem>>, vector<1x8x4xf32>
    %51 = vector.shape_cast %50 : vector<1x8x4xf32> to vector<8x4xf32>
    %52 = vector.extract_strided_slice %1 {offsets = [0, 18], sizes = [4, 288], strides = [1, 1]} : vector<4x342xf32> to vector<4x288xf32>
    %cst_38 = arith.constant dense<0.000000e+00> : vector<8x288xf32>
    %53 = tpu.matmul %51, %52, %cst_38 {dimension_numbers = #tpu.dot_dimension_numbers<[1], [0], [0], [1], [0, 0, 1, 1], [], []>} : vector<8x4xf32>, vector<4x288xf32>, vector<8x288xf32> -> vector<8x288xf32>
    %54 = arith.addf %44, %53 : vector<8x288xf32>
    %c4 = arith.constant 4 : index
    %c0_39 = arith.constant 0 : index
    %c0_40 = arith.constant 0 : index
    %55 = vector.load %arg6[%c4, %c0_39, %c0_40] : memref<9x8x4xf32, #tpu.memory_space<vmem>>, vector<1x8x4xf32>
    %56 = vector.shape_cast %55 : vector<1x8x4xf32> to vector<8x4xf32>
    %57 = vector.extract_strided_slice %12 {offsets = [0, 19], sizes = [4, 288], strides = [1, 1]} : vector<4x342xf32> to vector<4x288xf32>
    %cst_41 = arith.constant dense<0.000000e+00> : vector<8x288xf32>
    %58 = tpu.matmul %56, %57, %cst_41 {dimension_numbers = #tpu.dot_dimension_numbers<[1], [0], [0], [1], [0, 0, 1, 1], [], []>} : vector<8x4xf32>, vector<4x288xf32>, vector<8x288xf32> -> vector<8x288xf32>
    %59 = arith.addf %49, %58 : vector<8x288xf32>
    %c4_42 = arith.constant 4 : index
    %c0_43 = arith.constant 0 : index
    %c0_44 = arith.constant 0 : index
    %60 = vector.load %arg8[%c4_42, %c0_43, %c0_44] : memref<9x8x4xf32, #tpu.memory_space<vmem>>, vector<1x8x4xf32>
    %61 = vector.shape_cast %60 : vector<1x8x4xf32> to vector<8x4xf32>
    %62 = vector.extract_strided_slice %1 {offsets = [0, 19], sizes = [4, 288], strides = [1, 1]} : vector<4x342xf32> to vector<4x288xf32>
    %cst_45 = arith.constant dense<0.000000e+00> : vector<8x288xf32>
    %63 = tpu.matmul %61, %62, %cst_45 {dimension_numbers = #tpu.dot_dimension_numbers<[1], [0], [0], [1], [0, 0, 1, 1], [], []>} : vector<8x4xf32>, vector<4x288xf32>, vector<8x288xf32> -> vector<8x288xf32>
    %64 = arith.addf %54, %63 : vector<8x288xf32>
    %c5 = arith.constant 5 : index
    %c0_46 = arith.constant 0 : index
    %c0_47 = arith.constant 0 : index
    %65 = vector.load %arg6[%c5, %c0_46, %c0_47] : memref<9x8x4xf32, #tpu.memory_space<vmem>>, vector<1x8x4xf32>
    %66 = vector.shape_cast %65 : vector<1x8x4xf32> to vector<8x4xf32>
    %67 = vector.extract_strided_slice %12 {offsets = [0, 20], sizes = [4, 288], strides = [1, 1]} : vector<4x342xf32> to vector<4x288xf32>
    %cst_48 = arith.constant dense<0.000000e+00> : vector<8x288xf32>
    %68 = tpu.matmul %66, %67, %cst_48 {dimension_numbers = #tpu.dot_dimension_numbers<[1], [0], [0], [1], [0, 0, 1, 1], [], []>} : vector<8x4xf32>, vector<4x288xf32>, vector<8x288xf32> -> vector<8x288xf32>
    %69 = arith.addf %59, %68 : vector<8x288xf32>
    %c5_49 = arith.constant 5 : index
    %c0_50 = arith.constant 0 : index
    %c0_51 = arith.constant 0 : index
    %70 = vector.load %arg8[%c5_49, %c0_50, %c0_51] : memref<9x8x4xf32, #tpu.memory_space<vmem>>, vector<1x8x4xf32>
    %71 = vector.shape_cast %70 : vector<1x8x4xf32> to vector<8x4xf32>
    %72 = vector.extract_strided_slice %1 {offsets = [0, 20], sizes = [4, 288], strides = [1, 1]} : vector<4x342xf32> to vector<4x288xf32>
    %cst_52 = arith.constant dense<0.000000e+00> : vector<8x288xf32>
    %73 = tpu.matmul %71, %72, %cst_52 {dimension_numbers = #tpu.dot_dimension_numbers<[1], [0], [0], [1], [0, 0, 1, 1], [], []>} : vector<8x4xf32>, vector<4x288xf32>, vector<8x288xf32> -> vector<8x288xf32>
    %74 = arith.addf %64, %73 : vector<8x288xf32>
    %c6 = arith.constant 6 : index
    %c0_53 = arith.constant 0 : index
    %c0_54 = arith.constant 0 : index
    %75 = vector.load %arg6[%c6, %c0_53, %c0_54] : memref<9x8x4xf32, #tpu.memory_space<vmem>>, vector<1x8x4xf32>
    %76 = vector.shape_cast %75 : vector<1x8x4xf32> to vector<8x4xf32>
    %77 = vector.extract_strided_slice %12 {offsets = [0, 36], sizes = [4, 288], strides = [1, 1]} : vector<4x342xf32> to vector<4x288xf32>
    %cst_55 = arith.constant dense<0.000000e+00> : vector<8x288xf32>
    %78 = tpu.matmul %76, %77, %cst_55 {dimension_numbers = #tpu.dot_dimension_numbers<[1], [0], [0], [1], [0, 0, 1, 1], [], []>} : vector<8x4xf32>, vector<4x288xf32>, vector<8x288xf32> -> vector<8x288xf32>
    %79 = arith.addf %69, %78 : vector<8x288xf32>
    %c6_56 = arith.constant 6 : index
    %c0_57 = arith.constant 0 : index
    %c0_58 = arith.constant 0 : index
    %80 = vector.load %arg8[%c6_56, %c0_57, %c0_58] : memref<9x8x4xf32, #tpu.memory_space<vmem>>, vector<1x8x4xf32>
    %81 = vector.shape_cast %80 : vector<1x8x4xf32> to vector<8x4xf32>
    %82 = vector.extract_strided_slice %1 {offsets = [0, 36], sizes = [4, 288], strides = [1, 1]} : vector<4x342xf32> to vector<4x288xf32>
    %cst_59 = arith.constant dense<0.000000e+00> : vector<8x288xf32>
    %83 = tpu.matmul %81, %82, %cst_59 {dimension_numbers = #tpu.dot_dimension_numbers<[1], [0], [0], [1], [0, 0, 1, 1], [], []>} : vector<8x4xf32>, vector<4x288xf32>, vector<8x288xf32> -> vector<8x288xf32>
    %84 = arith.addf %74, %83 : vector<8x288xf32>
    %c7 = arith.constant 7 : index
    %c0_60 = arith.constant 0 : index
    %c0_61 = arith.constant 0 : index
    %85 = vector.load %arg6[%c7, %c0_60, %c0_61] : memref<9x8x4xf32, #tpu.memory_space<vmem>>, vector<1x8x4xf32>
    %86 = vector.shape_cast %85 : vector<1x8x4xf32> to vector<8x4xf32>
    %87 = vector.extract_strided_slice %12 {offsets = [0, 37], sizes = [4, 288], strides = [1, 1]} : vector<4x342xf32> to vector<4x288xf32>
    %cst_62 = arith.constant dense<0.000000e+00> : vector<8x288xf32>
    %88 = tpu.matmul %86, %87, %cst_62 {dimension_numbers = #tpu.dot_dimension_numbers<[1], [0], [0], [1], [0, 0, 1, 1], [], []>} : vector<8x4xf32>, vector<4x288xf32>, vector<8x288xf32> -> vector<8x288xf32>
    %89 = arith.addf %79, %88 : vector<8x288xf32>
    %c7_63 = arith.constant 7 : index
    %c0_64 = arith.constant 0 : index
    %c0_65 = arith.constant 0 : index
    %90 = vector.load %arg8[%c7_63, %c0_64, %c0_65] : memref<9x8x4xf32, #tpu.memory_space<vmem>>, vector<1x8x4xf32>
    %91 = vector.shape_cast %90 : vector<1x8x4xf32> to vector<8x4xf32>
    %92 = vector.extract_strided_slice %1 {offsets = [0, 37], sizes = [4, 288], strides = [1, 1]} : vector<4x342xf32> to vector<4x288xf32>
    %cst_66 = arith.constant dense<0.000000e+00> : vector<8x288xf32>
    %93 = tpu.matmul %91, %92, %cst_66 {dimension_numbers = #tpu.dot_dimension_numbers<[1], [0], [0], [1], [0, 0, 1, 1], [], []>} : vector<8x4xf32>, vector<4x288xf32>, vector<8x288xf32> -> vector<8x288xf32>
    %94 = arith.addf %84, %93 : vector<8x288xf32>
    %c8 = arith.constant 8 : index
    %c0_67 = arith.constant 0 : index
    %c0_68 = arith.constant 0 : index
    %95 = vector.load %arg6[%c8, %c0_67, %c0_68] : memref<9x8x4xf32, #tpu.memory_space<vmem>>, vector<1x8x4xf32>
    %96 = vector.shape_cast %95 : vector<1x8x4xf32> to vector<8x4xf32>
    %97 = vector.extract_strided_slice %12 {offsets = [0, 38], sizes = [4, 288], strides = [1, 1]} : vector<4x342xf32> to vector<4x288xf32>
    %cst_69 = arith.constant dense<0.000000e+00> : vector<8x288xf32>
    %98 = tpu.matmul %96, %97, %cst_69 {dimension_numbers = #tpu.dot_dimension_numbers<[1], [0], [0], [1], [0, 0, 1, 1], [], []>} : vector<8x4xf32>, vector<4x288xf32>, vector<8x288xf32> -> vector<8x288xf32>
    %99 = arith.addf %89, %98 : vector<8x288xf32>
    %c8_70 = arith.constant 8 : index
    %c0_71 = arith.constant 0 : index
    %c0_72 = arith.constant 0 : index
    %100 = vector.load %arg8[%c8_70, %c0_71, %c0_72] : memref<9x8x4xf32, #tpu.memory_space<vmem>>, vector<1x8x4xf32>
    %101 = vector.shape_cast %100 : vector<1x8x4xf32> to vector<8x4xf32>
    %102 = vector.extract_strided_slice %1 {offsets = [0, 38], sizes = [4, 288], strides = [1, 1]} : vector<4x342xf32> to vector<4x288xf32>
    %cst_73 = arith.constant dense<0.000000e+00> : vector<8x288xf32>
    %103 = tpu.matmul %101, %102, %cst_73 {dimension_numbers = #tpu.dot_dimension_numbers<[1], [0], [0], [1], [0, 0, 1, 1], [], []>} : vector<8x4xf32>, vector<4x288xf32>, vector<8x288xf32> -> vector<8x288xf32>
    %104 = arith.addf %94, %103 : vector<8x288xf32>
    %c0_74 = arith.constant 0 : index
    %c0_75 = arith.constant 0 : index
    %105 = vector.load %arg7[%c0_74, %c0_75] : memref<8x1xf32, #tpu.memory_space<vmem>>, vector<8x1xf32>
    %106 = vector.broadcast %105 : vector<8x1xf32> to vector<8x288xf32>
    %107 = arith.addf %99, %106 : vector<8x288xf32>
    %c0_76 = arith.constant 0 : index
    %c0_77 = arith.constant 0 : index
    %108 = vector.load %arg9[%c0_76, %c0_77] : memref<8x1xf32, #tpu.memory_space<vmem>>, vector<8x1xf32>
    %109 = vector.broadcast %108 : vector<8x1xf32> to vector<8x288xf32>
    %110 = arith.addf %104, %109 : vector<8x288xf32>
    %c0_78 = arith.constant 0 : index
    %c0_79 = arith.constant 0 : index
    %c0_80 = arith.constant 0 : index
    %111 = vector.load %arg10[%c0_78, %c0_79, %c0_80] : memref<1x8x288xf32, #tpu.memory_space<vmem>>, vector<1x8x288xf32>
    %112 = vector.shape_cast %111 : vector<1x8x288xf32> to vector<8x288xf32>
    %113 = vector.shape_cast %107 : vector<8x288xf32> to vector<1x8x288xf32>
    tpu.vector_store %arg10[%c0_78, %c0_79, %c0_80], %113 {strides = array<i32>} : memref<1x8x288xf32, #tpu.memory_space<vmem>>, vector<1x8x288xf32>,
    %c0_81 = arith.constant 0 : index
    %c0_82 = arith.constant 0 : index
    %c0_83 = arith.constant 0 : index
    %114 = vector.load %arg11[%c0_81, %c0_82, %c0_83] : memref<1x8x288xf32, #tpu.memory_space<vmem>>, vector<1x8x288xf32>
    %115 = vector.shape_cast %114 : vector<1x8x288xf32> to vector<8x288xf32>
    %116 = vector.shape_cast %110 : vector<8x288xf32> to vector<1x8x288xf32>
    tpu.vector_store %arg11[%c0_81, %c0_82, %c0_83], %116 {strides = array<i32>} : memref<1x8x288xf32, #tpu.memory_space<vmem>>, vector<1x8x288xf32>,
    %c0_84 = arith.constant 0 : index
    %c0_85 = arith.constant 0 : index
    %117 = vector.load %arg3[%c0_84, %c0_85] : memref<1x288xf32, #tpu.memory_space<vmem>>, vector<1x288xf32>
    %118 = vector.broadcast %117 : vector<1x288xf32> to vector<8x288xf32>
    %119 = arith.mulf %107, %118 : vector<8x288xf32>
    %120 = vector.broadcast %117 : vector<1x288xf32> to vector<8x288xf32>
    %121 = arith.mulf %110, %120 : vector<8x288xf32>
    %cst_86 = arith.constant dense<0.000000e+00> : vector<8xf32>
    %122 = vector.multi_reduction <add>, %119, %cst_86 [1] : vector<8x288xf32> to vector<8xf32>
    %123 = vector.shape_cast %122 : vector<8xf32> to vector<8x1xf32>
    %124 = arith.mulf %119, %107 : vector<8x288xf32>
    %cst_87 = arith.constant dense<0.000000e+00> : vector<8xf32>
    %125 = vector.multi_reduction <add>, %124, %cst_87 [1] : vector<8x288xf32> to vector<8xf32>
    %126 = vector.shape_cast %125 : vector<8xf32> to vector<8x1xf32>
    %cst_88 = arith.constant dense<0.000000e+00> : vector<8xf32>
    %127 = vector.multi_reduction <add>, %121, %cst_88 [1] : vector<8x288xf32> to vector<8xf32>
    %128 = vector.shape_cast %127 : vector<8xf32> to vector<8x1xf32>
    %129 = arith.mulf %121, %110 : vector<8x288xf32>
    %cst_89 = arith.constant dense<0.000000e+00> : vector<8xf32>
    %130 = vector.multi_reduction <add>, %129, %cst_89 [1] : vector<8x288xf32> to vector<8xf32>
    %131 = vector.shape_cast %130 : vector<8xf32> to vector<8x1xf32>
    %132 = tpu.concatenate %123, %126, %128, %131 in 1 : vector<8x1xf32>, vector<8x1xf32>, vector<8x1xf32>, vector<8x1xf32> -> vector<8x4xf32>
    %c0_90 = arith.constant 0 : index
    %c0_91 = arith.constant 0 : index
    %c0_92 = arith.constant 0 : index
    %133 = vector.load %arg12[%c0_90, %c0_91, %c0_92] : memref<1x8x4xf32, #tpu.memory_space<vmem>>, vector<1x8x4xf32>
    %134 = vector.shape_cast %133 : vector<1x8x4xf32> to vector<8x4xf32>
    %135 = vector.shape_cast %132 : vector<8x4xf32> to vector<1x8x4xf32>
    tpu.vector_store %arg12[%c0_90, %c0_91, %c0_92], %135 {strides = array<i32>} : memref<1x8x4xf32, #tpu.memory_space<vmem>>, vector<1x8x4xf32>,
    return
  }
  func.func @transform_0(%arg0: i32) -> (i32, i32, i32) {
    %c0_i32 = arith.constant 0 : i32
    %c0_i32_0 = arith.constant 0 : i32
    %c0_i32_1 = arith.constant 0 : i32
    return %arg0, %c0_i32, %c0_i32_0 : i32, i32, i32
  }
  func.func @transform_1(%arg0: i32) -> (i32, i32) {
    %c0_i32 = arith.constant 0 : i32
    %c0_i32_0 = arith.constant 0 : i32
    %c0_i32_1 = arith.constant 0 : i32
    return %c0_i32, %c0_i32_0 : i32, i32
  }
  func.func @transform_2(%arg0: i32) -> (i32, i32) {
    %c0_i32 = arith.constant 0 : i32
    %c0_i32_0 = arith.constant 0 : i32
    %c0_i32_1 = arith.constant 0 : i32
    return %c0_i32, %c0_i32_0 : i32, i32
  }
  func.func @transform_3(%arg0: i32) -> (i32, i32) {
    %c0_i32 = arith.constant 0 : i32
    %c0_i32_0 = arith.constant 0 : i32
    %c0_i32_1 = arith.constant 0 : i32
    return %c0_i32, %c0_i32_0 : i32, i32
  }
  func.func @transform_4(%arg0: i32) -> (i32, i32) {
    %c0_i32 = arith.constant 0 : i32
    %c0_i32_0 = arith.constant 0 : i32
    %c0_i32_1 = arith.constant 0 : i32
    return %c0_i32, %c0_i32_0 : i32, i32
  }
  func.func @transform_5(%arg0: i32) -> (i32, i32, i32) {
    %c0_i32 = arith.constant 0 : i32
    %c0_i32_0 = arith.constant 0 : i32
    %c0_i32_1 = arith.constant 0 : i32
    %c0_i32_2 = arith.constant 0 : i32
    return %c0_i32, %c0_i32_0, %c0_i32_1 : i32, i32, i32
  }
  func.func @transform_6(%arg0: i32) -> (i32, i32) {
    %c0_i32 = arith.constant 0 : i32
    %c0_i32_0 = arith.constant 0 : i32
    %c0_i32_1 = arith.constant 0 : i32
    return %c0_i32, %c0_i32_0 : i32, i32
  }
  func.func @transform_7(%arg0: i32) -> (i32, i32, i32) {
    %c0_i32 = arith.constant 0 : i32
    %c0_i32_0 = arith.constant 0 : i32
    %c0_i32_1 = arith.constant 0 : i32
    %c0_i32_2 = arith.constant 0 : i32
    return %c0_i32, %c0_i32_0, %c0_i32_1 : i32, i32, i32
  }
  func.func @transform_8(%arg0: i32) -> (i32, i32) {
    %c0_i32 = arith.constant 0 : i32
    %c0_i32_0 = arith.constant 0 : i32
    %c0_i32_1 = arith.constant 0 : i32
    return %c0_i32, %c0_i32_0 : i32, i32
  }
  func.func @transform_9(%arg0: i32) -> (i32, i32, i32) {
    %c0_i32 = arith.constant 0 : i32
    %c0_i32_0 = arith.constant 0 : i32
    %c0_i32_1 = arith.constant 0 : i32
    return %arg0, %c0_i32, %c0_i32_0 : i32, i32, i32
  }
  func.func @transform_10(%arg0: i32) -> (i32, i32, i32) {
    %c0_i32 = arith.constant 0 : i32
    %c0_i32_0 = arith.constant 0 : i32
    %c0_i32_1 = arith.constant 0 : i32
    return %arg0, %c0_i32, %c0_i32_0 : i32, i32, i32
  }
  func.func @transform_11(%arg0: i32) -> (i32, i32, i32) {
    %c0_i32 = arith.constant 0 : i32
    %c0_i32_0 = arith.constant 0 : i32
    %c0_i32_1 = arith.constant 0 : i32
    return %arg0, %c0_i32, %c0_i32_0 : i32, i32, i32
  }
}

module attributes {stable_mosaic.version = 11 : i64} {
  func.func @_fused_conv2_add_kernel(%arg0: i32, %arg1: memref<1x8x342xf32, #tpu.memory_space<vmem>>, %arg2: memref<1x342xf32, #tpu.memory_space<vmem>>, %arg3: memref<8x1xf32, #tpu.memory_space<vmem>>, %arg4: memref<8x1xf32, #tpu.memory_space<vmem>>, %arg5: memref<9x8x8xf32, #tpu.memory_space<vmem>>, %arg6: memref<8x1xf32, #tpu.memory_space<vmem>>, %arg7: memref<1x8x288xf32, #tpu.memory_space<vmem>>, %arg8: memref<8x1xf32, #tpu.memory_space<vmem>>, %arg9: memref<8x1xf32, #tpu.memory_space<vmem>>, %arg10: memref<1x8x288xf32, #tpu.memory_space<vmem>>) attributes {dimension_semantics = [#tpu.dimension_semantics<parallel>], iteration_bounds = array<i64: 2>, scalar_prefetch = 0 : i64, scratch_operands = 0 : i64, tpu.core_type = #tpu.core_type<tc>, window_params = [{transform_indices = @transform_0, window_bounds = array<i64: 1, 8, 342>}, {pipeline_mode = #tpu.pipeline_mode<synchronous>, transform_indices = @transform_1, window_bounds = array<i64: 1, 342>}, {pipeline_mode = #tpu.pipeline_mode<synchronous>, transform_indices = @transform_2, window_bounds = array<i64: 8, 1>}, {pipeline_mode = #tpu.pipeline_mode<synchronous>, transform_indices = @transform_3, window_bounds = array<i64: 8, 1>}, {pipeline_mode = #tpu.pipeline_mode<synchronous>, transform_indices = @transform_4, window_bounds = array<i64: 9, 8, 8>}, {pipeline_mode = #tpu.pipeline_mode<synchronous>, transform_indices = @transform_5, window_bounds = array<i64: 8, 1>}, {transform_indices = @transform_6, window_bounds = array<i64: 1, 8, 288>}, {pipeline_mode = #tpu.pipeline_mode<synchronous>, transform_indices = @transform_7, window_bounds = array<i64: 8, 1>}, {pipeline_mode = #tpu.pipeline_mode<synchronous>, transform_indices = @transform_8, window_bounds = array<i64: 8, 1>}, {transform_indices = @transform_9, window_bounds = array<i64: 1, 8, 288>}]} {
    %c0 = arith.constant 0 : index
    %c0_0 = arith.constant 0 : index
    %c0_1 = arith.constant 0 : index
    %0 = vector.load %arg1[%c0, %c0_0, %c0_1] : memref<1x8x342xf32, #tpu.memory_space<vmem>>, vector<1x8x342xf32>
    %1 = vector.shape_cast %0 : vector<1x8x342xf32> to vector<8x342xf32>
    %c0_2 = arith.constant 0 : index
    %c0_3 = arith.constant 0 : index
    %2 = vector.load %arg3[%c0_2, %c0_3] : memref<8x1xf32, #tpu.memory_space<vmem>>, vector<8x1xf32>
    %3 = vector.broadcast %2 : vector<8x1xf32> to vector<8x342xf32>
    %4 = arith.mulf %1, %3 : vector<8x342xf32>
    %c0_4 = arith.constant 0 : index
    %c0_5 = arith.constant 0 : index
    %5 = vector.load %arg4[%c0_4, %c0_5] : memref<8x1xf32, #tpu.memory_space<vmem>>, vector<8x1xf32>
    %6 = vector.broadcast %5 : vector<8x1xf32> to vector<8x342xf32>
    %7 = arith.addf %4, %6 : vector<8x342xf32>
    %cst = arith.constant 0.000000e+00 : f32
    %8 = vector.broadcast %cst : f32 to vector<8x342xf32>
    %9 = arith.maximumf %7, %8 : vector<8x342xf32>
    %c0_6 = arith.constant 0 : index
    %c0_7 = arith.constant 0 : index
    %10 = vector.load %arg2[%c0_6, %c0_7] : memref<1x342xf32, #tpu.memory_space<vmem>>, vector<1x342xf32>
    %11 = vector.broadcast %10 : vector<1x342xf32> to vector<8x342xf32>
    %12 = arith.mulf %9, %11 : vector<8x342xf32>
    %cst_8 = arith.constant 0.000000e+00 : f32
    %13 = vector.broadcast %cst_8 : f32 to vector<8x288xf32>
    %c0_9 = arith.constant 0 : index
    %c0_10 = arith.constant 0 : index
    %c0_11 = arith.constant 0 : index
    %14 = vector.load %arg5[%c0_9, %c0_10, %c0_11] : memref<9x8x8xf32, #tpu.memory_space<vmem>>, vector<1x8x8xf32>
    %15 = vector.shape_cast %14 : vector<1x8x8xf32> to vector<8x8xf32>
    %16 = vector.extract_strided_slice %12 {offsets = [0, 0], sizes = [8, 288], strides = [1, 1]} : vector<8x342xf32> to vector<8x288xf32>
    %cst_12 = arith.constant dense<0.000000e+00> : vector<8x288xf32>
    %17 = tpu.matmul %15, %16, %cst_12 {dimension_numbers = #tpu.dot_dimension_numbers<[1], [0], [0], [1], [0, 0, 1, 1], [], []>} : vector<8x8xf32>, vector<8x288xf32>, vector<8x288xf32> -> vector<8x288xf32>
    %18 = arith.addf %13, %17 : vector<8x288xf32>
    %c1 = arith.constant 1 : index
    %c0_13 = arith.constant 0 : index
    %c0_14 = arith.constant 0 : index
    %19 = vector.load %arg5[%c1, %c0_13, %c0_14] : memref<9x8x8xf32, #tpu.memory_space<vmem>>, vector<1x8x8xf32>
    %20 = vector.shape_cast %19 : vector<1x8x8xf32> to vector<8x8xf32>
    %21 = vector.extract_strided_slice %12 {offsets = [0, 1], sizes = [8, 288], strides = [1, 1]} : vector<8x342xf32> to vector<8x288xf32>
    %cst_15 = arith.constant dense<0.000000e+00> : vector<8x288xf32>
    %22 = tpu.matmul %20, %21, %cst_15 {dimension_numbers = #tpu.dot_dimension_numbers<[1], [0], [0], [1], [0, 0, 1, 1], [], []>} : vector<8x8xf32>, vector<8x288xf32>, vector<8x288xf32> -> vector<8x288xf32>
    %23 = arith.addf %18, %22 : vector<8x288xf32>
    %c2 = arith.constant 2 : index
    %c0_16 = arith.constant 0 : index
    %c0_17 = arith.constant 0 : index
    %24 = vector.load %arg5[%c2, %c0_16, %c0_17] : memref<9x8x8xf32, #tpu.memory_space<vmem>>, vector<1x8x8xf32>
    %25 = vector.shape_cast %24 : vector<1x8x8xf32> to vector<8x8xf32>
    %26 = vector.extract_strided_slice %12 {offsets = [0, 2], sizes = [8, 288], strides = [1, 1]} : vector<8x342xf32> to vector<8x288xf32>
    %cst_18 = arith.constant dense<0.000000e+00> : vector<8x288xf32>
    %27 = tpu.matmul %25, %26, %cst_18 {dimension_numbers = #tpu.dot_dimension_numbers<[1], [0], [0], [1], [0, 0, 1, 1], [], []>} : vector<8x8xf32>, vector<8x288xf32>, vector<8x288xf32> -> vector<8x288xf32>
    %28 = arith.addf %23, %27 : vector<8x288xf32>
    %c3 = arith.constant 3 : index
    %c0_19 = arith.constant 0 : index
    %c0_20 = arith.constant 0 : index
    %29 = vector.load %arg5[%c3, %c0_19, %c0_20] : memref<9x8x8xf32, #tpu.memory_space<vmem>>, vector<1x8x8xf32>
    %30 = vector.shape_cast %29 : vector<1x8x8xf32> to vector<8x8xf32>
    %31 = vector.extract_strided_slice %12 {offsets = [0, 18], sizes = [8, 288], strides = [1, 1]} : vector<8x342xf32> to vector<8x288xf32>
    %cst_21 = arith.constant dense<0.000000e+00> : vector<8x288xf32>
    %32 = tpu.matmul %30, %31, %cst_21 {dimension_numbers = #tpu.dot_dimension_numbers<[1], [0], [0], [1], [0, 0, 1, 1], [], []>} : vector<8x8xf32>, vector<8x288xf32>, vector<8x288xf32> -> vector<8x288xf32>
    %33 = arith.addf %28, %32 : vector<8x288xf32>
    %c4 = arith.constant 4 : index
    %c0_22 = arith.constant 0 : index
    %c0_23 = arith.constant 0 : index
    %34 = vector.load %arg5[%c4, %c0_22, %c0_23] : memref<9x8x8xf32, #tpu.memory_space<vmem>>, vector<1x8x8xf32>
    %35 = vector.shape_cast %34 : vector<1x8x8xf32> to vector<8x8xf32>
    %36 = vector.extract_strided_slice %12 {offsets = [0, 19], sizes = [8, 288], strides = [1, 1]} : vector<8x342xf32> to vector<8x288xf32>
    %cst_24 = arith.constant dense<0.000000e+00> : vector<8x288xf32>
    %37 = tpu.matmul %35, %36, %cst_24 {dimension_numbers = #tpu.dot_dimension_numbers<[1], [0], [0], [1], [0, 0, 1, 1], [], []>} : vector<8x8xf32>, vector<8x288xf32>, vector<8x288xf32> -> vector<8x288xf32>
    %38 = arith.addf %33, %37 : vector<8x288xf32>
    %c5 = arith.constant 5 : index
    %c0_25 = arith.constant 0 : index
    %c0_26 = arith.constant 0 : index
    %39 = vector.load %arg5[%c5, %c0_25, %c0_26] : memref<9x8x8xf32, #tpu.memory_space<vmem>>, vector<1x8x8xf32>
    %40 = vector.shape_cast %39 : vector<1x8x8xf32> to vector<8x8xf32>
    %41 = vector.extract_strided_slice %12 {offsets = [0, 20], sizes = [8, 288], strides = [1, 1]} : vector<8x342xf32> to vector<8x288xf32>
    %cst_27 = arith.constant dense<0.000000e+00> : vector<8x288xf32>
    %42 = tpu.matmul %40, %41, %cst_27 {dimension_numbers = #tpu.dot_dimension_numbers<[1], [0], [0], [1], [0, 0, 1, 1], [], []>} : vector<8x8xf32>, vector<8x288xf32>, vector<8x288xf32> -> vector<8x288xf32>
    %43 = arith.addf %38, %42 : vector<8x288xf32>
    %c6 = arith.constant 6 : index
    %c0_28 = arith.constant 0 : index
    %c0_29 = arith.constant 0 : index
    %44 = vector.load %arg5[%c6, %c0_28, %c0_29] : memref<9x8x8xf32, #tpu.memory_space<vmem>>, vector<1x8x8xf32>
    %45 = vector.shape_cast %44 : vector<1x8x8xf32> to vector<8x8xf32>
    %46 = vector.extract_strided_slice %12 {offsets = [0, 36], sizes = [8, 288], strides = [1, 1]} : vector<8x342xf32> to vector<8x288xf32>
    %cst_30 = arith.constant dense<0.000000e+00> : vector<8x288xf32>
    %47 = tpu.matmul %45, %46, %cst_30 {dimension_numbers = #tpu.dot_dimension_numbers<[1], [0], [0], [1], [0, 0, 1, 1], [], []>} : vector<8x8xf32>, vector<8x288xf32>, vector<8x288xf32> -> vector<8x288xf32>
    %48 = arith.addf %43, %47 : vector<8x288xf32>
    %c7 = arith.constant 7 : index
    %c0_31 = arith.constant 0 : index
    %c0_32 = arith.constant 0 : index
    %49 = vector.load %arg5[%c7, %c0_31, %c0_32] : memref<9x8x8xf32, #tpu.memory_space<vmem>>, vector<1x8x8xf32>
    %50 = vector.shape_cast %49 : vector<1x8x8xf32> to vector<8x8xf32>
    %51 = vector.extract_strided_slice %12 {offsets = [0, 37], sizes = [8, 288], strides = [1, 1]} : vector<8x342xf32> to vector<8x288xf32>
    %cst_33 = arith.constant dense<0.000000e+00> : vector<8x288xf32>
    %52 = tpu.matmul %50, %51, %cst_33 {dimension_numbers = #tpu.dot_dimension_numbers<[1], [0], [0], [1], [0, 0, 1, 1], [], []>} : vector<8x8xf32>, vector<8x288xf32>, vector<8x288xf32> -> vector<8x288xf32>
    %53 = arith.addf %48, %52 : vector<8x288xf32>
    %c8 = arith.constant 8 : index
    %c0_34 = arith.constant 0 : index
    %c0_35 = arith.constant 0 : index
    %54 = vector.load %arg5[%c8, %c0_34, %c0_35] : memref<9x8x8xf32, #tpu.memory_space<vmem>>, vector<1x8x8xf32>
    %55 = vector.shape_cast %54 : vector<1x8x8xf32> to vector<8x8xf32>
    %56 = vector.extract_strided_slice %12 {offsets = [0, 38], sizes = [8, 288], strides = [1, 1]} : vector<8x342xf32> to vector<8x288xf32>
    %cst_36 = arith.constant dense<0.000000e+00> : vector<8x288xf32>
    %57 = tpu.matmul %55, %56, %cst_36 {dimension_numbers = #tpu.dot_dimension_numbers<[1], [0], [0], [1], [0, 0, 1, 1], [], []>} : vector<8x8xf32>, vector<8x288xf32>, vector<8x288xf32> -> vector<8x288xf32>
    %58 = arith.addf %53, %57 : vector<8x288xf32>
    %c0_37 = arith.constant 0 : index
    %c0_38 = arith.constant 0 : index
    %59 = vector.load %arg6[%c0_37, %c0_38] : memref<8x1xf32, #tpu.memory_space<vmem>>, vector<8x1xf32>
    %60 = vector.broadcast %59 : vector<8x1xf32> to vector<8x288xf32>
    %61 = arith.addf %58, %60 : vector<8x288xf32>
    %c0_39 = arith.constant 0 : index
    %c0_40 = arith.constant 0 : index
    %c0_41 = arith.constant 0 : index
    %62 = vector.load %arg7[%c0_39, %c0_40, %c0_41] : memref<1x8x288xf32, #tpu.memory_space<vmem>>, vector<1x8x288xf32>
    %63 = vector.shape_cast %62 : vector<1x8x288xf32> to vector<8x288xf32>
    %c0_42 = arith.constant 0 : index
    %c0_43 = arith.constant 0 : index
    %64 = vector.load %arg8[%c0_42, %c0_43] : memref<8x1xf32, #tpu.memory_space<vmem>>, vector<8x1xf32>
    %65 = vector.broadcast %64 : vector<8x1xf32> to vector<8x288xf32>
    %66 = arith.mulf %63, %65 : vector<8x288xf32>
    %67 = arith.addf %61, %66 : vector<8x288xf32>
    %c0_44 = arith.constant 0 : index
    %c0_45 = arith.constant 0 : index
    %68 = vector.load %arg9[%c0_44, %c0_45] : memref<8x1xf32, #tpu.memory_space<vmem>>, vector<8x1xf32>
    %69 = vector.broadcast %68 : vector<8x1xf32> to vector<8x288xf32>
    %70 = arith.addf %67, %69 : vector<8x288xf32>
    %c0_46 = arith.constant 0 : index
    %c0_47 = arith.constant 0 : index
    %c0_48 = arith.constant 0 : index
    %71 = vector.load %arg10[%c0_46, %c0_47, %c0_48] : memref<1x8x288xf32, #tpu.memory_space<vmem>>, vector<1x8x288xf32>
    %72 = vector.shape_cast %71 : vector<1x8x288xf32> to vector<8x288xf32>
    %73 = vector.shape_cast %70 : vector<8x288xf32> to vector<1x8x288xf32>
    tpu.vector_store %arg10[%c0_46, %c0_47, %c0_48], %73 {strides = array<i32>} : memref<1x8x288xf32, #tpu.memory_space<vmem>>, vector<1x8x288xf32>,
    return
  }
  func.func @transform_0(%arg0: i32) -> (i32, i32, i32) {
    %c0_i32 = arith.constant 0 : i32
    %c0_i32_0 = arith.constant 0 : i32
    %c0_i32_1 = arith.constant 0 : i32
    return %arg0, %c0_i32, %c0_i32_0 : i32, i32, i32
  }
  func.func @transform_1(%arg0: i32) -> (i32, i32) {
    %c0_i32 = arith.constant 0 : i32
    %c0_i32_0 = arith.constant 0 : i32
    %c0_i32_1 = arith.constant 0 : i32
    return %c0_i32, %c0_i32_0 : i32, i32
  }
  func.func @transform_2(%arg0: i32) -> (i32, i32) {
    %c0_i32 = arith.constant 0 : i32
    %c0_i32_0 = arith.constant 0 : i32
    %c0_i32_1 = arith.constant 0 : i32
    return %c0_i32, %c0_i32_0 : i32, i32
  }
  func.func @transform_3(%arg0: i32) -> (i32, i32) {
    %c0_i32 = arith.constant 0 : i32
    %c0_i32_0 = arith.constant 0 : i32
    %c0_i32_1 = arith.constant 0 : i32
    return %c0_i32, %c0_i32_0 : i32, i32
  }
  func.func @transform_4(%arg0: i32) -> (i32, i32, i32) {
    %c0_i32 = arith.constant 0 : i32
    %c0_i32_0 = arith.constant 0 : i32
    %c0_i32_1 = arith.constant 0 : i32
    %c0_i32_2 = arith.constant 0 : i32
    return %c0_i32, %c0_i32_0, %c0_i32_1 : i32, i32, i32
  }
  func.func @transform_5(%arg0: i32) -> (i32, i32) {
    %c0_i32 = arith.constant 0 : i32
    %c0_i32_0 = arith.constant 0 : i32
    %c0_i32_1 = arith.constant 0 : i32
    return %c0_i32, %c0_i32_0 : i32, i32
  }
  func.func @transform_6(%arg0: i32) -> (i32, i32, i32) {
    %c0_i32 = arith.constant 0 : i32
    %c0_i32_0 = arith.constant 0 : i32
    %c0_i32_1 = arith.constant 0 : i32
    return %arg0, %c0_i32, %c0_i32_0 : i32, i32, i32
  }
  func.func @transform_7(%arg0: i32) -> (i32, i32) {
    %c0_i32 = arith.constant 0 : i32
    %c0_i32_0 = arith.constant 0 : i32
    %c0_i32_1 = arith.constant 0 : i32
    return %c0_i32, %c0_i32_0 : i32, i32
  }
  func.func @transform_8(%arg0: i32) -> (i32, i32) {
    %c0_i32 = arith.constant 0 : i32
    %c0_i32_0 = arith.constant 0 : i32
    %c0_i32_1 = arith.constant 0 : i32
    return %c0_i32, %c0_i32_0 : i32, i32
  }
  func.func @transform_9(%arg0: i32) -> (i32, i32, i32) {
    %c0_i32 = arith.constant 0 : i32
    %c0_i32_0 = arith.constant 0 : i32
    %c0_i32_1 = arith.constant 0 : i32
    return %arg0, %c0_i32, %c0_i32_0 : i32, i32, i32
  }
}

</mosaic_0001>

<llo_original>
// kernel: residual_conv_forward.3
$region0: #{residual_conv_forward.3}
  #allocation0 [shape = 'u32[]', space=smem, size = 0x4, offset = 0x4, fixed_abs, tag = 'smem constant byte address 0x4 - core index']
  #allocation1 [shape = 'u32[144,128]{1,0:T(1,128)}', space=vmem, size = 0x12000, scoped, tag = 'internal scratch']
  %s0 = inlined_call_operand.vmem [shape: f32[2,4,342], index: 0, kind: input, shape index: {}]
  %s1 = inlined_call_operand.vmem [shape: f32[1,342], index: 1, kind: input, shape index: {}]
  %s2 = inlined_call_operand.vmem [shape: f32[2,4,2], index: 2, kind: output, shape index: {}]
  %s3 = sld [smem:[#allocation0]]
  $region41: #{residual_conv_forward.3} parent=0
    _
  %s5 = ssub.s32 1, %s3
  %s6 = scalar_select 0, %s5, %s3
  loop: start=0, step=1, limit=4
  $region2: #{residual_conv_forward.3} parent=0 // loop_pre_header
    _
  $region3: #{residual_conv_forward.3} parent=0 // loop_header
    %s8 = sphi 0, %s12
    %p9 = scmp.ge.s32.totalorder %s8, 4
    %s18 = sphi 0, %s20
    %s21 = sphi 0, %s18
    %s22 = sphi 0, %s21
    %s38 = sphi 0, %s22
    %s42 = sphi 0, %s42
    %s44 = sphi 0, %s42
    %s45 = sphi 0, %s44
    %s59 = sphi 0, %s45
    %s65 = sphi 0, %s67
    %s68 = sphi 0, %s65
    %s69 = sphi 0, %s68
    %s85 = sphi 0, %s69
  $region4: #{residual_conv_forward.3} parent=0 // loop_header_branch
    %11 = sbr.rel (%p9) target = $region8
  $region5: #{residual_conv_forward.3} parent=0 // loop_body
    %s13 = ssub.s32 %s8, 1
    %s14 = ssub.s32 %s8, 2
    %s15 = sadd.s32 %s8, 1
    %s16 = ssub.s32 %s8, %s15
    %p17 = scmp.eq.s32.totalorder %s16, 0
    %s19 = sadd.s32 %s18, 1
    %s20 = scalar_select %p17, %s18, %s19
    %p23 = pneg %p17
    %p24 = scmp.eq.s32.totalorder %s8, 1
    %p25 = por %p23, %p24
    %p26 = scmp.ne.s32.totalorder %s18, %s21
    %p27 = scmp.eq.s32.totalorder %s8, 0
    %p28 = por %p26, %p27
    %p29 = scmp.ne.s32.totalorder %s18, %s21
    %p30 = scmp.eq.s32.totalorder %s13, 1
    %p31 = por %p29, %p30
    %p32 = scmp.ne.s32.totalorder %s21, %s22
    %p33 = scmp.eq.s32.totalorder %s13, 0
    %p34 = por %p32, %p33
    %p35 = scmp.ne.s32.totalorder %s21, %s22
    %p36 = scmp.eq.s32.totalorder %s14, 1
    %p37 = por %p35, %p36
    %p39 = scmp.ne.s32.totalorder %s22, %s38
    %p40 = scmp.eq.s32.totalorder %s14, 0
    %p41 = por %p39, %p40
    %s43 = sadd.s32 %s42, 1
    %p46 = scmp.eq.s32.totalorder %s8, 1
    %p47 = scmp.ne.s32.totalorder %s42, %s44
    %p48 = scmp.eq.s32.totalorder %s8, 0
    %p49 = por %p47, %p48
    %p50 = scmp.ne.s32.totalorder %s42, %s44
    %p51 = scmp.eq.s32.totalorder %s13, 1
    %p52 = por %p50, %p51
    %p53 = scmp.ne.s32.totalorder %s44, %s45
    %p54 = scmp.eq.s32.totalorder %s13, 0
    %p55 = por %p53, %p54
    %p56 = scmp.ne.s32.totalorder %s44, %s45
    %p57 = scmp.eq.s32.totalorder %s14, 1
    %p58 = por %p56, %p57
    %p60 = scmp.ne.s32.totalorder %s45, %s59
    %p61 = scmp.eq.s32.totalorder %s14, 0
    %p62 = por %p60, %p61
    %s63 = ssub.s32 %s8, %s15
    %p64 = scmp.eq.s32.totalorder %s63, 0
    %s66 = sadd.s32 %s65, 1
    %s67 = scalar_select %p64, %s65, %s66
    %p70 = pneg %p64
    %p71 = scmp.eq.s32.totalorder %s8, 1
    %p72 = por %p70, %p71
    %p73 = scmp.ne.s32.totalorder %s65, %s68
    %p74 = scmp.eq.s32.totalorder %s8, 0
    %p75 = por %p73, %p74
    %p76 = scmp.ne.s32.totalorder %s65, %s68
    %p77 = scmp.eq.s32.totalorder %s13, 1
    %p78 = por %p76, %p77
    %p79 = scmp.ne.s32.totalorder %s68, %s69
    %p80 = scmp.eq.s32.totalorder %s13, 0
    %p81 = por %p79, %p80
    %p82 = scmp.ne.s32.totalorder %s68, %s69
    %p83 = scmp.eq.s32.totalorder %s14, 1
    %p84 = por %p82, %p83
    %p86 = scmp.ne.s32.totalorder %s69, %s85
    %p87 = scmp.eq.s32.totalorder %s14, 0
    %p88 = por %p86, %p87
    %p89 = scmp.le.s32.totalorder 1, %s8
    %p90 = scmp.lt.s32.totalorder %s8, 3
    %p91 = pnand %p89, %p90
    %p92 = pneg %p91
    // Predicated region
    $region9: #{residual_conv_forward.3} parent=5 // pred_check
      _
    $region10: #{residual_conv_forward.3} parent=5 // pred_check_branch
      %94 = sbr.rel (%p91) target = $region12
    $region11: #{residual_conv_forward.3} parent=5 // pred_region
      %s95 = ssub.s32 %s8, 1
      // Predicated region
      $region13: #{residual_conv_forward.3} parent=11 // pred_check
        %p96 = pneg %p55
      $region14: #{residual_conv_forward.3} parent=11 // pred_check_branch
        %98 = sbr.rel (%p96) target = $region16
      $region15: #{residual_conv_forward.3} parent=11 // pred_region
        _
      $region16: #{residual_conv_forward.3} parent=11 // pred_fallthru
        _
    $region12: #{residual_conv_forward.3} parent=5 // pred_fallthru
      _
    %p99 = scmp.lt.s32.totalorder %s8, 2
    // Predicated region
    $region17: #{residual_conv_forward.3} parent=5 // pred_check
      %p100 = pneg %p99
    $region18: #{residual_conv_forward.3} parent=5 // pred_check_branch
      %102 = sbr.rel (%p100) target = $region20
    $region19: #{residual_conv_forward.3} parent=5 // pred_region
      // Predicated region
      $region21: #{residual_conv_forward.3} parent=19 // pred_check
        %p103 = pneg %p28
      $region22: #{residual_conv_forward.3} parent=19 // pred_check_branch
        %105 = sbr.rel (%p103) target = $region24
      $region23: #{residual_conv_forward.3} parent=19 // pred_region
        %p106 = scmp.lt.s32.totalorder %s8, 1
        %s107 = scalar_select %p106, %s8, 1
        %s108 = smul.addr %s107, 3
        %s109 = smul.addr %s108, 4
        %s110 = scalar_lea.vmem %s0, %s109
      $region24: #{residual_conv_forward.3} parent=19 // pred_fallthru
        _
    $region20: #{residual_conv_forward.3} parent=5 // pred_fallthru
      _
    %p111 = scmp.le.s32.totalorder 1, %s8
    %p112 = scmp.lt.s32.totalorder %s8, 3
    %p113 = pnand %p111, %p112
    %p114 = pneg %p113
    // Predicated region
    $region25: #{residual_conv_forward.3} parent=5 // pred_check
      _
    $region26: #{residual_conv_forward.3} parent=5 // pred_check_branch
      %116 = sbr.rel (%p113) target = $region28
    $region27: #{residual_conv_forward.3} parent=5 // pred_region
      %s117 = ssub.s32 %s8, 1
      %p118 = scmp.lt.s32.totalorder %s13, 1
      %s119 = scalar_select %p118, %s13, 1
      %s120 = smul.addr %s119, 3
      %s121 = smul.addr %s120, 4
      %s122 = scalar_lea.vmem %s0, %s121
      %p123 = pneg %p34
      %p124 = pneg %p31
      %p125 = pneg %p55
      %p126 = pneg %p52
      %p127 = pneg %p81
      %p128 = pneg %p78
      %p129 = scmp.lt.s32.totalorder %s13, 1
      %s130 = scalar_select %p129, %s13, 1
      %s131 = smul.addr %s130, 4
      %s132 = scalar_lea.vmem %s2, %s131
      %p133 = scmp.lt.s32.totalorder %s13, 1
      %s134 = scalar_select %p133, %s13, 1
      %s135 = smul.addr %s134, 3
      %s136 = smul.addr %s135, 4
      %s137 = scalar_lea.vmem %s0, %s136
      %p138 = scmp.lt.s32.totalorder %s13, 1
      %s139 = scalar_select %p138, %s13, 1
      %s140 = smul.addr %s139, 4
      %s141 = scalar_lea.vmem %s2, %s140
      %v142 = vld [vmem:[%s137] sm:$0xff]
      %v143 = vld [vmem:[%s137 + $0x8] sm:$0xf]
      %v144 = vld [vmem:[%s1] sm:$0x7]
      %v146 = vlaneseq
      %v147 = vshrl.u32 %v146, 7
      %v148 = vsub.s32 0, %v147
      %v149 = vrot.slane %v144, %v148
      %v150 = vlaneseq
      %v151 = vshrl.u32 %v150, 7
      %v152 = vsub.s32 1, %v151
      %v153 = vrot.slane %v144, %v152
      %v154 = vlaneseq
      %v155 = vshrl.u32 %v154, 7
      %v156 = vsub.s32 2, %v155
      %v157 = vrot.slane %v144, %v156
      %v159 = vcombine.low %v149, %v153
      %v161 = vmul.f32 %v142, %v159
      %v162 = vmul.f32 %v143, %v157
      %v164 = vcombine.high %v161, %v161
      %vm166 = vcmask 1043456
      %v167 = vsel %vm166, %v161, 0.0
      %v168 = vsel %vm166, %v164, 0.0
      %v169 = vadd.f32 %v167, %v168
      %vm170 = vcmask 699392
      %v171 = vsel %vm170, %v162, 0.0
      %v172 = vadd.f32 %v169, %v171
      %173 = vadd.xlane.f32.xlu0 %v172
      %v174 = vpop.xlane.xlu0 %173
      %v175 = vmul.f32 %v161, %v161
      %v176 = vmul.f32 %v162, %v162
      %v178 = vcombine.high %v175, %v175
      %v180 = vsel %vm166, %v175, 0.0
      %v181 = vsel %vm166, %v178, 0.0
      %v182 = vadd.f32 %v180, %v181
      %v183 = vsel %vm170, %v176, 0.0
      %v184 = vadd.f32 %v182, %v183
      %185 = vadd.xlane.f32.xlu0 %v184
      %v186 = vpop.xlane.xlu0 %185
      %vm187 = vcmask 7168
      %v188 = vsel %vm187, %v174, %v186
      %vm189 = vcmask 11264
      %190 = vst.msk [vmem:[%s141] sm:$0xf] %vm189, %v188
      %p191 = scmp.lt.s32.totalorder %s13, 1
      %s192 = scalar_select %p191, %s13, 1
      %s193 = smul.addr %s192, 4
      %s194 = scalar_lea.vmem %s2, %s193
      // Predicated region
      $region29: #{residual_conv_forward.3} parent=27 // pred_check
        %p195 = pneg %p78
      $region30: #{residual_conv_forward.3} parent=27 // pred_check_branch
        %197 = sbr.rel (%p195) target = $region32
      $region31: #{residual_conv_forward.3} parent=27 // pred_region
        _
      $region32: #{residual_conv_forward.3} parent=27 // pred_fallthru
        _
    $region28: #{residual_conv_forward.3} parent=5 // pred_fallthru
      _
    %p198 = scmp.le.s32.totalorder 2, %s8
    // Predicated region
    $region33: #{residual_conv_forward.3} parent=5 // pred_check
      %p199 = pneg %p198
    $region34: #{residual_conv_forward.3} parent=5 // pred_check_branch
      %201 = sbr.rel (%p199) target = $region36
    $region35: #{residual_conv_forward.3} parent=5 // pred_region
      %s202 = ssub.s32 %s8, 2
      // Predicated region
      $region37: #{residual_conv_forward.3} parent=35 // pred_check
        %p203 = pneg %p84
      $region38: #{residual_conv_forward.3} parent=35 // pred_check_branch
        %205 = sbr.rel (%p203) target = $region40
      $region39: #{residual_conv_forward.3} parent=35 // pred_region
        %p206 = scmp.lt.s32.totalorder %s14, 1
        %s207 = scalar_select %p206, %s14, 1
        %s208 = smul.addr %s207, 4
        %s209 = scalar_lea.vmem %s2, %s208
      $region40: #{residual_conv_forward.3} parent=35 // pred_fallthru
        _
    $region36: #{residual_conv_forward.3} parent=5 // pred_fallthru
      _
  $region6: #{residual_conv_forward.3} parent=0 // loop_footer
    %s12 = sadd.s32 1, %s8
  $region7: #{residual_conv_forward.3} parent=0 // loop_footer_branch
    %7 = sbr.rel target = $region3
  $region8: #{residual_conv_forward.3} parent=0 // loop_exit
    _

// kernel: residual_conv_forward.5
$region0: #{residual_conv_forward.5}
  #allocation0 [shape = 'u32[]', space=smem, size = 0x4, offset = 0x4, fixed_abs, tag = 'smem constant byte address 0x4 - core index']
  #allocation1 [shape = 'u32[144,128]{1,0:T(1,128)}', space=vmem, size = 0x12000, scoped, tag = 'internal scratch']
  %s0 = inlined_call_operand.vmem [shape: f32[2,8,342], index: 0, kind: input, shape index: {}]
  %s1 = inlined_call_operand.vmem [shape: f32[1,342], index: 1, kind: input, shape index: {}]
  %s2 = inlined_call_operand.vmem [shape: f32[8,1], index: 2, kind: input, shape index: {}]
  %s3 = inlined_call_operand.vmem [shape: f32[8,1], index: 3, kind: input, shape index: {}]
  %s4 = inlined_call_operand.vmem [shape: f32[9,8,8], index: 4, kind: input, shape index: {}]
  %s5 = inlined_call_operand.vmem [shape: f32[8,1], index: 5, kind: input, shape index: {}]
  %s6 = inlined_call_operand.vmem [shape: f32[2,8,288], index: 6, kind: input, shape index: {}]
  %s7 = inlined_call_operand.vmem [shape: f32[8,1], index: 7, kind: input, shape index: {}]
  %s8 = inlined_call_operand.vmem [shape: f32[8,1], index: 8, kind: input, shape index: {}]
  %s9 = inlined_call_operand.vmem [shape: f32[2,8,288], index: 9, kind: output, shape index: {}]
  %s10 = sld [smem:[#allocation0]]
  $region69: #{residual_conv_forward.5} parent=0
    _
  %s12 = ssub.s32 1, %s10
  %s13 = scalar_select 0, %s12, %s10
  loop: start=0, step=1, limit=4
  $region2: #{residual_conv_forward.5} parent=0 // loop_pre_header
    _
  $region3: #{residual_conv_forward.5} parent=0 // loop_header
    %s15 = sphi 0, %s19
    %p16 = scmp.ge.s32.totalorder %s15, 4
    %s25 = sphi 0, %s27
    %s28 = sphi 0, %s25
    %s29 = sphi 0, %s28
    %s45 = sphi 0, %s29
    %s49 = sphi 0, %s49
    %s51 = sphi 0, %s49
    %s52 = sphi 0, %s51
    %s66 = sphi 0, %s52
    %s70 = sphi 0, %s70
    %s72 = sphi 0, %s70
    %s73 = sphi 0, %s72
    %s87 = sphi 0, %s73
    %s91 = sphi 0, %s91
    %s93 = sphi 0, %s91
    %s94 = sphi 0, %s93
    %s108 = sphi 0, %s94
    %s112 = sphi 0, %s112
    %s114 = sphi 0, %s112
    %s115 = sphi 0, %s114
    %s129 = sphi 0, %s115
    %s133 = sphi 0, %s133
    %s135 = sphi 0, %s133
    %s136 = sphi 0, %s135
    %s150 = sphi 0, %s136
    %s156 = sphi 0, %s158
    %s159 = sphi 0, %s156
    %s160 = sphi 0, %s159
    %s176 = sphi 0, %s160
    %s180 = sphi 0, %s180
    %s182 = sphi 0, %s180
    %s183 = sphi 0, %s182
    %s197 = sphi 0, %s183
    %s201 = sphi 0, %s201
    %s203 = sphi 0, %s201
    %s204 = sphi 0, %s203
    %s218 = sphi 0, %s204
    %s224 = sphi 0, %s226
    %s227 = sphi 0, %s224
    %s228 = sphi 0, %s227
    %s244 = sphi 0, %s228
  $region4: #{residual_conv_forward.5} parent=0 // loop_header_branch
    %18 = sbr.rel (%p16) target = $region8
  $region5: #{residual_conv_forward.5} parent=0 // loop_body
    %s20 = ssub.s32 %s15, 1
    %s21 = ssub.s32 %s15, 2
    %s22 = sadd.s32 %s15, 1
    %s23 = ssub.s32 %s15, %s22
    %p24 = scmp.eq.s32.totalorder %s23, 0
    %s26 = sadd.s32 %s25, 1
    %s27 = scalar_select %p24, %s25, %s26
    %p30 = pneg %p24
    %p31 = scmp.eq.s32.totalorder %s15, 1
    %p32 = por %p30, %p31
    %p33 = scmp.ne.s32.totalorder %s25, %s28
    %p34 = scmp.eq.s32.totalorder %s15, 0
    %p35 = por %p33, %p34
    %p36 = scmp.ne.s32.totalorder %s25, %s28
    %p37 = scmp.eq.s32.totalorder %s20, 1
    %p38 = por %p36, %p37
    %p39 = scmp.ne.s32.totalorder %s28, %s29
    %p40 = scmp.eq.s32.totalorder %s20, 0
    %p41 = por %p39, %p40
    %p42 = scmp.ne.s32.totalorder %s28, %s29
    %p43 = scmp.eq.s32.totalorder %s21, 1
    %p44 = por %p42, %p43
    %p46 = scmp.ne.s32.totalorder %s29, %s45
    %p47 = scmp.eq.s32.totalorder %s21, 0
    %p48 = por %p46, %p47
    %s50 = sadd.s32 %s49, 1
    %p53 = scmp.eq.s32.totalorder %s15, 1
    %p54 = scmp.ne.s32.totalorder %s49, %s51
    %p55 = scmp.eq.s32.totalorder %s15, 0
    %p56 = por %p54, %p55
    %p57 = scmp.ne.s32.totalorder %s49, %s51
    %p58 = scmp.eq.s32.totalorder %s20, 1
    %p59 = por %p57, %p58
    %p60 = scmp.ne.s32.totalorder %s51, %s52
    %p61 = scmp.eq.s32.totalorder %s20, 0
    %p62 = por %p60, %p61
    %p63 = scmp.ne.s32.totalorder %s51, %s52
    %p64 = scmp.eq.s32.totalorder %s21, 1
    %p65 = por %p63, %p64
    %p67 = scmp.ne.s32.totalorder %s52, %s66
    %p68 = scmp.eq.s32.totalorder %s21, 0
    %p69 = por %p67, %p68
    %s71 = sadd.s32 %s70, 1
    %p74 = scmp.eq.s32.totalorder %s15, 1
    %p75 = scmp.ne.s32.totalorder %s70, %s72
    %p76 = scmp.eq.s32.totalorder %s15, 0
    %p77 = por %p75, %p76
    %p78 = scmp.ne.s32.totalorder %s70, %s72
    %p79 = scmp.eq.s32.totalorder %s20, 1
    %p80 = por %p78, %p79
    %p81 = scmp.ne.s32.totalorder %s72, %s73
    %p82 = scmp.eq.s32.totalorder %s20, 0
    %p83 = por %p81, %p82
    %p84 = scmp.ne.s32.totalorder %s72, %s73
    %p85 = scmp.eq.s32.totalorder %s21, 1
    %p86 = por %p84, %p85
    %p88 = scmp.ne.s32.totalorder %s73, %s87
    %p89 = scmp.eq.s32.totalorder %s21, 0
    %p90 = por %p88, %p89
    %s92 = sadd.s32 %s91, 1
    %p95 = scmp.eq.s32.totalorder %s15, 1
    %p96 = scmp.ne.s32.totalorder %s91, %s93
    %p97 = scmp.eq.s32.totalorder %s15, 0
    %p98 = por %p96, %p97
    %p99 = scmp.ne.s32.totalorder %s91, %s93
    %p100 = scmp.eq.s32.totalorder %s20, 1
    %p101 = por %p99, %p100
    %p102 = scmp.ne.s32.totalorder %s93, %s94
    %p103 = scmp.eq.s32.totalorder %s20, 0
    %p104 = por %p102, %p103
    %p105 = scmp.ne.s32.totalorder %s93, %s94
    %p106 = scmp.eq.s32.totalorder %s21, 1
    %p107 = por %p105, %p106
    %p109 = scmp.ne.s32.totalorder %s94, %s108
    %p110 = scmp.eq.s32.totalorder %s21, 0
    %p111 = por %p109, %p110
    %s113 = sadd.s32 %s112, 1
    %p116 = scmp.eq.s32.totalorder %s15, 1
    %p117 = scmp.ne.s32.totalorder %s112, %s114
    %p118 = scmp.eq.s32.totalorder %s15, 0
    %p119 = por %p117, %p118
    %p120 = scmp.ne.s32.totalorder %s112, %s114
    %p121 = scmp.eq.s32.totalorder %s20, 1
    %p122 = por %p120, %p121
    %p123 = scmp.ne.s32.totalorder %s114, %s115
    %p124 = scmp.eq.s32.totalorder %s20, 0
    %p125 = por %p123, %p124
    %p126 = scmp.ne.s32.totalorder %s114, %s115
    %p127 = scmp.eq.s32.totalorder %s21, 1
    %p128 = por %p126, %p127
    %p130 = scmp.ne.s32.totalorder %s115, %s129
    %p131 = scmp.eq.s32.totalorder %s21, 0
    %p132 = por %p130, %p131
    %s134 = sadd.s32 %s133, 1
    %p137 = scmp.eq.s32.totalorder %s15, 1
    %p138 = scmp.ne.s32.totalorder %s133, %s135
    %p139 = scmp.eq.s32.totalorder %s15, 0
    %p140 = por %p138, %p139
    %p141 = scmp.ne.s32.totalorder %s133, %s135
    %p142 = scmp.eq.s32.totalorder %s20, 1
    %p143 = por %p141, %p142
    %p144 = scmp.ne.s32.totalorder %s135, %s136
    %p145 = scmp.eq.s32.totalorder %s20, 0
    %p146 = por %p144, %p145
    %p147 = scmp.ne.s32.totalorder %s135, %s136
    %p148 = scmp.eq.s32.totalorder %s21, 1
    %p149 = por %p147, %p148
    %p151 = scmp.ne.s32.totalorder %s136, %s150
    %p152 = scmp.eq.s32.totalorder %s21, 0
    %p153 = por %p151, %p152
    %s154 = ssub.s32 %s15, %s22
    %p155 = scmp.eq.s32.totalorder %s154, 0
    %s157 = sadd.s32 %s156, 1
    %s158 = scalar_select %p155, %s156, %s157
    %p161 = pneg %p155
    %p162 = scmp.eq.s32.totalorder %s15, 1
    %p163 = por %p161, %p162
    %p164 = scmp.ne.s32.totalorder %s156, %s159
    %p165 = scmp.eq.s32.totalorder %s15, 0
    %p166 = por %p164, %p165
    %p167 = scmp.ne.s32.totalorder %s156, %s159
    %p168 = scmp.eq.s32.totalorder %s20, 1
    %p169 = por %p167, %p168
    %p170 = scmp.ne.s32.totalorder %s159, %s160
    %p171 = scmp.eq.s32.totalorder %s20, 0
    %p172 = por %p170, %p171
    %p173 = scmp.ne.s32.totalorder %s159, %s160
    %p174 = scmp.eq.s32.totalorder %s21, 1
    %p175 = por %p173, %p174
    %p177 = scmp.ne.s32.totalorder %s160, %s176
    %p178 = scmp.eq.s32.totalorder %s21, 0
    %p179 = por %p177, %p178
    %s181 = sadd.s32 %s180, 1
    %p184 = scmp.eq.s32.totalorder %s15, 1
    %p185 = scmp.ne.s32.totalorder %s180, %s182
    %p186 = scmp.eq.s32.totalorder %s15, 0
    %p187 = por %p185, %p186
    %p188 = scmp.ne.s32.totalorder %s180, %s182
    %p189 = scmp.eq.s32.totalorder %s20, 1
    %p190 = por %p188, %p189
    %p191 = scmp.ne.s32.totalorder %s182, %s183
    %p192 = scmp.eq.s32.totalorder %s20, 0
    %p193 = por %p191, %p192
    %p194 = scmp.ne.s32.totalorder %s182, %s183
    %p195 = scmp.eq.s32.totalorder %s21, 1
    %p196 = por %p194, %p195
    %p198 = scmp.ne.s32.totalorder %s183, %s197
    %p199 = scmp.eq.s32.totalorder %s21, 0
    %p200 = por %p198, %p199
    %s202 = sadd.s32 %s201, 1
    %p205 = scmp.eq.s32.totalorder %s15, 1
    %p206 = scmp.ne.s32.totalorder %s201, %s203
    %p207 = scmp.eq.s32.totalorder %s15, 0
    %p208 = por %p206, %p207
    %p209 = scmp.ne.s32.totalorder %s201, %s203
    %p210 = scmp.eq.s32.totalorder %s20, 1
    %p211 = por %p209, %p210
    %p212 = scmp.ne.s32.totalorder %s203, %s204
    %p213 = scmp.eq.s32.totalorder %s20, 0
    %p214 = por %p212, %p213
    %p215 = scmp.ne.s32.totalorder %s203, %s204
    %p216 = scmp.eq.s32.totalorder %s21, 1
    %p217 = por %p215, %p216
    %p219 = scmp.ne.s32.totalorder %s204, %s218
    %p220 = scmp.eq.s32.totalorder %s21, 0
    %p221 = por %p219, %p220
    %s222 = ssub.s32 %s15, %s22
    %p223 = scmp.eq.s32.totalorder %s222, 0
    %s225 = sadd.s32 %s224, 1
    %s226 = scalar_select %p223, %s224, %s225
    %p229 = pneg %p223
    %p230 = scmp.eq.s32.totalorder %s15, 1
    %p231 = por %p229, %p230
    %p232 = scmp.ne.s32.totalorder %s224, %s227
    %p233 = scmp.eq.s32.totalorder %s15, 0
    %p234 = por %p232, %p233
    %p235 = scmp.ne.s32.totalorder %s224, %s227
    %p236 = scmp.eq.s32.totalorder %s20, 1
    %p237 = por %p235, %p236
    %p238 = scmp.ne.s32.totalorder %s227, %s228
    %p239 = scmp.eq.s32.totalorder %s20, 0
    %p240 = por %p238, %p239
    %p241 = scmp.ne.s32.totalorder %s227, %s228
    %p242 = scmp.eq.s32.totalorder %s21, 1
    %p243 = por %p241, %p242
    %p245 = scmp.ne.s32.totalorder %s228, %s244
    %p246 = scmp.eq.s32.totalorder %s21, 0
    %p247 = por %p245, %p246
    %p248 = scmp.le.s32.totalorder 1, %s15
    %p249 = scmp.lt.s32.totalorder %s15, 3
    %p250 = pnand %p248, %p249
    %p251 = pneg %p250
    // Predicated region
    $region9: #{residual_conv_forward.5} parent=5 // pred_check
      _
    $region10: #{residual_conv_forward.5} parent=5 // pred_check_branch
      %253 = sbr.rel (%p250) target = $region12
    $region11: #{residual_conv_forward.5} parent=5 // pred_region
      %s254 = ssub.s32 %s15, 1
      // Predicated region
      $region13: #{residual_conv_forward.5} parent=11 // pred_check
        %p255 = pneg %p62
      $region14: #{residual_conv_forward.5} parent=11 // pred_check_branch
        %257 = sbr.rel (%p255) target = $region16
      $region15: #{residual_conv_forward.5} parent=11 // pred_region
        _
      $region16: #{residual_conv_forward.5} parent=11 // pred_fallthru
        _
      // Predicated region
      $region17: #{residual_conv_forward.5} parent=11 // pred_check
        %p258 = pneg %p83
      $region18: #{residual_conv_forward.5} parent=11 // pred_check_branch
        %260 = sbr.rel (%p258) target = $region20
      $region19: #{residual_conv_forward.5} parent=11 // pred_region
        _
      $region20: #{residual_conv_forward.5} parent=11 // pred_fallthru
        _
      // Predicated region
      $region21: #{residual_conv_forward.5} parent=11 // pred_check
        %p261 = pneg %p104
      $region22: #{residual_conv_forward.5} parent=11 // pred_check_branch
        %263 = sbr.rel (%p261) target = $region24
      $region23: #{residual_conv_forward.5} parent=11 // pred_region
        _
      $region24: #{residual_conv_forward.5} parent=11 // pred_fallthru
        _
      // Predicated region
      $region25: #{residual_conv_forward.5} parent=11 // pred_check
        %p264 = pneg %p125
      $region26: #{residual_conv_forward.5} parent=11 // pred_check_branch
        %266 = sbr.rel (%p264) target = $region28
      $region27: #{residual_conv_forward.5} parent=11 // pred_region
        _
      $region28: #{residual_conv_forward.5} parent=11 // pred_fallthru
        _
      // Predicated region
      $region29: #{residual_conv_forward.5} parent=11 // pred_check
        %p267 = pneg %p146
      $region30: #{residual_conv_forward.5} parent=11 // pred_check_branch
        %269 = sbr.rel (%p267) target = $region32
      $region31: #{residual_conv_forward.5} parent=11 // pred_region
        _
      $region32: #{residual_conv_forward.5} parent=11 // pred_fallthru
        _
      // Predicated region
      $region33: #{residual_conv_forward.5} parent=11 // pred_check
        %p270 = pneg %p193
      $region34: #{residual_conv_forward.5} parent=11 // pred_check_branch
        %272 = sbr.rel (%p270) target = $region36
      $region35: #{residual_conv_forward.5} parent=11 // pred_region
        _
      $region36: #{residual_conv_forward.5} parent=11 // pred_fallthru
        _
      // Predicated region
      $region37: #{residual_conv_forward.5} parent=11 // pred_check
        %p273 = pneg %p214
      $region38: #{residual_conv_forward.5} parent=11 // pred_check_branch
        %275 = sbr.rel (%p273) target = $region40
      $region39: #{residual_conv_forward.5} parent=11 // pred_region
        _
      $region40: #{residual_conv_forward.5} parent=11 // pred_fallthru
        _
    $region12: #{residual_conv_forward.5} parent=5 // pred_fallthru
      _
    %p276 = scmp.lt.s32.totalorder %s15, 2
    // Predicated region
    $region41: #{residual_conv_forward.5} parent=5 // pred_check
      %p277 = pneg %p276
    $region42: #{residual_conv_forward.5} parent=5 // pred_check_branch
      %279 = sbr.rel (%p277) target = $region44
    $region43: #{residual_conv_forward.5} parent=5 // pred_region
      // Predicated region
      $region45: #{residual_conv_forward.5} parent=43 // pred_check
        %p280 = pneg %p35
      $region46: #{residual_conv_forward.5} parent=43 // pred_check_branch
        %282 = sbr.rel (%p280) target = $region48
      $region47: #{residual_conv_forward.5} parent=43 // pred_region
        %p283 = scmp.lt.s32.totalorder %s15, 1
        %s284 = scalar_select %p283, %s15, 1
        %s285 = smul.addr %s284, 3
        %s286 = smul.addr %s285, 8
        %s287 = scalar_lea.vmem %s0, %s286
      $region48: #{residual_conv_forward.5} parent=43 // pred_fallthru
        _
      // Predicated region
      $region49: #{residual_conv_forward.5} parent=43 // pred_check
        %p288 = pneg %p166
      $region50: #{residual_conv_forward.5} parent=43 // pred_check_branch
        %290 = sbr.rel (%p288) target = $region52
      $region51: #{residual_conv_forward.5} parent=43 // pred_region
        %p291 = scmp.lt.s32.totalorder %s15, 1
        %s292 = scalar_select %p291, %s15, 1
        %s293 = smul.addr %s292, 3
        %s294 = smul.addr %s293, 8
        %s295 = scalar_lea.vmem %s6, %s294
      $region52: #{residual_conv_forward.5} parent=43 // pred_fallthru
        _
    $region44: #{residual_conv_forward.5} parent=5 // pred_fallthru
      _
    %p296 = scmp.le.s32.totalorder 1, %s15
    %p297 = scmp.lt.s32.totalorder %s15, 3
    %p298 = pnand %p296, %p297
    %p299 = pneg %p298
    // Predicated region
    $region53: #{residual_conv_forward.5} parent=5 // pred_check
      _
    $region54: #{residual_conv_forward.5} parent=5 // pred_check_branch
      %301 = sbr.rel (%p298) target = $region56
    $region55: #{residual_conv_forward.5} parent=5 // pred_region
      %s302 = ssub.s32 %s15, 1
      %p303 = scmp.lt.s32.totalorder %s20, 1
      %s304 = scalar_select %p303, %s20, 1
      %s305 = smul.addr %s304, 3
      %s306 = smul.addr %s305, 8
      %s307 = scalar_lea.vmem %s0, %s306
      %p308 = pneg %p41
      %p309 = pneg %p38
      %p310 = pneg %p62
      %p311 = pneg %p59
      %p312 = pneg %p83
      %p313 = pneg %p80
      %p314 = pneg %p104
      %p315 = pneg %p101
      %p316 = pneg %p125
      %p317 = pneg %p122
      %p318 = pneg %p146
      %p319 = pneg %p143
      %p320 = scmp.lt.s32.totalorder %s20, 1
      %s321 = scalar_select %p320, %s20, 1
      %s322 = smul.addr %s321, 3
      %s323 = smul.addr %s322, 8
      %s324 = scalar_lea.vmem %s6, %s323
      %p325 = pneg %p172
      %p326 = pneg %p169
      %p327 = pneg %p193
      %p328 = pneg %p190
      %p329 = pneg %p214
      %p330 = pneg %p211
      %p331 = pneg %p240
      %p332 = pneg %p237
      %p333 = scmp.lt.s32.totalorder %s20, 1
      %s334 = scalar_select %p333, %s20, 1
      %s335 = smul.addr %s334, 3
      %s336 = smul.addr %s335, 8
      %s337 = scalar_lea.vmem %s9, %s336
      %p338 = scmp.lt.s32.totalorder %s20, 1
      %s339 = scalar_select %p338, %s20, 1
      %s340 = smul.addr %s339, 3
      %s341 = smul.addr %s340, 8
      %s342 = scalar_lea.vmem %s0, %s341
      %p343 = scmp.lt.s32.totalorder %s20, 1
      %s344 = scalar_select %p343, %s20, 1
      %s345 = smul.addr %s344, 3
      %s346 = smul.addr %s345, 8
      %s347 = scalar_lea.vmem %s6, %s346
      %p348 = scmp.lt.s32.totalorder %s20, 1
      %s349 = scalar_select %p348, %s20, 1
      %s350 = smul.addr %s349, 3
      %s351 = smul.addr %s350, 8
      %s352 = scalar_lea.vmem %s9, %s351
      %v353 = vld [vmem:[%s342] sm:$0xff]
      %v354 = vld [vmem:[%s342 + $0x8] sm:$0xff]
      %v355 = vld [vmem:[%s342 + $0x10] sm:$0xff]
      %v356 = vld [vmem:[%s2] sm:$0xff]
      %358 = vset.pattern.permute.xlu0 0
      %359 = vperm.xlu0 %358, %v356
      %v360 = vpop.permute.xlu0 %359
      %v362 = vmul.f32 %v353, %v360
      %v363 = vmul.f32 %v354, %v360
      %v364 = vmul.f32 %v355, %v360
      %v365 = vld [vmem:[%s3] sm:$0xff]
      %367 = vset.pattern.permute.xlu0 0
      %368 = vperm.xlu0 %367, %v365
      %v369 = vpop.permute.xlu0 %368
      %v371 = vadd.f32 %v362, %v369
      %v372 = vadd.f32 %v363, %v369
      %v373 = vadd.f32 %v364, %v369
      %v374 = vmax.f32 %v371, 0.0
      %v375 = vmax.f32 %v372, 0.0
      %v376 = vmax.f32 %v373, 0.0
      %v377 = vld [vmem:[%s1] sm:$0x7]
      %v379 = vlaneseq
      %v380 = vshrl.u32 %v379, 7
      %v381 = vsub.s32 0, %v380
      %v382 = vrot.slane %v377, %v381
      %v383 = vlaneseq
      %v384 = vshrl.u32 %v383, 7
      %v385 = vsub.s32 1, %v384
      %v386 = vrot.slane %v377, %v385
      %v387 = vlaneseq
      %v388 = vshrl.u32 %v387, 7
      %v389 = vsub.s32 2, %v388
      %v390 = vrot.slane %v377, %v389
      %v394 = vmul.f32 %v374, %v382
      %v395 = vmul.f32 %v375, %v386
      %v396 = vmul.f32 %v376, %v390
      %v397 = vld [vmem:[%s4] sm:$0xff]
      %s398 = scalar_lea.vmem %s4, 8
      %v399 = vld [vmem:[%s398] sm:$0xff]
      %403 = vrot.lane.b32.xlu0 %v394, 127
      %v404 = vpop.permute.xlu0 %403
      %405 = vrot.lane.b32.xlu0 %v395, 127
      %v406 = vpop.permute.xlu0 %405
      %407 = vrot.lane.b32.xlu0 %v396, 127
      %v408 = vpop.permute.xlu0 %407
      %vm409 = vcmask 1039360
      %v410 = vsel %vm409, %v404, %v406
      %v411 = vsel %vm409, %v406, %v408
      %vm415 = vcmask 64512
      %v417 = vsel %vm415, %v399, 0
      %419 = vmatprep.subr.mxu0 %v411
      %420 = vmatpush1.msra.mxu0 %v410
      %421 = vmatprep.subr.mxu0 0.0
      %422 = vmatpush1.msra.mxu0 0.0
      %423 = vmatprep.subr.mxu0 0.0
      %424 = vmatpush1.msra.mxu0 0.0
      %425 = vmatprep.subr.mxu0 0.0
      %426 = vmatpush1.msra.mxu0 0.0
      %427 = vmatprep.subr.mxu0 0.0
      %428 = vmatpush1.msra.mxu0 0.0
      %429 = vmatprep.subr.mxu0 0.0
      %430 = vmatpush1.msra.mxu0 0.0
      %431 = vmatprep.subr.mxu0 0.0
      %432 = vmatpush1.msra.mxu0 0.0
      %433 = vmatprep.subr.mxu0 0.0
      %434 = vmatpush1.msra.mxu0 0.0
      %435 = vmatprep.subr.mxu0 0.0
      %436 = vmatpush1.msra.mxu0 0.0
      %437 = vmatprep.subr.mxu0 0.0
      %438 = vmatpush1.msra.mxu0 0.0
      %439 = vmatprep.subr.mxu0 0.0
      %440 = vmatpush1.msra.mxu0 0.0
      %441 = vmatprep.subr.mxu0 0.0
      %442 = vmatpush1.msra.mxu0 0.0
      %443 = vmatprep.subr.mxu0 0.0
      %444 = vmatpush1.msra.mxu0 0.0
      %445 = vmatprep.subr.mxu0 0.0
      %446 = vmatpush1.msra.mxu0 0.0
      %447 = vmatprep.subr.mxu0 0.0
      %448 = vmatpush1.msra.mxu0 0.0
      %449 = vmatprep.subr.mxu0 0.0
      %450 = vmatpush1.msra.mxu0 0.0
      %451 = vmatprep.subr.mxu0 0.0
      %452 = vmatpush1.msra.mxu0 0.0
      %453 = vmatprep.subr.mxu0 0.0
      %454 = vmatpush1.msra.mxu0 0.0
      %455 = vmatprep.subr.mxu0 0.0
      %456 = vmatpush1.msra.mxu0 0.0
      %457 = vmatprep.subr.mxu0 0.0
      %458 = vmatpush1.msra.mxu0 0.0
      %459 = vmatprep.subr.mxu0 0.0
      %460 = vmatpush1.msra.mxu0 0.0
      %461 = vmatprep.subr.mxu0 0.0
      %462 = vmatpush1.msra.mxu0 0.0
      %463 = vmatprep.subr.mxu0 0.0
      %464 = vmatpush1.msra.mxu0 0.0
      %465 = vmatprep.subr.mxu0 0.0
      %466 = vmatpush1.msra.mxu0 0.0
      %467 = vmatprep.subr.mxu0 0.0
      %468 = vmatpush1.msra.mxu0 0.0
      %469 = vmatprep.subr.mxu0 0.0
      %470 = vmatpush1.msra.mxu0 0.0
      %471 = vmatprep.subr.mxu0 0.0
      %472 = vmatpush1.msra.mxu0 0.0
      %473 = vmatprep.subr.mxu0 0.0
      %474 = vmatpush1.msra.mxu0 0.0
      %475 = vmatprep.subr.mxu0 0.0
      %476 = vmatpush1.msra.mxu0 0.0
      %477 = vmatprep.subr.mxu0 0.0
      %478 = vmatpush1.msra.mxu0 0.0
      %479 = vmatprep.subr.mxu0 0.0
      %480 = vmatpush1.msra.mxu0 0.0
      %481 = vmatprep.subr.mxu0 0.0
      %482 = vmatpush1.msra.mxu0 0.0
      %483 = vmatprep.mubr.f32.mxu0 0.0
      %484 = vmatmul.mubr.f32.gmra.mrb[0].mxu0 %v417
      %v485 = vpop.f32.mrb[0].mxu0
      %v486 = vadd.f32 0.0, %v485
      %v487 = vpop.f32.mrb[0].mxu0
      %v488 = vadd.f32 0.0, %v487
      %489 = vdwg.mxu0
      %490 = vmatprep.subr.mxu0 0.0
      %491 = vmatpush1.msra.mxu0 %v408
      %492 = vmatprep.subr.mxu0 0.0
      %493 = vmatpush1.msra.mxu0 0.0
      %494 = vmatprep.subr.mxu0 0.0
      %495 = vmatpush1.msra.mxu0 0.0
      %496 = vmatprep.subr.mxu0 0.0
      %497 = vmatpush1.msra.mxu0 0.0
      %498 = vmatprep.subr.mxu0 0.0
      %499 = vmatpush1.msra.mxu0 0.0
      %500 = vmatprep.subr.mxu0 0.0
      %501 = vmatpush1.msra.mxu0 0.0
      %502 = vmatprep.subr.mxu0 0.0
      %503 = vmatpush1.msra.mxu0 0.0
      %504 = vmatprep.subr.mxu0 0.0
      %505 = vmatpush1.msra.mxu0 0.0
      %506 = vmatprep.subr.mxu0 0.0
      %507 = vmatpush1.msra.mxu0 0.0
      %508 = vmatprep.subr.mxu0 0.0
      %509 = vmatpush1.msra.mxu0 0.0
      %510 = vmatprep.subr.mxu0 0.0
      %511 = vmatpush1.msra.mxu0 0.0
      %512 = vmatprep.subr.mxu0 0.0
      %513 = vmatpush1.msra.mxu0 0.0
      %514 = vmatprep.subr.mxu0 0.0
      %515 = vmatpush1.msra.mxu0 0.0
      %516 = vmatprep.subr.mxu0 0.0
      %517 = vmatpush1.msra.mxu0 0.0
      %518 = vmatprep.subr.mxu0 0.0
      %519 = vmatpush1.msra.mxu0 0.0
      %520 = vmatprep.subr.mxu0 0.0
      %521 = vmatpush1.msra.mxu0 0.0
      %522 = vmatprep.subr.mxu0 0.0
      %523 = vmatpush1.msra.mxu0 0.0
      %524 = vmatprep.subr.mxu0 0.0
      %525 = vmatpush1.msra.mxu0 0.0
      %526 = vmatprep.subr.mxu0 0.0
      %527 = vmatpush1.msra.mxu0 0.0
      %528 = vmatprep.subr.mxu0 0.0
      %529 = vmatpush1.msra.mxu0 0.0
      %530 = vmatprep.subr.mxu0 0.0
      %531 = vmatpush1.msra.mxu0 0.0
      %532 = vmatprep.subr.mxu0 0.0
      %533 = vmatpush1.msra.mxu0 0.0
      %534 = vmatprep.subr.mxu0 0.0
      %535 = vmatpush1.msra.mxu0 0.0
      %536 = vmatprep.subr.mxu0 0.0
      %537 = vmatpush1.msra.mxu0 0.0
      %538 = vmatprep.subr.mxu0 0.0
      %539 = vmatpush1.msra.mxu0 0.0
      %540 = vmatprep.subr.mxu0 0.0
      %541 = vmatpush1.msra.mxu0 0.0
      %542 = vmatprep.subr.mxu0 0.0
      %543 = vmatpush1.msra.mxu0 0.0
      %544 = vmatprep.subr.mxu0 0.0
      %545 = vmatpush1.msra.mxu0 0.0
      %546 = vmatprep.subr.mxu0 0.0
      %547 = vmatpush1.msra.mxu0 0.0
      %548 = vmatprep.subr.mxu0 0.0
      %549 = vmatpush1.msra.mxu0 0.0
      %550 = vmatprep.subr.mxu0 0.0
      %551 = vmatpush1.msra.mxu0 0.0
      %552 = vmatprep.subr.mxu0 0.0
      %553 = vmatpush1.msra.mxu0 0.0
      %554 = vmatprep.mubr.f32.mxu0 0.0
      %555 = vmatmul.mubr.f32.gmra.mrb[0].mxu0 %v417
      %v556 = vpop.f32.mrb[0].mxu0
      %v557 = vadd.f32 0.0, %v556
      %v558 = vpop.f32.mrb[0].mxu0
      %559 = vdwg.mxu0
      %v561 = vsel %vm415, %v397, 0
      %563 = vmatprep.subr.mxu0 %v395
      %564 = vmatpush1.msra.mxu0 %v394
      %565 = vmatprep.subr.mxu0 0.0
      %566 = vmatpush1.msra.mxu0 0.0
      %567 = vmatprep.subr.mxu0 0.0
      %568 = vmatpush1.msra.mxu0 0.0
      %569 = vmatprep.subr.mxu0 0.0
      %570 = vmatpush1.msra.mxu0 0.0
      %571 = vmatprep.subr.mxu0 0.0
      %572 = vmatpush1.msra.mxu0 0.0
      %573 = vmatprep.subr.mxu0 0.0
      %574 = vmatpush1.msra.mxu0 0.0
      %575 = vmatprep.subr.mxu0 0.0
      %576 = vmatpush1.msra.mxu0 0.0
      %577 = vmatprep.subr.mxu0 0.0
      %578 = vmatpush1.msra.mxu0 0.0
      %579 = vmatprep.subr.mxu0 0.0
      %580 = vmatpush1.msra.mxu0 0.0
      %581 = vmatprep.subr.mxu0 0.0
      %582 = vmatpush1.msra.mxu0 0.0
      %583 = vmatprep.subr.mxu0 0.0
      %584 = vmatpush1.msra.mxu0 0.0
      %585 = vmatprep.subr.mxu0 0.0
      %586 = vmatpush1.msra.mxu0 0.0
      %587 = vmatprep.subr.mxu0 0.0
      %588 = vmatpush1.msra.mxu0 0.0
      %589 = vmatprep.subr.mxu0 0.0
      %590 = vmatpush1.msra.mxu0 0.0
      %591 = vmatprep.subr.mxu0 0.0
      %592 = vmatpush1.msra.mxu0 0.0
      %593 = vmatprep.subr.mxu0 0.0
      %594 = vmatpush1.msra.mxu0 0.0
      %595 = vmatprep.subr.mxu0 0.0
      %596 = vmatpush1.msra.mxu0 0.0
      %597 = vmatprep.subr.mxu0 0.0
      %598 = vmatpush1.msra.mxu0 0.0
      %599 = vmatprep.subr.mxu0 0.0
      %600 = vmatpush1.msra.mxu0 0.0
      %601 = vmatprep.subr.mxu0 0.0
      %602 = vmatpush1.msra.mxu0 0.0
      %603 = vmatprep.subr.mxu0 0.0
      %604 = vmatpush1.msra.mxu0 0.0
      %605 = vmatprep.subr.mxu0 0.0
      %606 = vmatpush1.msra.mxu0 0.0
      %607 = vmatprep.subr.mxu0 0.0
      %608 = vmatpush1.msra.mxu0 0.0
      %609 = vmatprep.subr.mxu0 0.0
      %610 = vmatpush1.msra.mxu0 0.0
      %611 = vmatprep.subr.mxu0 0.0
      %612 = vmatpush1.msra.mxu0 0.0
      %613 = vmatprep.subr.mxu0 0.0
      %614 = vmatpush1.msra.mxu0 0.0
      %615 = vmatprep.subr.mxu0 0.0
      %616 = vmatpush1.msra.mxu0 0.0
      %617 = vmatprep.subr.mxu0 0.0
      %618 = vmatpush1.msra.mxu0 0.0
      %619 = vmatprep.subr.mxu0 0.0
      %620 = vmatpush1.msra.mxu0 0.0
      %621 = vmatprep.subr.mxu0 0.0
      %622 = vmatpush1.msra.mxu0 0.0
      %623 = vmatprep.subr.mxu0 0.0
      %624 = vmatpush1.msra.mxu0 0.0
      %625 = vmatprep.subr.mxu0 0.0
      %626 = vmatpush1.msra.mxu0 0.0
      %627 = vmatprep.mubr.f32.mxu0 0.0
      %628 = vmatmul.mubr.f32.gmra.mrb[0].mxu0 %v561
      %v629 = vpop.f32.mrb[0].mxu0
      %v630 = vadd.f32 %v486, %v629
      %v631 = vpop.f32.mrb[0].mxu0
      %v632 = vadd.f32 %v488, %v631
      %633 = vdwg.mxu0
      %634 = vmatprep.subr.mxu0 0.0
      %635 = vmatpush1.msra.mxu0 %v396
      %636 = vmatprep.subr.mxu0 0.0
      %637 = vmatpush1.msra.mxu0 0.0
      %638 = vmatprep.subr.mxu0 0.0
      %639 = vmatpush1.msra.mxu0 0.0
      %640 = vmatprep.subr.mxu0 0.0
      %641 = vmatpush1.msra.mxu0 0.0
      %642 = vmatprep.subr.mxu0 0.0
      %643 = vmatpush1.msra.mxu0 0.0
      %644 = vmatprep.subr.mxu0 0.0
      %645 = vmatpush1.msra.mxu0 0.0
      %646 = vmatprep.subr.mxu0 0.0
      %647 = vmatpush1.msra.mxu0 0.0
      %648 = vmatprep.subr.mxu0 0.0
      %649 = vmatpush1.msra.mxu0 0.0
      %650 = vmatprep.subr.mxu0 0.0
      %651 = vmatpush1.msra.mxu0 0.0
      %652 = vmatprep.subr.mxu0 0.0
      %653 = vmatpush1.msra.mxu0 0.0
      %654 = vmatprep.subr.mxu0 0.0
      %655 = vmatpush1.msra.mxu0 0.0
      %656 = vmatprep.subr.mxu0 0.0
      %657 = vmatpush1.msra.mxu0 0.0
      %658 = vmatprep.subr.mxu0 0.0
      %659 = vmatpush1.msra.mxu0 0.0
      %660 = vmatprep.subr.mxu0 0.0
      %661 = vmatpush1.msra.mxu0 0.0
      %662 = vmatprep.subr.mxu0 0.0
      %663 = vmatpush1.msra.mxu0 0.0
      %664 = vmatprep.subr.mxu0 0.0
      %665 = vmatpush1.msra.mxu0 0.0
      %666 = vmatprep.subr.mxu0 0.0
      %667 = vmatpush1.msra.mxu0 0.0
      %668 = vmatprep.subr.mxu0 0.0
      %669 = vmatpush1.msra.mxu0 0.0
      %670 = vmatprep.subr.mxu0 0.0
      %671 = vmatpush1.msra.mxu0 0.0
      %672 = vmatprep.subr.mxu0 0.0
      %673 = vmatpush1.msra.mxu0 0.0
      %674 = vmatprep.subr.mxu0 0.0
      %675 = vmatpush1.msra.mxu0 0.0
      %676 = vmatprep.subr.mxu0 0.0
      %677 = vmatpush1.msra.mxu0 0.0
      %678 = vmatprep.subr.mxu0 0.0
      %679 = vmatpush1.msra.mxu0 0.0
      %680 = vmatprep.subr.mxu0 0.0
      %681 = vmatpush1.msra.mxu0 0.0
      %682 = vmatprep.subr.mxu0 0.0
      %683 = vmatpush1.msra.mxu0 0.0
      %684 = vmatprep.subr.mxu0 0.0
      %685 = vmatpush1.msra.mxu0 0.0
      %686 = vmatprep.subr.mxu0 0.0
      %687 = vmatpush1.msra.mxu0 0.0
      %688 = vmatprep.subr.mxu0 0.0
      %689 = vmatpush1.msra.mxu0 0.0
      %690 = vmatprep.subr.mxu0 0.0
      %691 = vmatpush1.msra.mxu0 0.0
      %692 = vmatprep.subr.mxu0 0.0
      %693 = vmatpush1.msra.mxu0 0.0
      %694 = vmatprep.subr.mxu0 0.0
      %695 = vmatpush1.msra.mxu0 0.0
      %696 = vmatprep.subr.mxu0 0.0
      %697 = vmatpush1.msra.mxu0 0.0
      %698 = vmatprep.mubr.f32.mxu0 0.0
      %699 = vmatmul.mubr.f32.gmra.mrb[0].mxu0 %v561
      %v700 = vpop.f32.mrb[0].mxu0
      %v701 = vadd.f32 %v557, %v700
      %v702 = vpop.f32.mrb[0].mxu0
      %703 = vdwg.mxu0
      %s704 = scalar_lea.vmem %s4, 16
      %v705 = vld [vmem:[%s704] sm:$0xff]
      %706 = vrot.lane.b32.xlu0 %v394, 126
      %v707 = vpop.permute.xlu0 %706
      %708 = vrot.lane.b32.xlu0 %v395, 126
      %v709 = vpop.permute.xlu0 %708
      %710 = vrot.lane.b32.xlu0 %v396, 126
      %v711 = vpop.permute.xlu0 %710
      %vm712 = vcmask 1031168
      %v713 = vsel %vm712, %v707, %v709
      %v714 = vsel %vm712, %v709, %v711
      %v719 = vsel %vm415, %v705, 0
      %721 = vmatprep.subr.mxu0 %v714
      %722 = vmatpush1.msra.mxu0 %v713
      %723 = vmatprep.subr.mxu0 0.0
      %724 = vmatpush1.msra.mxu0 0.0
      %725 = vmatprep.subr.mxu0 0.0
      %726 = vmatpush1.msra.mxu0 0.0
      %727 = vmatprep.subr.mxu0 0.0
      %728 = vmatpush1.msra.mxu0 0.0
      %729 = vmatprep.subr.mxu0 0.0
      %730 = vmatpush1.msra.mxu0 0.0
      %731 = vmatprep.subr.mxu0 0.0
      %732 = vmatpush1.msra.mxu0 0.0
      %733 = vmatprep.subr.mxu0 0.0
      %734 = vmatpush1.msra.mxu0 0.0
      %735 = vmatprep.subr.mxu0 0.0
      %736 = vmatpush1.msra.mxu0 0.0
      %737 = vmatprep.subr.mxu0 0.0
      %738 = vmatpush1.msra.mxu0 0.0
      %739 = vmatprep.subr.mxu0 0.0
      %740 = vmatpush1.msra.mxu0 0.0
      %741 = vmatprep.subr.mxu0 0.0
      %742 = vmatpush1.msra.mxu0 0.0
      %743 = vmatprep.subr.mxu0 0.0
      %744 = vmatpush1.msra.mxu0 0.0
      %745 = vmatprep.subr.mxu0 0.0
      %746 = vmatpush1.msra.mxu0 0.0
      %747 = vmatprep.subr.mxu0 0.0
      %748 = vmatpush1.msra.mxu0 0.0
      %749 = vmatprep.subr.mxu0 0.0
      %750 = vmatpush1.msra.mxu0 0.0
      %751 = vmatprep.subr.mxu0 0.0
      %752 = vmatpush1.msra.mxu0 0.0
      %753 = vmatprep.subr.mxu0 0.0
      %754 = vmatpush1.msra.mxu0 0.0
      %755 = vmatprep.subr.mxu0 0.0
      %756 = vmatpush1.msra.mxu0 0.0
      %757 = vmatprep.subr.mxu0 0.0
      %758 = vmatpush1.msra.mxu0 0.0
      %759 = vmatprep.subr.mxu0 0.0
      %760 = vmatpush1.msra.mxu0 0.0
      %761 = vmatprep.subr.mxu0 0.0
      %762 = vmatpush1.msra.mxu0 0.0
      %763 = vmatprep.subr.mxu0 0.0
      %764 = vmatpush1.msra.mxu0 0.0
      %765 = vmatprep.subr.mxu0 0.0
      %766 = vmatpush1.msra.mxu0 0.0
      %767 = vmatprep.subr.mxu0 0.0
      %768 = vmatpush1.msra.mxu0 0.0
      %769 = vmatprep.subr.mxu0 0.0
      %770 = vmatpush1.msra.mxu0 0.0
      %771 = vmatprep.subr.mxu0 0.0
      %772 = vmatpush1.msra.mxu0 0.0
      %773 = vmatprep.subr.mxu0 0.0
      %774 = vmatpush1.msra.mxu0 0.0
      %775 = vmatprep.subr.mxu0 0.0
      %776 = vmatpush1.msra.mxu0 0.0
      %777 = vmatprep.subr.mxu0 0.0
      %778 = vmatpush1.msra.mxu0 0.0
      %779 = vmatprep.subr.mxu0 0.0
      %780 = vmatpush1.msra.mxu0 0.0
      %781 = vmatprep.subr.mxu0 0.0
      %782 = vmatpush1.msra.mxu0 0.0
      %783 = vmatprep.subr.mxu0 0.0
      %784 = vmatpush1.msra.mxu0 0.0
      %785 = vmatprep.mubr.f32.mxu0 0.0
      %786 = vmatmul.mubr.f32.gmra.mrb[0].mxu0 %v719
      %v787 = vpop.f32.mrb[0].mxu0
      %v788 = vadd.f32 0.0, %v787
      %v789 = vpop.f32.mrb[0].mxu0
      %v790 = vadd.f32 0.0, %v789
      %791 = vdwg.mxu0
      %792 = vmatprep.subr.mxu0 0.0
      %793 = vmatpush1.msra.mxu0 %v711
      %794 = vmatprep.subr.mxu0 0.0
      %795 = vmatpush1.msra.mxu0 0.0
      %796 = vmatprep.subr.mxu0 0.0
      %797 = vmatpush1.msra.mxu0 0.0
      %798 = vmatprep.subr.mxu0 0.0
      %799 = vmatpush1.msra.mxu0 0.0
      %800 = vmatprep.subr.mxu0 0.0
      %801 = vmatpush1.msra.mxu0 0.0
      %802 = vmatprep.subr.mxu0 0.0
      %803 = vmatpush1.msra.mxu0 0.0
      %804 = vmatprep.subr.mxu0 0.0
      %805 = vmatpush1.msra.mxu0 0.0
      %806 = vmatprep.subr.mxu0 0.0
      %807 = vmatpush1.msra.mxu0 0.0
      %808 = vmatprep.subr.mxu0 0.0
      %809 = vmatpush1.msra.mxu0 0.0
      %810 = vmatprep.subr.mxu0 0.0
      %811 = vmatpush1.msra.mxu0 0.0
      %812 = vmatprep.subr.mxu0 0.0
      %813 = vmatpush1.msra.mxu0 0.0
      %814 = vmatprep.subr.mxu0 0.0
      %815 = vmatpush1.msra.mxu0 0.0
      %816 = vmatprep.subr.mxu0 0.0
      %817 = vmatpush1.msra.mxu0 0.0
      %818 = vmatprep.subr.mxu0 0.0
      %819 = vmatpush1.msra.mxu0 0.0
      %820 = vmatprep.subr.mxu0 0.0
      %821 = vmatpush1.msra.mxu0 0.0
      %822 = vmatprep.subr.mxu0 0.0
      %823 = vmatpush1.msra.mxu0 0.0
      %824 = vmatprep.subr.mxu0 0.0
      %825 = vmatpush1.msra.mxu0 0.0
      %826 = vmatprep.subr.mxu0 0.0
      %827 = vmatpush1.msra.mxu0 0.0
      %828 = vmatprep.subr.mxu0 0.0
      %829 = vmatpush1.msra.mxu0 0.0
      %830 = vmatprep.subr.mxu0 0.0
      %831 = vmatpush1.msra.mxu0 0.0
      %832 = vmatprep.subr.mxu0 0.0
      %833 = vmatpush1.msra.mxu0 0.0
      %834 = vmatprep.subr.mxu0 0.0
      %835 = vmatpush1.msra.mxu0 0.0
      %836 = vmatprep.subr.mxu0 0.0
      %837 = vmatpush1.msra.mxu0 0.0
      %838 = vmatprep.subr.mxu0 0.0
      %839 = vmatpush1.msra.mxu0 0.0
      %840 = vmatprep.subr.mxu0 0.0
      %841 = vmatpush1.msra.mxu0 0.0
      %842 = vmatprep.subr.mxu0 0.0
      %843 = vmatpush1.msra.mxu0 0.0
      %844 = vmatprep.subr.mxu0 0.0
      %845 = vmatpush1.msra.mxu0 0.0
      %846 = vmatprep.subr.mxu0 0.0
      %847 = vmatpush1.msra.mxu0 0.0
      %848 = vmatprep.subr.mxu0 0.0
      %849 = vmatpush1.msra.mxu0 0.0
      %850 = vmatprep.subr.mxu0 0.0
      %851 = vmatpush1.msra.mxu0 0.0
      %852 = vmatprep.subr.mxu0 0.0
      %853 = vmatpush1.msra.mxu0 0.0
      %854 = vmatprep.subr.mxu0 0.0
      %855 = vmatpush1.msra.mxu0 0.0
      %856 = vmatprep.mubr.f32.mxu0 0.0
      %857 = vmatmul.mubr.f32.gmra.mrb[0].mxu0 %v719
      %v858 = vpop.f32.mrb[0].mxu0
      %v859 = vadd.f32 0.0, %v858
      %v860 = vpop.f32.mrb[0].mxu0
      %861 = vdwg.mxu0
      %v862 = vadd.f32 %v630, %v788
      %v863 = vadd.f32 %v632, %v790
      %v864 = vadd.f32 %v701, %v859
      %s865 = scalar_lea.vmem %s4, 24
      %v866 = vld [vmem:[%s865] sm:$0xff]
      %867 = vrot.lane.b32.xlu0 %v394, 110
      %v868 = vpop.permute.xlu0 %867
      %869 = vrot.lane.b32.xlu0 %v395, 110
      %v870 = vpop.permute.xlu0 %869
      %871 = vrot.lane.b32.xlu0 %v396, 110
      %v872 = vpop.permute.xlu0 %871
      %vm873 = vcmask 900096
      %v874 = vsel %vm873, %v868, %v870
      %v875 = vsel %vm873, %v870, %v872
      %v880 = vsel %vm415, %v866, 0
      %882 = vmatprep.subr.mxu0 %v875
      %883 = vmatpush1.msra.mxu0 %v874
      %884 = vmatprep.subr.mxu0 0.0
      %885 = vmatpush1.msra.mxu0 0.0
      %886 = vmatprep.subr.mxu0 0.0
      %887 = vmatpush1.msra.mxu0 0.0
      %888 = vmatprep.subr.mxu0 0.0
      %889 = vmatpush1.msra.mxu0 0.0
      %890 = vmatprep.subr.mxu0 0.0
      %891 = vmatpush1.msra.mxu0 0.0
      %892 = vmatprep.subr.mxu0 0.0
      %893 = vmatpush1.msra.mxu0 0.0
      %894 = vmatprep.subr.mxu0 0.0
      %895 = vmatpush1.msra.mxu0 0.0
      %896 = vmatprep.subr.mxu0 0.0
      %897 = vmatpush1.msra.mxu0 0.0
      %898 = vmatprep.subr.mxu0 0.0
      %899 = vmatpush1.msra.mxu0 0.0
      %900 = vmatprep.subr.mxu0 0.0
      %901 = vmatpush1.msra.mxu0 0.0
      %902 = vmatprep.subr.mxu0 0.0
      %903 = vmatpush1.msra.mxu0 0.0
      %904 = vmatprep.subr.mxu0 0.0
      %905 = vmatpush1.msra.mxu0 0.0
      %906 = vmatprep.subr.mxu0 0.0
      %907 = vmatpush1.msra.mxu0 0.0
      %908 = vmatprep.subr.mxu0 0.0
      %909 = vmatpush1.msra.mxu0 0.0
      %910 = vmatprep.subr.mxu0 0.0
      %911 = vmatpush1.msra.mxu0 0.0
      %912 = vmatprep.subr.mxu0 0.0
      %913 = vmatpush1.msra.mxu0 0.0
      %914 = vmatprep.subr.mxu0 0.0
      %915 = vmatpush1.msra.mxu0 0.0
      %916 = vmatprep.subr.mxu0 0.0
      %917 = vmatpush1.msra.mxu0 0.0
      %918 = vmatprep.subr.mxu0 0.0
      %919 = vmatpush1.msra.mxu0 0.0
      %920 = vmatprep.subr.mxu0 0.0
      %921 = vmatpush1.msra.mxu0 0.0
      %922 = vmatprep.subr.mxu0 0.0
      %923 = vmatpush1.msra.mxu0 0.0
      %924 = vmatprep.subr.mxu0 0.0
      %925 = vmatpush1.msra.mxu0 0.0
      %926 = vmatprep.subr.mxu0 0.0
      %927 = vmatpush1.msra.mxu0 0.0
      %928 = vmatprep.subr.mxu0 0.0
      %929 = vmatpush1.msra.mxu0 0.0
      %930 = vmatprep.subr.mxu0 0.0
      %931 = vmatpush1.msra.mxu0 0.0
      %932 = vmatprep.subr.mxu0 0.0
      %933 = vmatpush1.msra.mxu0 0.0
      %934 = vmatprep.subr.mxu0 0.0
      %935 = vmatpush1.msra.mxu0 0.0
      %936 = vmatprep.subr.mxu0 0.0
      %937 = vmatpush1.msra.mxu0 0.0
      %938 = vmatprep.subr.mxu0 0.0
      %939 = vmatpush1.msra.mxu0 0.0
      %940 = vmatprep.subr.mxu0 0.0
      %941 = vmatpush1.msra.mxu0 0.0
      %942 = vmatprep.subr.mxu0 0.0
      %943 = vmatpush1.msra.mxu0 0.0
      %944 = vmatprep.subr.mxu0 0.0
      %945 = vmatpush1.msra.mxu0 0.0
      %946 = vmatprep.mubr.f32.mxu0 0.0
      %947 = vmatmul.mubr.f32.gmra.mrb[0].mxu0 %v880
      %v948 = vpop.f32.mrb[0].mxu0
      %v949 = vadd.f32 0.0, %v948
      %v950 = vpop.f32.mrb[0].mxu0
      %v951 = vadd.f32 0.0, %v950
      %952 = vdwg.mxu0
      %953 = vmatprep.subr.mxu0 0.0
      %954 = vmatpush1.msra.mxu0 %v872
      %955 = vmatprep.subr.mxu0 0.0
      %956 = vmatpush1.msra.mxu0 0.0
      %957 = vmatprep.subr.mxu0 0.0
      %958 = vmatpush1.msra.mxu0 0.0
      %959 = vmatprep.subr.mxu0 0.0
      %960 = vmatpush1.msra.mxu0 0.0
      %961 = vmatprep.subr.mxu0 0.0
      %962 = vmatpush1.msra.mxu0 0.0
      %963 = vmatprep.subr.mxu0 0.0
      %964 = vmatpush1.msra.mxu0 0.0
      %965 = vmatprep.subr.mxu0 0.0
      %966 = vmatpush1.msra.mxu0 0.0
      %967 = vmatprep.subr.mxu0 0.0
      %968 = vmatpush1.msra.mxu0 0.0
      %969 = vmatprep.subr.mxu0 0.0
      %970 = vmatpush1.msra.mxu0 0.0
      %971 = vmatprep.subr.mxu0 0.0
      %972 = vmatpush1.msra.mxu0 0.0
      %973 = vmatprep.subr.mxu0 0.0
      %974 = vmatpush1.msra.mxu0 0.0
      %975 = vmatprep.subr.mxu0 0.0
      %976 = vmatpush1.msra.mxu0 0.0
      %977 = vmatprep.subr.mxu0 0.0
      %978 = vmatpush1.msra.mxu0 0.0
      %979 = vmatprep.subr.mxu0 0.0
      %980 = vmatpush1.msra.mxu0 0.0
      %981 = vmatprep.subr.mxu0 0.0
      %982 = vmatpush1.msra.mxu0 0.0
      %983 = vmatprep.subr.mxu0 0.0
      %984 = vmatpush1.msra.mxu0 0.0
      %985 = vmatprep.subr.mxu0 0.0
      %986 = vmatpush1.msra.mxu0 0.0
      %987 = vmatprep.subr.mxu0 0.0
      %988 = vmatpush1.msra.mxu0 0.0
      %989 = vmatprep.subr.mxu0 0.0
      %990 = vmatpush1.msra.mxu0 0.0
      %991 = vmatprep.subr.mxu0 0.0
      %992 = vmatpush1.msra.mxu0 0.0
      %993 = vmatprep.subr.mxu0 0.0
      %994 = vmatpush1.msra.mxu0 0.0
      %995 = vmatprep.subr.mxu0 0.0
      %996 = vmatpush1.msra.mxu0 0.0
      %997 = vmatprep.subr.mxu0 0.0
      %998 = vmatpush1.msra.mxu0 0.0
      %999 = vmatprep.subr.mxu0 0.0
      %1000 = vmatpush1.msra.mxu0 0.0
      %1001 = vmatprep.subr.mxu0 0.0
      %1002 = vmatpush1.msra.mxu0 0.0
      %1003 = vmatprep.subr.mxu0 0.0
      %1004 = vmatpush1.msra.mxu0 0.0
      %1005 = vmatprep.subr.mxu0 0.0
      %1006 = vmatpush1.msra.mxu0 0.0
      %1007 = vmatprep.subr.mxu0 0.0
      %1008 = vmatpush1.msra.mxu0 0.0
      %1009 = vmatprep.subr.mxu0 0.0
      %1010 = vmatpush1.msra.mxu0 0.0
      %1011 = vmatprep.subr.mxu0 0.0
      %1012 = vmatpush1.msra.mxu0 0.0
      %1013 = vmatprep.subr.mxu0 0.0
      %1014 = vmatpush1.msra.mxu0 0.0
      %1015 = vmatprep.subr.mxu0 0.0
      %1016 = vmatpush1.msra.mxu0 0.0
      %1017 = vmatprep.mubr.f32.mxu0 0.0
      %1018 = vmatmul.mubr.f32.gmra.mrb[0].mxu0 %v880
      %v1019 = vpop.f32.mrb[0].mxu0
      %v1020 = vadd.f32 0.0, %v1019
      %v1021 = vpop.f32.mrb[0].mxu0
      %1022 = vdwg.mxu0
      %v1023 = vadd.f32 %v862, %v949
      %v1024 = vadd.f32 %v863, %v951
      %v1025 = vadd.f32 %v864, %v1020
      %s1026 = scalar_lea.vmem %s4, 32
      %v1027 = vld [vmem:[%s1026] sm:$0xff]
      %1028 = vrot.lane.b32.xlu0 %v394, 109
      %v1029 = vpop.permute.xlu0 %1028
      %1030 = vrot.lane.b32.xlu0 %v395, 109
      %v1031 = vpop.permute.xlu0 %1030
      %1032 = vrot.lane.b32.xlu0 %v396, 109
      %v1033 = vpop.permute.xlu0 %1032
      %vm1034 = vcmask 891904
      %v1035 = vsel %vm1034, %v1029, %v1031
      %v1036 = vsel %vm1034, %v1031, %v1033
      %v1041 = vsel %vm415, %v1027, 0
      %1043 = vmatprep.subr.mxu0 %v1036
      %1044 = vmatpush1.msra.mxu0 %v1035
      %1045 = vmatprep.subr.mxu0 0.0
      %1046 = vmatpush1.msra.mxu0 0.0
      %1047 = vmatprep.subr.mxu0 0.0
      %1048 = vmatpush1.msra.mxu0 0.0
      %1049 = vmatprep.subr.mxu0 0.0
      %1050 = vmatpush1.msra.mxu0 0.0
      %1051 = vmatprep.subr.mxu0 0.0
      %1052 = vmatpush1.msra.mxu0 0.0
      %1053 = vmatprep.subr.mxu0 0.0
      %1054 = vmatpush1.msra.mxu0 0.0
      %1055 = vmatprep.subr.mxu0 0.0
      %1056 = vmatpush1.msra.mxu0 0.0
      %1057 = vmatprep.subr.mxu0 0.0
      %1058 = vmatpush1.msra.mxu0 0.0
      %1059 = vmatprep.subr.mxu0 0.0
      %1060 = vmatpush1.msra.mxu0 0.0
      %1061 = vmatprep.subr.mxu0 0.0
      %1062 = vmatpush1.msra.mxu0 0.0
      %1063 = vmatprep.subr.mxu0 0.0
      %1064 = vmatpush1.msra.mxu0 0.0
      %1065 = vmatprep.subr.mxu0 0.0
      %1066 = vmatpush1.msra.mxu0 0.0
      %1067 = vmatprep.subr.mxu0 0.0
      %1068 = vmatpush1.msra.mxu0 0.0
      %1069 = vmatprep.subr.mxu0 0.0
      %1070 = vmatpush1.msra.mxu0 0.0
      %1071 = vmatprep.subr.mxu0 0.0
      %1072 = vmatpush1.msra.mxu0 0.0
      %1073 = vmatprep.subr.mxu0 0.0
      %1074 = vmatpush1.msra.mxu0 0.0
      %1075 = vmatprep.subr.mxu0 0.0
      %1076 = vmatpush1.msra.mxu0 0.0
      %1077 = vmatprep.subr.mxu0 0.0
      %1078 = vmatpush1.msra.mxu0 0.0
      %1079 = vmatprep.subr.mxu0 0.0
      %1080 = vmatpush1.msra.mxu0 0.0
      %1081 = vmatprep.subr.mxu0 0.0
      %1082 = vmatpush1.msra.mxu0 0.0
      %1083 = vmatprep.subr.mxu0 0.0
      %1084 = vmatpush1.msra.mxu0 0.0
      %1085 = vmatprep.subr.mxu0 0.0
      %1086 = vmatpush1.msra.mxu0 0.0
      %1087 = vmatprep.subr.mxu0 0.0
      %1088 = vmatpush1.msra.mxu0 0.0
      %1089 = vmatprep.subr.mxu0 0.0
      %1090 = vmatpush1.msra.mxu0 0.0
      %1091 = vmatprep.subr.mxu0 0.0
      %1092 = vmatpush1.msra.mxu0 0.0
      %1093 = vmatprep.subr.mxu0 0.0
      %1094 = vmatpush1.msra.mxu0 0.0
      %1095 = vmatprep.subr.mxu0 0.0
      %1096 = vmatpush1.msra.mxu0 0.0
      %1097 = vmatprep.subr.mxu0 0.0
      %1098 = vmatpush1.msra.mxu0 0.0
      %1099 = vmatprep.subr.mxu0 0.0
      %1100 = vmatpush1.msra.mxu0 0.0
      %1101 = vmatprep.subr.mxu0 0.0
      %1102 = vmatpush1.msra.mxu0 0.0
      %1103 = vmatprep.subr.mxu0 0.0
      %1104 = vmatpush1.msra.mxu0 0.0
      %1105 = vmatprep.subr.mxu0 0.0
      %1106 = vmatpush1.msra.mxu0 0.0
      %1107 = vmatprep.mubr.f32.mxu0 0.0
      %1108 = vmatmul.mubr.f32.gmra.mrb[0].mxu0 %v1041
      %v1109 = vpop.f32.mrb[0].mxu0
      %v1110 = vadd.f32 0.0, %v1109
      %v1111 = vpop.f32.mrb[0].mxu0
      %v1112 = vadd.f32 0.0, %v1111
      %1113 = vdwg.mxu0
      %1114 = vmatprep.subr.mxu0 0.0
      %1115 = vmatpush1.msra.mxu0 %v1033
      %1116 = vmatprep.subr.mxu0 0.0
      %1117 = vmatpush1.msra.mxu0 0.0
      %1118 = vmatprep.subr.mxu0 0.0
      %1119 = vmatpush1.msra.mxu0 0.0
      %1120 = vmatprep.subr.mxu0 0.0
      %1121 = vmatpush1.msra.mxu0 0.0
      %1122 = vmatprep.subr.mxu0 0.0
      %1123 = vmatpush1.msra.mxu0 0.0
      %1124 = vmatprep.subr.mxu0 0.0
      %1125 = vmatpush1.msra.mxu0 0.0
      %1126 = vmatprep.subr.mxu0 0.0
      %1127 = vmatpush1.msra.mxu0 0.0
      %1128 = vmatprep.subr.mxu0 0.0
      %1129 = vmatpush1.msra.mxu0 0.0
      %1130 = vmatprep.subr.mxu0 0.0
      %1131 = vmatpush1.msra.mxu0 0.0
      %1132 = vmatprep.subr.mxu0 0.0
      %1133 = vmatpush1.msra.mxu0 0.0
      %1134 = vmatprep.subr.mxu0 0.0
      %1135 = vmatpush1.msra.mxu0 0.0
      %1136 = vmatprep.subr.mxu0 0.0
      %1137 = vmatpush1.msra.mxu0 0.0
      %1138 = vmatprep.subr.mxu0 0.0
      %1139 = vmatpush1.msra.mxu0 0.0
      %1140 = vmatprep.subr.mxu0 0.0
      %1141 = vmatpush1.msra.mxu0 0.0
      %1142 = vmatprep.subr.mxu0 0.0
      %1143 = vmatpush1.msra.mxu0 0.0
      %1144 = vmatprep.subr.mxu0 0.0
      %1145 = vmatpush1.msra.mxu0 0.0
      %1146 = vmatprep.subr.mxu0 0.0
      %1147 = vmatpush1.msra.mxu0 0.0
      %1148 = vmatprep.subr.mxu0 0.0
      %1149 = vmatpush1.msra.mxu0 0.0
      %1150 = vmatprep.subr.mxu0 0.0
      %1151 = vmatpush1.msra.mxu0 0.0
      %1152 = vmatprep.subr.mxu0 0.0
      %1153 = vmatpush1.msra.mxu0 0.0
      %1154 = vmatprep.subr.mxu0 0.0
      %1155 = vmatpush1.msra.mxu0 0.0
      %1156 = vmatprep.subr.mxu0 0.0
      %1157 = vmatpush1.msra.mxu0 0.0
      %1158 = vmatprep.subr.mxu0 0.0
      %1159 = vmatpush1.msra.mxu0 0.0
      %1160 = vmatprep.subr.mxu0 0.0
      %1161 = vmatpush1.msra.mxu0 0.0
      %1162 = vmatprep.subr.mxu0 0.0
      %1163 = vmatpush1.msra.mxu0 0.0
      %1164 = vmatprep.subr.mxu0 0.0
      %1165 = vmatpush1.msra.mxu0 0.0
      %1166 = vmatprep.subr.mxu0 0.0
      %1167 = vmatpush1.msra.mxu0 0.0
      %1168 = vmatprep.subr.mxu0 0.0
      %1169 = vmatpush1.msra.mxu0 0.0
      %1170 = vmatprep.subr.mxu0 0.0
      %1171 = vmatpush1.msra.mxu0 0.0
      %1172 = vmatprep.subr.mxu0 0.0
      %1173 = vmatpush1.msra.mxu0 0.0
      %1174 = vmatprep.subr.mxu0 0.0
      %1175 = vmatpush1.msra.mxu0 0.0
      %1176 = vmatprep.subr.mxu0 0.0
      %1177 = vmatpush1.msra.mxu0 0.0
      %1178 = vmatprep.mubr.f32.mxu0 0.0
      %1179 = vmatmul.mubr.f32.gmra.mrb[0].mxu0 %v1041
      %v1180 = vpop.f32.mrb[0].mxu0
      %v1181 = vadd.f32 0.0, %v1180
      %v1182 = vpop.f32.mrb[0].mxu0
      %1183 = vdwg.mxu0
      %v1184 = vadd.f32 %v1023, %v1110
      %v1185 = vadd.f32 %v1024, %v1112
      %v1186 = vadd.f32 %v1025, %v1181
      %s1187 = scalar_lea.vmem %s4, 40
      %v1188 = vld [vmem:[%s1187] sm:$0xff]
      %1189 = vrot.lane.b32.xlu0 %v394, 108
      %v1190 = vpop.permute.xlu0 %1189
      %1191 = vrot.lane.b32.xlu0 %v395, 108
      %v1192 = vpop.permute.xlu0 %1191
      %1193 = vrot.lane.b32.xlu0 %v396, 108
      %v1194 = vpop.permute.xlu0 %1193
      %vm1195 = vcmask 883712
      %v1196 = vsel %vm1195, %v1190, %v1192
      %v1197 = vsel %vm1195, %v1192, %v1194
      %v1202 = vsel %vm415, %v1188, 0
      %1204 = vmatprep.subr.mxu0 %v1197
      %1205 = vmatpush1.msra.mxu0 %v1196
      %1206 = vmatprep.subr.mxu0 0.0
      %1207 = vmatpush1.msra.mxu0 0.0
      %1208 = vmatprep.subr.mxu0 0.0
      %1209 = vmatpush1.msra.mxu0 0.0
      %1210 = vmatprep.subr.mxu0 0.0
      %1211 = vmatpush1.msra.mxu0 0.0
      %1212 = vmatprep.subr.mxu0 0.0
      %1213 = vmatpush1.msra.mxu0 0.0
      %1214 = vmatprep.subr.mxu0 0.0
      %1215 = vmatpush1.msra.mxu0 0.0
      %1216 = vmatprep.subr.mxu0 0.0
      %1217 = vmatpush1.msra.mxu0 0.0
      %1218 = vmatprep.subr.mxu0 0.0
      %1219 = vmatpush1.msra.mxu0 0.0
      %1220 = vmatprep.subr.mxu0 0.0
      %1221 = vmatpush1.msra.mxu0 0.0
      %1222 = vmatprep.subr.mxu0 0.0
      %1223 = vmatpush1.msra.mxu0 0.0
      %1224 = vmatprep.subr.mxu0 0.0
      %1225 = vmatpush1.msra.mxu0 0.0
      %1226 = vmatprep.subr.mxu0 0.0
      %1227 = vmatpush1.msra.mxu0 0.0
      %1228 = vmatprep.subr.mxu0 0.0
      %1229 = vmatpush1.msra.mxu0 0.0
      %1230 = vmatprep.subr.mxu0 0.0
      %1231 = vmatpush1.msra.mxu0 0.0
      %1232 = vmatprep.subr.mxu0 0.0
      %1233 = vmatpush1.msra.mxu0 0.0
      %1234 = vmatprep.subr.mxu0 0.0
      %1235 = vmatpush1.msra.mxu0 0.0
      %1236 = vmatprep.subr.mxu0 0.0
      %1237 = vmatpush1.msra.mxu0 0.0
      %1238 = vmatprep.subr.mxu0 0.0
      %1239 = vmatpush1.msra.mxu0 0.0
      %1240 = vmatprep.subr.mxu0 0.0
      %1241 = vmatpush1.msra.mxu0 0.0
      %1242 = vmatprep.subr.mxu0 0.0
      %1243 = vmatpush1.msra.mxu0 0.0
      %1244 = vmatprep.subr.mxu0 0.0
      %1245 = vmatpush1.msra.mxu0 0.0
      %1246 = vmatprep.subr.mxu0 0.0
      %1247 = vmatpush1.msra.mxu0 0.0
      %1248 = vmatprep.subr.mxu0 0.0
      %1249 = vmatpush1.msra.mxu0 0.0
      %1250 = vmatprep.subr.mxu0 0.0
      %1251 = vmatpush1.msra.mxu0 0.0
      %1252 = vmatprep.subr.mxu0 0.0
      %1253 = vmatpush1.msra.mxu0 0.0
      %1254 = vmatprep.subr.mxu0 0.0
      %1255 = vmatpush1.msra.mxu0 0.0
      %1256 = vmatprep.subr.mxu0 0.0
      %1257 = vmatpush1.msra.mxu0 0.0
      %1258 = vmatprep.subr.mxu0 0.0
      %1259 = vmatpush1.msra.mxu0 0.0
      %1260 = vmatprep.subr.mxu0 0.0
      %1261 = vmatpush1.msra.mxu0 0.0
      %1262 = vmatprep.subr.mxu0 0.0
      %1263 = vmatpush1.msra.mxu0 0.0
      %1264 = vmatprep.subr.mxu0 0.0
      %1265 = vmatpush1.msra.mxu0 0.0
      %1266 = vmatprep.subr.mxu0 0.0
      %1267 = vmatpush1.msra.mxu0 0.0
      %1268 = vmatprep.mubr.f32.mxu0 0.0
      %1269 = vmatmul.mubr.f32.gmra.mrb[0].mxu0 %v1202
      %v1270 = vpop.f32.mrb[0].mxu0
      %v1271 = vadd.f32 0.0, %v1270
      %v1272 = vpop.f32.mrb[0].mxu0
      %v1273 = vadd.f32 0.0, %v1272
      %1274 = vdwg.mxu0
      %1275 = vmatprep.subr.mxu0 0.0
      %1276 = vmatpush1.msra.mxu0 %v1194
      %1277 = vmatprep.subr.mxu0 0.0
      %1278 = vmatpush1.msra.mxu0 0.0
      %1279 = vmatprep.subr.mxu0 0.0
      %1280 = vmatpush1.msra.mxu0 0.0
      %1281 = vmatprep.subr.mxu0 0.0
      %1282 = vmatpush1.msra.mxu0 0.0
      %1283 = vmatprep.subr.mxu0 0.0
      %1284 = vmatpush1.msra.mxu0 0.0
      %1285 = vmatprep.subr.mxu0 0.0
      %1286 = vmatpush1.msra.mxu0 0.0
      %1287 = vmatprep.subr.mxu0 0.0
      %1288 = vmatpush1.msra.mxu0 0.0
      %1289 = vmatprep.subr.mxu0 0.0
      %1290 = vmatpush1.msra.mxu0 0.0
      %1291 = vmatprep.subr.mxu0 0.0
      %1292 = vmatpush1.msra.mxu0 0.0
      %1293 = vmatprep.subr.mxu0 0.0
      %1294 = vmatpush1.msra.mxu0 0.0
      %1295 = vmatprep.subr.mxu0 0.0
      %1296 = vmatpush1.msra.mxu0 0.0
      %1297 = vmatprep.subr.mxu0 0.0
      %1298 = vmatpush1.msra.mxu0 0.0
      %1299 = vmatprep.subr.mxu0 0.0
      %1300 = vmatpush1.msra.mxu0 0.0
      %1301 = vmatprep.subr.mxu0 0.0
      %1302 = vmatpush1.msra.mxu0 0.0
      %1303 = vmatprep.subr.mxu0 0.0
      %1304 = vmatpush1.msra.mxu0 0.0
      %1305 = vmatprep.subr.mxu0 0.0
      %1306 = vmatpush1.msra.mxu0 0.0
      %1307 = vmatprep.subr.mxu0 0.0
      %1308 = vmatpush1.msra.mxu0 0.0
      %1309 = vmatprep.subr.mxu0 0.0
      %1310 = vmatpush1.msra.mxu0 0.0
      %1311 = vmatprep.subr.mxu0 0.0
      %1312 = vmatpush1.msra.mxu0 0.0
      %1313 = vmatprep.subr.mxu0 0.0
      %1314 = vmatpush1.msra.mxu0 0.0
      %1315 = vmatprep.subr.mxu0 0.0
      %1316 = vmatpush1.msra.mxu0 0.0
      %1317 = vmatprep.subr.mxu0 0.0
      %1318 = vmatpush1.msra.mxu0 0.0
      %1319 = vmatprep.subr.mxu0 0.0
      %1320 = vmatpush1.msra.mxu0 0.0
      %1321 = vmatprep.subr.mxu0 0.0
      %1322 = vmatpush1.msra.mxu0 0.0
      %1323 = vmatprep.subr.mxu0 0.0
      %1324 = vmatpush1.msra.mxu0 0.0
      %1325 = vmatprep.subr.mxu0 0.0
      %1326 = vmatpush1.msra.mxu0 0.0
      %1327 = vmatprep.subr.mxu0 0.0
      %1328 = vmatpush1.msra.mxu0 0.0
      %1329 = vmatprep.subr.mxu0 0.0
      %1330 = vmatpush1.msra.mxu0 0.0
      %1331 = vmatprep.subr.mxu0 0.0
      %1332 = vmatpush1.msra.mxu0 0.0
      %1333 = vmatprep.subr.mxu0 0.0
      %1334 = vmatpush1.msra.mxu0 0.0
      %1335 = vmatprep.subr.mxu0 0.0
      %1336 = vmatpush1.msra.mxu0 0.0
      %1337 = vmatprep.subr.mxu0 0.0
      %1338 = vmatpush1.msra.mxu0 0.0
      %1339 = vmatprep.mubr.f32.mxu0 0.0
      %1340 = vmatmul.mubr.f32.gmra.mrb[0].mxu0 %v1202
      %v1341 = vpop.f32.mrb[0].mxu0
      %v1342 = vadd.f32 0.0, %v1341
      %v1343 = vpop.f32.mrb[0].mxu0
      %1344 = vdwg.mxu0
      %v1345 = vadd.f32 %v1184, %v1271
      %v1346 = vadd.f32 %v1185, %v1273
      %v1347 = vadd.f32 %v1186, %v1342
      %s1348 = scalar_lea.vmem %s4, 48
      %v1349 = vld [vmem:[%s1348] sm:$0xff]
      %1350 = vrot.lane.b32.xlu0 %v394, 92
      %v1351 = vpop.permute.xlu0 %1350
      %1352 = vrot.lane.b32.xlu0 %v395, 92
      %v1353 = vpop.permute.xlu0 %1352
      %1354 = vrot.lane.b32.xlu0 %v396, 92
      %v1355 = vpop.permute.xlu0 %1354
      %vm1356 = vcmask 752640
      %v1357 = vsel %vm1356, %v1351, %v1353
      %v1358 = vsel %vm1356, %v1353, %v1355
      %v1363 = vsel %vm415, %v1349, 0
      %1365 = vmatprep.subr.mxu0 %v1358
      %1366 = vmatpush1.msra.mxu0 %v1357
      %1367 = vmatprep.subr.mxu0 0.0
      %1368 = vmatpush1.msra.mxu0 0.0
      %1369 = vmatprep.subr.mxu0 0.0
      %1370 = vmatpush1.msra.mxu0 0.0
      %1371 = vmatprep.subr.mxu0 0.0
      %1372 = vmatpush1.msra.mxu0 0.0
      %1373 = vmatprep.subr.mxu0 0.0
      %1374 = vmatpush1.msra.mxu0 0.0
      %1375 = vmatprep.subr.mxu0 0.0
      %1376 = vmatpush1.msra.mxu0 0.0
      %1377 = vmatprep.subr.mxu0 0.0
      %1378 = vmatpush1.msra.mxu0 0.0
      %1379 = vmatprep.subr.mxu0 0.0
      %1380 = vmatpush1.msra.mxu0 0.0
      %1381 = vmatprep.subr.mxu0 0.0
      %1382 = vmatpush1.msra.mxu0 0.0
      %1383 = vmatprep.subr.mxu0 0.0
      %1384 = vmatpush1.msra.mxu0 0.0
      %1385 = vmatprep.subr.mxu0 0.0
      %1386 = vmatpush1.msra.mxu0 0.0
      %1387 = vmatprep.subr.mxu0 0.0
      %1388 = vmatpush1.msra.mxu0 0.0
      %1389 = vmatprep.subr.mxu0 0.0
      %1390 = vmatpush1.msra.mxu0 0.0
      %1391 = vmatprep.subr.mxu0 0.0
      %1392 = vmatpush1.msra.mxu0 0.0
      %1393 = vmatprep.subr.mxu0 0.0
      %1394 = vmatpush1.msra.mxu0 0.0
      %1395 = vmatprep.subr.mxu0 0.0
      %1396 = vmatpush1.msra.mxu0 0.0
      %1397 = vmatprep.subr.mxu0 0.0
      %1398 = vmatpush1.msra.mxu0 0.0
      %1399 = vmatprep.subr.mxu0 0.0
      %1400 = vmatpush1.msra.mxu0 0.0
      %1401 = vmatprep.subr.mxu0 0.0
      %1402 = vmatpush1.msra.mxu0 0.0
      %1403 = vmatprep.subr.mxu0 0.0
      %1404 = vmatpush1.msra.mxu0 0.0
      %1405 = vmatprep.subr.mxu0 0.0
      %1406 = vmatpush1.msra.mxu0 0.0
      %1407 = vmatprep.subr.mxu0 0.0
      %1408 = vmatpush1.msra.mxu0 0.0
      %1409 = vmatprep.subr.mxu0 0.0
      %1410 = vmatpush1.msra.mxu0 0.0
      %1411 = vmatprep.subr.mxu0 0.0
      %1412 = vmatpush1.msra.mxu0 0.0
      %1413 = vmatprep.subr.mxu0 0.0
      %1414 = vmatpush1.msra.mxu0 0.0
      %1415 = vmatprep.subr.mxu0 0.0
      %1416 = vmatpush1.msra.mxu0 0.0
      %1417 = vmatprep.subr.mxu0 0.0
      %1418 = vmatpush1.msra.mxu0 0.0
      %1419 = vmatprep.subr.mxu0 0.0
      %1420 = vmatpush1.msra.mxu0 0.0
      %1421 = vmatprep.subr.mxu0 0.0
      %1422 = vmatpush1.msra.mxu0 0.0
      %1423 = vmatprep.subr.mxu0 0.0
      %1424 = vmatpush1.msra.mxu0 0.0
      %1425 = vmatprep.subr.mxu0 0.0
      %1426 = vmatpush1.msra.mxu0 0.0
      %1427 = vmatprep.subr.mxu0 0.0
      %1428 = vmatpush1.msra.mxu0 0.0
      %1429 = vmatprep.mubr.f32.mxu0 0.0
      %1430 = vmatmul.mubr.f32.gmra.mrb[0].mxu0 %v1363
      %v1431 = vpop.f32.mrb[0].mxu0
      %v1432 = vadd.f32 0.0, %v1431
      %v1433 = vpop.f32.mrb[0].mxu0
      %v1434 = vadd.f32 0.0, %v1433
      %1435 = vdwg.mxu0
      %1436 = vmatprep.subr.mxu0 0.0
      %1437 = vmatpush1.msra.mxu0 %v1355
      %1438 = vmatprep.subr.mxu0 0.0
      %1439 = vmatpush1.msra.mxu0 0.0
      %1440 = vmatprep.subr.mxu0 0.0
      %1441 = vmatpush1.msra.mxu0 0.0
      %1442 = vmatprep.subr.mxu0 0.0
      %1443 = vmatpush1.msra.mxu0 0.0
      %1444 = vmatprep.subr.mxu0 0.0
      %1445 = vmatpush1.msra.mxu0 0.0
      %1446 = vmatprep.subr.mxu0 0.0
      %1447 = vmatpush1.msra.mxu0 0.0
      %1448 = vmatprep.subr.mxu0 0.0
      %1449 = vmatpush1.msra.mxu0 0.0
      %1450 = vmatprep.subr.mxu0 0.0
      %1451 = vmatpush1.msra.mxu0 0.0
      %1452 = vmatprep.subr.mxu0 0.0
      %1453 = vmatpush1.msra.mxu0 0.0
      %1454 = vmatprep.subr.mxu0 0.0
      %1455 = vmatpush1.msra.mxu0 0.0
      %1456 = vmatprep.subr.mxu0 0.0
      %1457 = vmatpush1.msra.mxu0 0.0
      %1458 = vmatprep.subr.mxu0 0.0
      %1459 = vmatpush1.msra.mxu0 0.0
      %1460 = vmatprep.subr.mxu0 0.0
      %1461 = vmatpush1.msra.mxu0 0.0
      %1462 = vmatprep.subr.mxu0 0.0
      %1463 = vmatpush1.msra.mxu0 0.0
      %1464 = vmatprep.subr.mxu0 0.0
      %1465 = vmatpush1.msra.mxu0 0.0
      %1466 = vmatprep.subr.mxu0 0.0
      %1467 = vmatpush1.msra.mxu0 0.0
      %1468 = vmatprep.subr.mxu0 0.0
      %1469 = vmatpush1.msra.mxu0 0.0
      %1470 = vmatprep.subr.mxu0 0.0
      %1471 = vmatpush1.msra.mxu0 0.0
      %1472 = vmatprep.subr.mxu0 0.0
      %1473 = vmatpush1.msra.mxu0 0.0
      %1474 = vmatprep.subr.mxu0 0.0
      %1475 = vmatpush1.msra.mxu0 0.0
      %1476 = vmatprep.subr.mxu0 0.0
      %1477 = vmatpush1.msra.mxu0 0.0
      %1478 = vmatprep.subr.mxu0 0.0
      %1479 = vmatpush1.msra.mxu0 0.0
      %1480 = vmatprep.subr.mxu0 0.0
      %1481 = vmatpush1.msra.mxu0 0.0
      %1482 = vmatprep.subr.mxu0 0.0
      %1483 = vmatpush1.msra.mxu0 0.0
      %1484 = vmatprep.subr.mxu0 0.0
      %1485 = vmatpush1.msra.mxu0 0.0
      %1486 = vmatprep.subr.mxu0 0.0
      %1487 = vmatpush1.msra.mxu0 0.0
      %1488 = vmatprep.subr.mxu0 0.0
      %1489 = vmatpush1.msra.mxu0 0.0
      %1490 = vmatprep.subr.mxu0 0.0
      %1491 = vmatpush1.msra.mxu0 0.0
      %1492 = vmatprep.subr.mxu0 0.0
      %1493 = vmatpush1.msra.mxu0 0.0
      %1494 = vmatprep.subr.mxu0 0.0
      %1495 = vmatpush1.msra.mxu0 0.0
      %1496 = vmatprep.subr.mxu0 0.0
      %1497 = vmatpush1.msra.mxu0 0.0
      %1498 = vmatprep.subr.mxu0 0.0
      %1499 = vmatpush1.msra.mxu0 0.0
      %1500 = vmatprep.mubr.f32.mxu0 0.0
      %1501 = vmatmul.mubr.f32.gmra.mrb[0].mxu0 %v1363
      %v1502 = vpop.f32.mrb[0].mxu0
      %v1503 = vadd.f32 0.0, %v1502
      %v1504 = vpop.f32.mrb[0].mxu0
      %1505 = vdwg.mxu0
      %v1506 = vadd.f32 %v1345, %v1432
      %v1507 = vadd.f32 %v1346, %v1434
      %v1508 = vadd.f32 %v1347, %v1503
      %s1509 = scalar_lea.vmem %s4, 56
      %v1510 = vld [vmem:[%s1509] sm:$0xff]
      %1511 = vrot.lane.b32.xlu0 %v394, 91
      %v1512 = vpop.permute.xlu0 %1511
      %1513 = vrot.lane.b32.xlu0 %v395, 91
      %v1514 = vpop.permute.xlu0 %1513
      %1515 = vrot.lane.b32.xlu0 %v396, 91
      %v1516 = vpop.permute.xlu0 %1515
      %vm1517 = vcmask 744448
      %v1518 = vsel %vm1517, %v1512, %v1514
      %v1519 = vsel %vm1517, %v1514, %v1516
      %v1524 = vsel %vm415, %v1510, 0
      %1526 = vmatprep.subr.mxu0 %v1519
      %1527 = vmatpush1.msra.mxu0 %v1518
      %1528 = vmatprep.subr.mxu0 0.0
      %1529 = vmatpush1.msra.mxu0 0.0
      %1530 = vmatprep.subr.mxu0 0.0
      %1531 = vmatpush1.msra.mxu0 0.0
      %1532 = vmatprep.subr.mxu0 0.0
      %1533 = vmatpush1.msra.mxu0 0.0
      %1534 = vmatprep.subr.mxu0 0.0
      %1535 = vmatpush1.msra.mxu0 0.0
      %1536 = vmatprep.subr.mxu0 0.0
      %1537 = vmatpush1.msra.mxu0 0.0
      %1538 = vmatprep.subr.mxu0 0.0
      %1539 = vmatpush1.msra.mxu0 0.0
      %1540 = vmatprep.subr.mxu0 0.0
      %1541 = vmatpush1.msra.mxu0 0.0
      %1542 = vmatprep.subr.mxu0 0.0
      %1543 = vmatpush1.msra.mxu0 0.0
      %1544 = vmatprep.subr.mxu0 0.0
      %1545 = vmatpush1.msra.mxu0 0.0
      %1546 = vmatprep.subr.mxu0 0.0
      %1547 = vmatpush1.msra.mxu0 0.0
      %1548 = vmatprep.subr.mxu0 0.0
      %1549 = vmatpush1.msra.mxu0 0.0
      %1550 = vmatprep.subr.mxu0 0.0
      %1551 = vmatpush1.msra.mxu0 0.0
      %1552 = vmatprep.subr.mxu0 0.0
      %1553 = vmatpush1.msra.mxu0 0.0
      %1554 = vmatprep.subr.mxu0 0.0
      %1555 = vmatpush1.msra.mxu0 0.0
      %1556 = vmatprep.subr.mxu0 0.0
      %1557 = vmatpush1.msra.mxu0 0.0
      %1558 = vmatprep.subr.mxu0 0.0
      %1559 = vmatpush1.msra.mxu0 0.0
      %1560 = vmatprep.subr.mxu0 0.0
      %1561 = vmatpush1.msra.mxu0 0.0
      %1562 = vmatprep.subr.mxu0 0.0
      %1563 = vmatpush1.msra.mxu0 0.0
      %1564 = vmatprep.subr.mxu0 0.0
      %1565 = vmatpush1.msra.mxu0 0.0
      %1566 = vmatprep.subr.mxu0 0.0
      %1567 = vmatpush1.msra.mxu0 0.0
      %1568 = vmatprep.subr.mxu0 0.0
      %1569 = vmatpush1.msra.mxu0 0.0
      %1570 = vmatprep.subr.mxu0 0.0
      %1571 = vmatpush1.msra.mxu0 0.0
      %1572 = vmatprep.subr.mxu0 0.0
      %1573 = vmatpush1.msra.mxu0 0.0
      %1574 = vmatprep.subr.mxu0 0.0
      %1575 = vmatpush1.msra.mxu0 0.0
      %1576 = vmatprep.subr.mxu0 0.0
      %1577 = vmatpush1.msra.mxu0 0.0
      %1578 = vmatprep.subr.mxu0 0.0
      %1579 = vmatpush1.msra.mxu0 0.0
      %1580 = vmatprep.subr.mxu0 0.0
      %1581 = vmatpush1.msra.mxu0 0.0
      %1582 = vmatprep.subr.mxu0 0.0
      %1583 = vmatpush1.msra.mxu0 0.0
      %1584 = vmatprep.subr.mxu0 0.0
      %1585 = vmatpush1.msra.mxu0 0.0
      %1586 = vmatprep.subr.mxu0 0.0
      %1587 = vmatpush1.msra.mxu0 0.0
      %1588 = vmatprep.subr.mxu0 0.0
      %1589 = vmatpush1.msra.mxu0 0.0
      %1590 = vmatprep.mubr.f32.mxu0 0.0
      %1591 = vmatmul.mubr.f32.gmra.mrb[0].mxu0 %v1524
      %v1592 = vpop.f32.mrb[0].mxu0
      %v1593 = vadd.f32 0.0, %v1592
      %v1594 = vpop.f32.mrb[0].mxu0
      %v1595 = vadd.f32 0.0, %v1594
      %1596 = vdwg.mxu0
      %1597 = vmatprep.subr.mxu0 0.0
      %1598 = vmatpush1.msra.mxu0 %v1516
      %1599 = vmatprep.subr.mxu0 0.0
      %1600 = vmatpush1.msra.mxu0 0.0
      %1601 = vmatprep.subr.mxu0 0.0
      %1602 = vmatpush1.msra.mxu0 0.0
      %1603 = vmatprep.subr.mxu0 0.0
      %1604 = vmatpush1.msra.mxu0 0.0
      %1605 = vmatprep.subr.mxu0 0.0
      %1606 = vmatpush1.msra.mxu0 0.0
      %1607 = vmatprep.subr.mxu0 0.0
      %1608 = vmatpush1.msra.mxu0 0.0
      %1609 = vmatprep.subr.mxu0 0.0
      %1610 = vmatpush1.msra.mxu0 0.0
      %1611 = vmatprep.subr.mxu0 0.0
      %1612 = vmatpush1.msra.mxu0 0.0
      %1613 = vmatprep.subr.mxu0 0.0
      %1614 = vmatpush1.msra.mxu0 0.0
      %1615 = vmatprep.subr.mxu0 0.0
      %1616 = vmatpush1.msra.mxu0 0.0
      %1617 = vmatprep.subr.mxu0 0.0
      %1618 = vmatpush1.msra.mxu0 0.0
      %1619 = vmatprep.subr.mxu0 0.0
      %1620 = vmatpush1.msra.mxu0 0.0
      %1621 = vmatprep.subr.mxu0 0.0
      %1622 = vmatpush1.msra.mxu0 0.0
      %1623 = vmatprep.subr.mxu0 0.0
      %1624 = vmatpush1.msra.mxu0 0.0
      %1625 = vmatprep.subr.mxu0 0.0
      %1626 = vmatpush1.msra.mxu0 0.0
      %1627 = vmatprep.subr.mxu0 0.0
      %1628 = vmatpush1.msra.mxu0 0.0
      %1629 = vmatprep.subr.mxu0 0.0
      %1630 = vmatpush1.msra.mxu0 0.0
      %1631 = vmatprep.subr.mxu0 0.0
      %1632 = vmatpush1.msra.mxu0 0.0
      %1633 = vmatprep.subr.mxu0 0.0
      %1634 = vmatpush1.msra.mxu0 0.0
      %1635 = vmatprep.subr.mxu0 0.0
      %1636 = vmatpush1.msra.mxu0 0.0
      %1637 = vmatprep.subr.mxu0 0.0
      %1638 = vmatpush1.msra.mxu0 0.0
      %1639 = vmatprep.subr.mxu0 0.0
      %1640 = vmatpush1.msra.mxu0 0.0
      %1641 = vmatprep.subr.mxu0 0.0
      %1642 = vmatpush1.msra.mxu0 0.0
      %1643 = vmatprep.subr.mxu0 0.0
      %1644 = vmatpush1.msra.mxu0 0.0
      %1645 = vmatprep.subr.mxu0 0.0
      %1646 = vmatpush1.msra.mxu0 0.0
      %1647 = vmatprep.subr.mxu0 0.0
      %1648 = vmatpush1.msra.mxu0 0.0
      %1649 = vmatprep.subr.mxu0 0.0
      %1650 = vmatpush1.msra.mxu0 0.0
      %1651 = vmatprep.subr.mxu0 0.0
      %1652 = vmatpush1.msra.mxu0 0.0
      %1653 = vmatprep.subr.mxu0 0.0
      %1654 = vmatpush1.msra.mxu0 0.0
      %1655 = vmatprep.subr.mxu0 0.0
      %1656 = vmatpush1.msra.mxu0 0.0
      %1657 = vmatprep.subr.mxu0 0.0
      %1658 = vmatpush1.msra.mxu0 0.0
      %1659 = vmatprep.subr.mxu0 0.0
      %1660 = vmatpush1.msra.mxu0 0.0
      %1661 = vmatprep.mubr.f32.mxu0 0.0
      %1662 = vmatmul.mubr.f32.gmra.mrb[0].mxu0 %v1524
      %v1663 = vpop.f32.mrb[0].mxu0
      %v1664 = vadd.f32 0.0, %v1663
      %v1665 = vpop.f32.mrb[0].mxu0
      %1666 = vdwg.mxu0
      %v1667 = vadd.f32 %v1506, %v1593
      %v1668 = vadd.f32 %v1507, %v1595
      %v1669 = vadd.f32 %v1508, %v1664
      %s1670 = scalar_lea.vmem %s4, 64
      %v1671 = vld [vmem:[%s1670] sm:$0xff]
      %1672 = vrot.lane.b32.xlu0 %v394, 90
      %v1673 = vpop.permute.xlu0 %1672
      %1674 = vrot.lane.b32.xlu0 %v395, 90
      %v1675 = vpop.permute.xlu0 %1674
      %1676 = vrot.lane.b32.xlu0 %v396, 90
      %v1677 = vpop.permute.xlu0 %1676
      %vm1678 = vcmask 736256
      %v1679 = vsel %vm1678, %v1673, %v1675
      %v1680 = vsel %vm1678, %v1675, %v1677
      %v1685 = vsel %vm415, %v1671, 0
      %1687 = vmatprep.subr.mxu0 %v1680
      %1688 = vmatpush1.msra.mxu0 %v1679
      %1689 = vmatprep.subr.mxu0 0.0
      %1690 = vmatpush1.msra.mxu0 0.0
      %1691 = vmatprep.subr.mxu0 0.0
      %1692 = vmatpush1.msra.mxu0 0.0
      %1693 = vmatprep.subr.mxu0 0.0
      %1694 = vmatpush1.msra.mxu0 0.0
      %1695 = vmatprep.subr.mxu0 0.0
      %1696 = vmatpush1.msra.mxu0 0.0
      %1697 = vmatprep.subr.mxu0 0.0
      %1698 = vmatpush1.msra.mxu0 0.0
      %1699 = vmatprep.subr.mxu0 0.0
      %1700 = vmatpush1.msra.mxu0 0.0
      %1701 = vmatprep.subr.mxu0 0.0
      %1702 = vmatpush1.msra.mxu0 0.0
      %1703 = vmatprep.subr.mxu0 0.0
      %1704 = vmatpush1.msra.mxu0 0.0
      %1705 = vmatprep.subr.mxu0 0.0
      %1706 = vmatpush1.msra.mxu0 0.0
      %1707 = vmatprep.subr.mxu0 0.0
      %1708 = vmatpush1.msra.mxu0 0.0
      %1709 = vmatprep.subr.mxu0 0.0
      %1710 = vmatpush1.msra.mxu0 0.0
      %1711 = vmatprep.subr.mxu0 0.0
      %1712 = vmatpush1.msra.mxu0 0.0
      %1713 = vmatprep.subr.mxu0 0.0
      %1714 = vmatpush1.msra.mxu0 0.0
      %1715 = vmatprep.subr.mxu0 0.0
      %1716 = vmatpush1.msra.mxu0 0.0
      %1717 = vmatprep.subr.mxu0 0.0
      %1718 = vmatpush1.msra.mxu0 0.0
      %1719 = vmatprep.subr.mxu0 0.0
      %1720 = vmatpush1.msra.mxu0 0.0
      %1721 = vmatprep.subr.mxu0 0.0
      %1722 = vmatpush1.msra.mxu0 0.0
      %1723 = vmatprep.subr.mxu0 0.0
      %1724 = vmatpush1.msra.mxu0 0.0
      %1725 = vmatprep.subr.mxu0 0.0
      %1726 = vmatpush1.msra.mxu0 0.0
      %1727 = vmatprep.subr.mxu0 0.0
      %1728 = vmatpush1.msra.mxu0 0.0
      %1729 = vmatprep.subr.mxu0 0.0
      %1730 = vmatpush1.msra.mxu0 0.0
      %1731 = vmatprep.subr.mxu0 0.0
      %1732 = vmatpush1.msra.mxu0 0.0
      %1733 = vmatprep.subr.mxu0 0.0
      %1734 = vmatpush1.msra.mxu0 0.0
      %1735 = vmatprep.subr.mxu0 0.0
      %1736 = vmatpush1.msra.mxu0 0.0
      %1737 = vmatprep.subr.mxu0 0.0
      %1738 = vmatpush1.msra.mxu0 0.0
      %1739 = vmatprep.subr.mxu0 0.0
      %1740 = vmatpush1.msra.mxu0 0.0
      %1741 = vmatprep.subr.mxu0 0.0
      %1742 = vmatpush1.msra.mxu0 0.0
      %1743 = vmatprep.subr.mxu0 0.0
      %1744 = vmatpush1.msra.mxu0 0.0
      %1745 = vmatprep.subr.mxu0 0.0
      %1746 = vmatpush1.msra.mxu0 0.0
      %1747 = vmatprep.subr.mxu0 0.0
      %1748 = vmatpush1.msra.mxu0 0.0
      %1749 = vmatprep.subr.mxu0 0.0
      %1750 = vmatpush1.msra.mxu0 0.0
      %1751 = vmatprep.mubr.f32.mxu0 0.0
      %1752 = vmatmul.mubr.f32.gmra.mrb[0].mxu0 %v1685
      %v1753 = vpop.f32.mrb[0].mxu0
      %v1754 = vadd.f32 0.0, %v1753
      %v1755 = vpop.f32.mrb[0].mxu0
      %v1756 = vadd.f32 0.0, %v1755
      %1757 = vdwg.mxu0
      %1758 = vmatprep.subr.mxu0 0.0
      %1759 = vmatpush1.msra.mxu0 %v1677
      %1760 = vmatprep.subr.mxu0 0.0
      %1761 = vmatpush1.msra.mxu0 0.0
      %1762 = vmatprep.subr.mxu0 0.0
      %1763 = vmatpush1.msra.mxu0 0.0
      %1764 = vmatprep.subr.mxu0 0.0
      %1765 = vmatpush1.msra.mxu0 0.0
      %1766 = vmatprep.subr.mxu0 0.0
      %1767 = vmatpush1.msra.mxu0 0.0
      %1768 = vmatprep.subr.mxu0 0.0
      %1769 = vmatpush1.msra.mxu0 0.0
      %1770 = vmatprep.subr.mxu0 0.0
      %1771 = vmatpush1.msra.mxu0 0.0
      %1772 = vmatprep.subr.mxu0 0.0
      %1773 = vmatpush1.msra.mxu0 0.0
      %1774 = vmatprep.subr.mxu0 0.0
      %1775 = vmatpush1.msra.mxu0 0.0
      %1776 = vmatprep.subr.mxu0 0.0
      %1777 = vmatpush1.msra.mxu0 0.0
      %1778 = vmatprep.subr.mxu0 0.0
      %1779 = vmatpush1.msra.mxu0 0.0
      %1780 = vmatprep.subr.mxu0 0.0
      %1781 = vmatpush1.msra.mxu0 0.0
      %1782 = vmatprep.subr.mxu0 0.0
      %1783 = vmatpush1.msra.mxu0 0.0
      %1784 = vmatprep.subr.mxu0 0.0
      %1785 = vmatpush1.msra.mxu0 0.0
      %1786 = vmatprep.subr.mxu0 0.0
      %1787 = vmatpush1.msra.mxu0 0.0
      %1788 = vmatprep.subr.mxu0 0.0
      %1789 = vmatpush1.msra.mxu0 0.0
      %1790 = vmatprep.subr.mxu0 0.0
      %1791 = vmatpush1.msra.mxu0 0.0
      %1792 = vmatprep.subr.mxu0 0.0
      %1793 = vmatpush1.msra.mxu0 0.0
      %1794 = vmatprep.subr.mxu0 0.0
      %1795 = vmatpush1.msra.mxu0 0.0
      %1796 = vmatprep.subr.mxu0 0.0
      %1797 = vmatpush1.msra.mxu0 0.0
      %1798 = vmatprep.subr.mxu0 0.0
      %1799 = vmatpush1.msra.mxu0 0.0
      %1800 = vmatprep.subr.mxu0 0.0
      %1801 = vmatpush1.msra.mxu0 0.0
      %1802 = vmatprep.subr.mxu0 0.0
      %1803 = vmatpush1.msra.mxu0 0.0
      %1804 = vmatprep.subr.mxu0 0.0
      %1805 = vmatpush1.msra.mxu0 0.0
      %1806 = vmatprep.subr.mxu0 0.0
      %1807 = vmatpush1.msra.mxu0 0.0
      %1808 = vmatprep.subr.mxu0 0.0
      %1809 = vmatpush1.msra.mxu0 0.0
      %1810 = vmatprep.subr.mxu0 0.0
      %1811 = vmatpush1.msra.mxu0 0.0
      %1812 = vmatprep.subr.mxu0 0.0
      %1813 = vmatpush1.msra.mxu0 0.0
      %1814 = vmatprep.subr.mxu0 0.0
      %1815 = vmatpush1.msra.mxu0 0.0
      %1816 = vmatprep.subr.mxu0 0.0
      %1817 = vmatpush1.msra.mxu0 0.0
      %1818 = vmatprep.subr.mxu0 0.0
      %1819 = vmatpush1.msra.mxu0 0.0
      %1820 = vmatprep.subr.mxu0 0.0
      %1821 = vmatpush1.msra.mxu0 0.0
      %1822 = vmatprep.mubr.f32.mxu0 0.0
      %1823 = vmatmul.mubr.f32.gmra.mrb[0].mxu0 %v1685
      %v1824 = vpop.f32.mrb[0].mxu0
      %v1825 = vadd.f32 0.0, %v1824
      %v1826 = vpop.f32.mrb[0].mxu0
      %1827 = vdwg.mxu0
      %v1828 = vadd.f32 %v1667, %v1754
      %v1829 = vadd.f32 %v1668, %v1756
      %v1830 = vadd.f32 %v1669, %v1825
      %v1831 = vld [vmem:[%s5] sm:$0xff]
      %1833 = vset.pattern.permute.xlu0 0
      %1834 = vperm.xlu0 %1833, %v1831
      %v1835 = vpop.permute.xlu0 %1834
      %v1837 = vadd.f32 %v1828, %v1835
      %v1838 = vadd.f32 %v1829, %v1835
      %v1839 = vadd.f32 %v1830, %v1835
      %v1840 = vld [vmem:[%s347] sm:$0xff]
      %v1841 = vld [vmem:[%s347 + $0x8] sm:$0xff]
      %v1842 = vld [vmem:[%s347 + $0x10] sm:$0xff]
      %v1843 = vld [vmem:[%s7] sm:$0xff]
      %1845 = vset.pattern.permute.xlu0 0
      %1846 = vperm.xlu0 %1845, %v1843
      %v1847 = vpop.permute.xlu0 %1846
      %v1849 = vmul.f32 %v1840, %v1847
      %v1850 = vmul.f32 %v1841, %v1847
      %v1851 = vmul.f32 %v1842, %v1847
      %v1852 = vadd.f32 %v1837, %v1849
      %v1853 = vadd.f32 %v1838, %v1850
      %v1854 = vadd.f32 %v1839, %v1851
      %v1855 = vld [vmem:[%s8] sm:$0xff]
      %1857 = vset.pattern.permute.xlu0 0
      %1858 = vperm.xlu0 %1857, %v1855
      %v1859 = vpop.permute.xlu0 %1858
      %v1861 = vadd.f32 %v1852, %v1859
      %v1862 = vadd.f32 %v1853, %v1859
      %v1863 = vadd.f32 %v1854, %v1859
      %1864 = vst [vmem:[%s352] sm:$0xff] %v1861
      %1865 = vst [vmem:[%s352 + $0x8] sm:$0xff] %v1862
      %vm1866 = vcmask 261120
      %1867 = vst.msk [vmem:[%s352 + $0x10] sm:$0xff] %vm1866, %v1863
      %p1868 = scmp.lt.s32.totalorder %s20, 1
      %s1869 = scalar_select %p1868, %s20, 1
      %s1870 = smul.addr %s1869, 3
      %s1871 = smul.addr %s1870, 8
      %s1872 = scalar_lea.vmem %s9, %s1871
      // Predicated region
      $region57: #{residual_conv_forward.5} parent=55 // pred_check
        %p1873 = pneg %p237
      $region58: #{residual_conv_forward.5} parent=55 // pred_check_branch
        %1875 = sbr.rel (%p1873) target = $region60
      $region59: #{residual_conv_forward.5} parent=55 // pred_region
        _
      $region60: #{residual_conv_forward.5} parent=55 // pred_fallthru
        _
    $region56: #{residual_conv_forward.5} parent=5 // pred_fallthru
      _
    %p1876 = scmp.le.s32.totalorder 2, %s15
    // Predicated region
    $region61: #{residual_conv_forward.5} parent=5 // pred_check
      %p1877 = pneg %p1876
    $region62: #{residual_conv_forward.5} parent=5 // pred_check_branch
      %1879 = sbr.rel (%p1877) target = $region64
    $region63: #{residual_conv_forward.5} parent=5 // pred_region
      %s1880 = ssub.s32 %s15, 2
      // Predicated region
      $region65: #{residual_conv_forward.5} parent=63 // pred_check
        %p1881 = pneg %p243
      $region66: #{residual_conv_forward.5} parent=63 // pred_check_branch
        %1883 = sbr.rel (%p1881) target = $region68
      $region67: #{residual_conv_forward.5} parent=63 // pred_region
        %p1884 = scmp.lt.s32.totalorder %s21, 1
        %s1885 = scalar_select %p1884, %s21, 1
        %s1886 = smul.addr %s1885, 3
        %s1887 = smul.addr %s1886, 8
        %s1888 = scalar_lea.vmem %s9, %s1887
      $region68: #{residual_conv_forward.5} parent=63 // pred_fallthru
        _
    $region64: #{residual_conv_forward.5} parent=5 // pred_fallthru
      _
  $region6: #{residual_conv_forward.5} parent=0 // loop_footer
    %s19 = sadd.s32 1, %s15
  $region7: #{residual_conv_forward.5} parent=0 // loop_footer_branch
    %14 = sbr.rel target = $region3
  $region8: #{residual_conv_forward.5} parent=0 // loop_exit
    _

// kernel: residual_conv_forward.4
$region0: #{residual_conv_forward.4}
  #allocation0 [shape = 'u32[]', space=smem, size = 0x4, offset = 0x4, fixed_abs, tag = 'smem constant byte address 0x4 - core index']
  #allocation1 [shape = 'u32[144,128]{1,0:T(1,128)}', space=vmem, size = 0x12000, scoped, tag = 'internal scratch']
  %s0 = inlined_call_operand.vmem [shape: f32[2,4,342], index: 0, kind: input, shape index: {}]
  %s1 = inlined_call_operand.vmem [shape: f32[1,342], index: 1, kind: input, shape index: {}]
  %s2 = inlined_call_operand.vmem [shape: f32[1,288], index: 2, kind: input, shape index: {}]
  %s3 = inlined_call_operand.vmem [shape: f32[4,1], index: 3, kind: input, shape index: {}]
  %s4 = inlined_call_operand.vmem [shape: f32[4,1], index: 4, kind: input, shape index: {}]
  %s5 = inlined_call_operand.vmem [shape: f32[9,8,4], index: 5, kind: input, shape index: {}]
  %s6 = inlined_call_operand.vmem [shape: f32[8,1], index: 6, kind: input, shape index: {}]
  %s7 = inlined_call_operand.vmem [shape: f32[9,8,4], index: 7, kind: input, shape index: {}]
  %s8 = inlined_call_operand.vmem [shape: f32[8,1], index: 8, kind: input, shape index: {}]
  %s9 = inlined_call_operand.vmem [shape: f32[2,8,288], index: 9, kind: output, shape index: {0}]
  %s10 = inlined_call_operand.vmem [shape: f32[2,8,288], index: 10, kind: output, shape index: {1}]
  %s11 = inlined_call_operand.vmem [shape: f32[2,8,4], index: 11, kind: output, shape index: {2}]
  %12 = xla_tuple %s9, %s10, %s11
  %s13 = sld [smem:[#allocation0]]
  $region85: #{residual_conv_forward.4} parent=0
    _
  %s15 = ssub.s32 1, %s13
  %s16 = scalar_select 0, %s15, %s13
  loop: start=0, step=1, limit=4
  $region2: #{residual_conv_forward.4} parent=0 // loop_pre_header
    _
  $region3: #{residual_conv_forward.4} parent=0 // loop_header
    %s18 = sphi 0, %s22
    %p19 = scmp.ge.s32.totalorder %s18, 4
    %s28 = sphi 0, %s30
    %s31 = sphi 0, %s28
    %s32 = sphi 0, %s31
    %s48 = sphi 0, %s32
    %s52 = sphi 0, %s52
    %s54 = sphi 0, %s52
    %s55 = sphi 0, %s54
    %s69 = sphi 0, %s55
    %s73 = sphi 0, %s73
    %s75 = sphi 0, %s73
    %s76 = sphi 0, %s75
    %s90 = sphi 0, %s76
    %s94 = sphi 0, %s94
    %s96 = sphi 0, %s94
    %s97 = sphi 0, %s96
    %s111 = sphi 0, %s97
    %s115 = sphi 0, %s115
    %s117 = sphi 0, %s115
    %s118 = sphi 0, %s117
    %s132 = sphi 0, %s118
    %s136 = sphi 0, %s136
    %s138 = sphi 0, %s136
    %s139 = sphi 0, %s138
    %s153 = sphi 0, %s139
    %s157 = sphi 0, %s157
    %s159 = sphi 0, %s157
    %s160 = sphi 0, %s159
    %s174 = sphi 0, %s160
    %s178 = sphi 0, %s178
    %s180 = sphi 0, %s178
    %s181 = sphi 0, %s180
    %s195 = sphi 0, %s181
    %s199 = sphi 0, %s199
    %s201 = sphi 0, %s199
    %s202 = sphi 0, %s201
    %s216 = sphi 0, %s202
    %s222 = sphi 0, %s224
    %s225 = sphi 0, %s222
    %s226 = sphi 0, %s225
    %s242 = sphi 0, %s226
    %s248 = sphi 0, %s250
    %s251 = sphi 0, %s248
    %s252 = sphi 0, %s251
    %s268 = sphi 0, %s252
    %s274 = sphi 0, %s276
    %s277 = sphi 0, %s274
    %s278 = sphi 0, %s277
    %s294 = sphi 0, %s278
  $region4: #{residual_conv_forward.4} parent=0 // loop_header_branch
    %21 = sbr.rel (%p19) target = $region8
  $region5: #{residual_conv_forward.4} parent=0 // loop_body
    %s23 = ssub.s32 %s18, 1
    %s24 = ssub.s32 %s18, 2
    %s25 = sadd.s32 %s18, 1
    %s26 = ssub.s32 %s18, %s25
    %p27 = scmp.eq.s32.totalorder %s26, 0
    %s29 = sadd.s32 %s28, 1
    %s30 = scalar_select %p27, %s28, %s29
    %p33 = pneg %p27
    %p34 = scmp.eq.s32.totalorder %s18, 1
    %p35 = por %p33, %p34
    %p36 = scmp.ne.s32.totalorder %s28, %s31
    %p37 = scmp.eq.s32.totalorder %s18, 0
    %p38 = por %p36, %p37
    %p39 = scmp.ne.s32.totalorder %s28, %s31
    %p40 = scmp.eq.s32.totalorder %s23, 1
    %p41 = por %p39, %p40
    %p42 = scmp.ne.s32.totalorder %s31, %s32
    %p43 = scmp.eq.s32.totalorder %s23, 0
    %p44 = por %p42, %p43
    %p45 = scmp.ne.s32.totalorder %s31, %s32
    %p46 = scmp.eq.s32.totalorder %s24, 1
    %p47 = por %p45, %p46
    %p49 = scmp.ne.s32.totalorder %s32, %s48
    %p50 = scmp.eq.s32.totalorder %s24, 0
    %p51 = por %p49, %p50
    %s53 = sadd.s32 %s52, 1
    %p56 = scmp.eq.s32.totalorder %s18, 1
    %p57 = scmp.ne.s32.totalorder %s52, %s54
    %p58 = scmp.eq.s32.totalorder %s18, 0
    %p59 = por %p57, %p58
    %p60 = scmp.ne.s32.totalorder %s52, %s54
    %p61 = scmp.eq.s32.totalorder %s23, 1
    %p62 = por %p60, %p61
    %p63 = scmp.ne.s32.totalorder %s54, %s55
    %p64 = scmp.eq.s32.totalorder %s23, 0
    %p65 = por %p63, %p64
    %p66 = scmp.ne.s32.totalorder %s54, %s55
    %p67 = scmp.eq.s32.totalorder %s24, 1
    %p68 = por %p66, %p67
    %p70 = scmp.ne.s32.totalorder %s55, %s69
    %p71 = scmp.eq.s32.totalorder %s24, 0
    %p72 = por %p70, %p71
    %s74 = sadd.s32 %s73, 1
    %p77 = scmp.eq.s32.totalorder %s18, 1
    %p78 = scmp.ne.s32.totalorder %s73, %s75
    %p79 = scmp.eq.s32.totalorder %s18, 0
    %p80 = por %p78, %p79
    %p81 = scmp.ne.s32.totalorder %s73, %s75
    %p82 = scmp.eq.s32.totalorder %s23, 1
    %p83 = por %p81, %p82
    %p84 = scmp.ne.s32.totalorder %s75, %s76
    %p85 = scmp.eq.s32.totalorder %s23, 0
    %p86 = por %p84, %p85
    %p87 = scmp.ne.s32.totalorder %s75, %s76
    %p88 = scmp.eq.s32.totalorder %s24, 1
    %p89 = por %p87, %p88
    %p91 = scmp.ne.s32.totalorder %s76, %s90
    %p92 = scmp.eq.s32.totalorder %s24, 0
    %p93 = por %p91, %p92
    %s95 = sadd.s32 %s94, 1
    %p98 = scmp.eq.s32.totalorder %s18, 1
    %p99 = scmp.ne.s32.totalorder %s94, %s96
    %p100 = scmp.eq.s32.totalorder %s18, 0
    %p101 = por %p99, %p100
    %p102 = scmp.ne.s32.totalorder %s94, %s96
    %p103 = scmp.eq.s32.totalorder %s23, 1
    %p104 = por %p102, %p103
    %p105 = scmp.ne.s32.totalorder %s96, %s97
    %p106 = scmp.eq.s32.totalorder %s23, 0
    %p107 = por %p105, %p106
    %p108 = scmp.ne.s32.totalorder %s96, %s97
    %p109 = scmp.eq.s32.totalorder %s24, 1
    %p110 = por %p108, %p109
    %p112 = scmp.ne.s32.totalorder %s97, %s111
    %p113 = scmp.eq.s32.totalorder %s24, 0
    %p114 = por %p112, %p113
    %s116 = sadd.s32 %s115, 1
    %p119 = scmp.eq.s32.totalorder %s18, 1
    %p120 = scmp.ne.s32.totalorder %s115, %s117
    %p121 = scmp.eq.s32.totalorder %s18, 0
    %p122 = por %p120, %p121
    %p123 = scmp.ne.s32.totalorder %s115, %s117
    %p124 = scmp.eq.s32.totalorder %s23, 1
    %p125 = por %p123, %p124
    %p126 = scmp.ne.s32.totalorder %s117, %s118
    %p127 = scmp.eq.s32.totalorder %s23, 0
    %p128 = por %p126, %p127
    %p129 = scmp.ne.s32.totalorder %s117, %s118
    %p130 = scmp.eq.s32.totalorder %s24, 1
    %p131 = por %p129, %p130
    %p133 = scmp.ne.s32.totalorder %s118, %s132
    %p134 = scmp.eq.s32.totalorder %s24, 0
    %p135 = por %p133, %p134
    %s137 = sadd.s32 %s136, 1
    %p140 = scmp.eq.s32.totalorder %s18, 1
    %p141 = scmp.ne.s32.totalorder %s136, %s138
    %p142 = scmp.eq.s32.totalorder %s18, 0
    %p143 = por %p141, %p142
    %p144 = scmp.ne.s32.totalorder %s136, %s138
    %p145 = scmp.eq.s32.totalorder %s23, 1
    %p146 = por %p144, %p145
    %p147 = scmp.ne.s32.totalorder %s138, %s139
    %p148 = scmp.eq.s32.totalorder %s23, 0
    %p149 = por %p147, %p148
    %p150 = scmp.ne.s32.totalorder %s138, %s139
    %p151 = scmp.eq.s32.totalorder %s24, 1
    %p152 = por %p150, %p151
    %p154 = scmp.ne.s32.totalorder %s139, %s153
    %p155 = scmp.eq.s32.totalorder %s24, 0
    %p156 = por %p154, %p155
    %s158 = sadd.s32 %s157, 1
    %p161 = scmp.eq.s32.totalorder %s18, 1
    %p162 = scmp.ne.s32.totalorder %s157, %s159
    %p163 = scmp.eq.s32.totalorder %s18, 0
    %p164 = por %p162, %p163
    %p165 = scmp.ne.s32.totalorder %s157, %s159
    %p166 = scmp.eq.s32.totalorder %s23, 1
    %p167 = por %p165, %p166
    %p168 = scmp.ne.s32.totalorder %s159, %s160
    %p169 = scmp.eq.s32.totalorder %s23, 0
    %p170 = por %p168, %p169
    %p171 = scmp.ne.s32.totalorder %s159, %s160
    %p172 = scmp.eq.s32.totalorder %s24, 1
    %p173 = por %p171, %p172
    %p175 = scmp.ne.s32.totalorder %s160, %s174
    %p176 = scmp.eq.s32.totalorder %s24, 0
    %p177 = por %p175, %p176
    %s179 = sadd.s32 %s178, 1
    %p182 = scmp.eq.s32.totalorder %s18, 1
    %p183 = scmp.ne.s32.totalorder %s178, %s180
    %p184 = scmp.eq.s32.totalorder %s18, 0
    %p185 = por %p183, %p184
    %p186 = scmp.ne.s32.totalorder %s178, %s180
    %p187 = scmp.eq.s32.totalorder %s23, 1
    %p188 = por %p186, %p187
    %p189 = scmp.ne.s32.totalorder %s180, %s181
    %p190 = scmp.eq.s32.totalorder %s23, 0
    %p191 = por %p189, %p190
    %p192 = scmp.ne.s32.totalorder %s180, %s181
    %p193 = scmp.eq.s32.totalorder %s24, 1
    %p194 = por %p192, %p193
    %p196 = scmp.ne.s32.totalorder %s181, %s195
    %p197 = scmp.eq.s32.totalorder %s24, 0
    %p198 = por %p196, %p197
    %s200 = sadd.s32 %s199, 1
    %p203 = scmp.eq.s32.totalorder %s18, 1
    %p204 = scmp.ne.s32.totalorder %s199, %s201
    %p205 = scmp.eq.s32.totalorder %s18, 0
    %p206 = por %p204, %p205
    %p207 = scmp.ne.s32.totalorder %s199, %s201
    %p208 = scmp.eq.s32.totalorder %s23, 1
    %p209 = por %p207, %p208
    %p210 = scmp.ne.s32.totalorder %s201, %s202
    %p211 = scmp.eq.s32.totalorder %s23, 0
    %p212 = por %p210, %p211
    %p213 = scmp.ne.s32.totalorder %s201, %s202
    %p214 = scmp.eq.s32.totalorder %s24, 1
    %p215 = por %p213, %p214
    %p217 = scmp.ne.s32.totalorder %s202, %s216
    %p218 = scmp.eq.s32.totalorder %s24, 0
    %p219 = por %p217, %p218
    %s220 = ssub.s32 %s18, %s25
    %p221 = scmp.eq.s32.totalorder %s220, 0
    %s223 = sadd.s32 %s222, 1
    %s224 = scalar_select %p221, %s222, %s223
    %p227 = pneg %p221
    %p228 = scmp.eq.s32.totalorder %s18, 1
    %p229 = por %p227, %p228
    %p230 = scmp.ne.s32.totalorder %s222, %s225
    %p231 = scmp.eq.s32.totalorder %s18, 0
    %p232 = por %p230, %p231
    %p233 = scmp.ne.s32.totalorder %s222, %s225
    %p234 = scmp.eq.s32.totalorder %s23, 1
    %p235 = por %p233, %p234
    %p236 = scmp.ne.s32.totalorder %s225, %s226
    %p237 = scmp.eq.s32.totalorder %s23, 0
    %p238 = por %p236, %p237
    %p239 = scmp.ne.s32.totalorder %s225, %s226
    %p240 = scmp.eq.s32.totalorder %s24, 1
    %p241 = por %p239, %p240
    %p243 = scmp.ne.s32.totalorder %s226, %s242
    %p244 = scmp.eq.s32.totalorder %s24, 0
    %p245 = por %p243, %p244
    %s246 = ssub.s32 %s18, %s25
    %p247 = scmp.eq.s32.totalorder %s246, 0
    %s249 = sadd.s32 %s248, 1
    %s250 = scalar_select %p247, %s248, %s249
    %p253 = pneg %p247
    %p254 = scmp.eq.s32.totalorder %s18, 1
    %p255 = por %p253, %p254
    %p256 = scmp.ne.s32.totalorder %s248, %s251
    %p257 = scmp.eq.s32.totalorder %s18, 0
    %p258 = por %p256, %p257
    %p259 = scmp.ne.s32.totalorder %s248, %s251
    %p260 = scmp.eq.s32.totalorder %s23, 1
    %p261 = por %p259, %p260
    %p262 = scmp.ne.s32.totalorder %s251, %s252
    %p263 = scmp.eq.s32.totalorder %s23, 0
    %p264 = por %p262, %p263
    %p265 = scmp.ne.s32.totalorder %s251, %s252
    %p266 = scmp.eq.s32.totalorder %s24, 1
    %p267 = por %p265, %p266
    %p269 = scmp.ne.s32.totalorder %s252, %s268
    %p270 = scmp.eq.s32.totalorder %s24, 0
    %p271 = por %p269, %p270
    %s272 = ssub.s32 %s18, %s25
    %p273 = scmp.eq.s32.totalorder %s272, 0
    %s275 = sadd.s32 %s274, 1
    %s276 = scalar_select %p273, %s274, %s275
    %p279 = pneg %p273
    %p280 = scmp.eq.s32.totalorder %s18, 1
    %p281 = por %p279, %p280
    %p282 = scmp.ne.s32.totalorder %s274, %s277
    %p283 = scmp.eq.s32.totalorder %s18, 0
    %p284 = por %p282, %p283
    %p285 = scmp.ne.s32.totalorder %s274, %s277
    %p286 = scmp.eq.s32.totalorder %s23, 1
    %p287 = por %p285, %p286
    %p288 = scmp.ne.s32.totalorder %s277, %s278
    %p289 = scmp.eq.s32.totalorder %s23, 0
    %p290 = por %p288, %p289
    %p291 = scmp.ne.s32.totalorder %s277, %s278
    %p292 = scmp.eq.s32.totalorder %s24, 1
    %p293 = por %p291, %p292
    %p295 = scmp.ne.s32.totalorder %s278, %s294
    %p296 = scmp.eq.s32.totalorder %s24, 0
    %p297 = por %p295, %p296
    %p298 = scmp.le.s32.totalorder 1, %s18
    %p299 = scmp.lt.s32.totalorder %s18, 3
    %p300 = pnand %p298, %p299
    %p301 = pneg %p300
    // Predicated region
    $region9: #{residual_conv_forward.4} parent=5 // pred_check
      _
    $region10: #{residual_conv_forward.4} parent=5 // pred_check_branch
      %303 = sbr.rel (%p300) target = $region12
    $region11: #{residual_conv_forward.4} parent=5 // pred_region
      %s304 = ssub.s32 %s18, 1
      // Predicated region
      $region13: #{residual_conv_forward.4} parent=11 // pred_check
        %p305 = pneg %p65
      $region14: #{residual_conv_forward.4} parent=11 // pred_check_branch
        %307 = sbr.rel (%p305) target = $region16
      $region15: #{residual_conv_forward.4} parent=11 // pred_region
        _
      $region16: #{residual_conv_forward.4} parent=11 // pred_fallthru
        _
      // Predicated region
      $region17: #{residual_conv_forward.4} parent=11 // pred_check
        %p308 = pneg %p86
      $region18: #{residual_conv_forward.4} parent=11 // pred_check_branch
        %310 = sbr.rel (%p308) target = $region20
      $region19: #{residual_conv_forward.4} parent=11 // pred_region
        _
      $region20: #{residual_conv_forward.4} parent=11 // pred_fallthru
        _
      // Predicated region
      $region21: #{residual_conv_forward.4} parent=11 // pred_check
        %p311 = pneg %p107
      $region22: #{residual_conv_forward.4} parent=11 // pred_check_branch
        %313 = sbr.rel (%p311) target = $region24
      $region23: #{residual_conv_forward.4} parent=11 // pred_region
        _
      $region24: #{residual_conv_forward.4} parent=11 // pred_fallthru
        _
      // Predicated region
      $region25: #{residual_conv_forward.4} parent=11 // pred_check
        %p314 = pneg %p128
      $region26: #{residual_conv_forward.4} parent=11 // pred_check_branch
        %316 = sbr.rel (%p314) target = $region28
      $region27: #{residual_conv_forward.4} parent=11 // pred_region
        _
      $region28: #{residual_conv_forward.4} parent=11 // pred_fallthru
        _
      // Predicated region
      $region29: #{residual_conv_forward.4} parent=11 // pred_check
        %p317 = pneg %p149
      $region30: #{residual_conv_forward.4} parent=11 // pred_check_branch
        %319 = sbr.rel (%p317) target = $region32
      $region31: #{residual_conv_forward.4} parent=11 // pred_region
        _
      $region32: #{residual_conv_forward.4} parent=11 // pred_fallthru
        _
      // Predicated region
      $region33: #{residual_conv_forward.4} parent=11 // pred_check
        %p320 = pneg %p170
      $region34: #{residual_conv_forward.4} parent=11 // pred_check_branch
        %322 = sbr.rel (%p320) target = $region36
      $region35: #{residual_conv_forward.4} parent=11 // pred_region
        _
      $region36: #{residual_conv_forward.4} parent=11 // pred_fallthru
        _
      // Predicated region
      $region37: #{residual_conv_forward.4} parent=11 // pred_check
        %p323 = pneg %p191
      $region38: #{residual_conv_forward.4} parent=11 // pred_check_branch
        %325 = sbr.rel (%p323) target = $region40
      $region39: #{residual_conv_forward.4} parent=11 // pred_region
        _
      $region40: #{residual_conv_forward.4} parent=11 // pred_fallthru
        _
      // Predicated region
      $region41: #{residual_conv_forward.4} parent=11 // pred_check
        %p326 = pneg %p212
      $region42: #{residual_conv_forward.4} parent=11 // pred_check_branch
        %328 = sbr.rel (%p326) target = $region44
      $region43: #{residual_conv_forward.4} parent=11 // pred_region
        _
      $region44: #{residual_conv_forward.4} parent=11 // pred_fallthru
        _
    $region12: #{residual_conv_forward.4} parent=5 // pred_fallthru
      _
    %p329 = scmp.lt.s32.totalorder %s18, 2
    // Predicated region
    $region45: #{residual_conv_forward.4} parent=5 // pred_check
      %p330 = pneg %p329
    $region46: #{residual_conv_forward.4} parent=5 // pred_check_branch
      %332 = sbr.rel (%p330) target = $region48
    $region47: #{residual_conv_forward.4} parent=5 // pred_region
      // Predicated region
      $region49: #{residual_conv_forward.4} parent=47 // pred_check
        %p333 = pneg %p38
      $region50: #{residual_conv_forward.4} parent=47 // pred_check_branch
        %335 = sbr.rel (%p333) target = $region52
      $region51: #{residual_conv_forward.4} parent=47 // pred_region
        %p336 = scmp.lt.s32.totalorder %s18, 1
        %s337 = scalar_select %p336, %s18, 1
        %s338 = smul.addr %s337, 3
        %s339 = smul.addr %s338, 4
        %s340 = scalar_lea.vmem %s0, %s339
      $region52: #{residual_conv_forward.4} parent=47 // pred_fallthru
        _
    $region48: #{residual_conv_forward.4} parent=5 // pred_fallthru
      _
    %p341 = scmp.le.s32.totalorder 1, %s18
    %p342 = scmp.lt.s32.totalorder %s18, 3
    %p343 = pnand %p341, %p342
    %p344 = pneg %p343
    // Predicated region
    $region53: #{residual_conv_forward.4} parent=5 // pred_check
      _
    $region54: #{residual_conv_forward.4} parent=5 // pred_check_branch
      %346 = sbr.rel (%p343) target = $region56
    $region55: #{residual_conv_forward.4} parent=5 // pred_region
      %s347 = ssub.s32 %s18, 1
      %p348 = scmp.lt.s32.totalorder %s23, 1
      %s349 = scalar_select %p348, %s23, 1
      %s350 = smul.addr %s349, 3
      %s351 = smul.addr %s350, 4
      %s352 = scalar_lea.vmem %s0, %s351
      %p353 = pneg %p44
      %p354 = pneg %p41
      %p355 = pneg %p65
      %p356 = pneg %p62
      %p357 = pneg %p86
      %p358 = pneg %p83
      %p359 = pneg %p107
      %p360 = pneg %p104
      %p361 = pneg %p128
      %p362 = pneg %p125
      %p363 = pneg %p149
      %p364 = pneg %p146
      %p365 = pneg %p170
      %p366 = pneg %p167
      %p367 = pneg %p191
      %p368 = pneg %p188
      %p369 = pneg %p212
      %p370 = pneg %p209
      %p371 = pneg %p238
      %p372 = pneg %p235
      %p373 = scmp.lt.s32.totalorder %s23, 1
      %s374 = scalar_select %p373, %s23, 1
      %s375 = smul.addr %s374, 3
      %s376 = smul.addr %s375, 8
      %s377 = scalar_lea.vmem %s9, %s376
      %p378 = pneg %p264
      %p379 = pneg %p261
      %p380 = scmp.lt.s32.totalorder %s23, 1
      %s381 = scalar_select %p380, %s23, 1
      %s382 = smul.addr %s381, 3
      %s383 = smul.addr %s382, 8
      %s384 = scalar_lea.vmem %s10, %s383
      %p385 = pneg %p290
      %p386 = pneg %p287
      %p387 = scmp.lt.s32.totalorder %s23, 1
      %s388 = scalar_select %p387, %s23, 1
      %s389 = smul.addr %s388, 8
      %s390 = scalar_lea.vmem %s11, %s389
      %p391 = scmp.lt.s32.totalorder %s23, 1
      %s392 = scalar_select %p391, %s23, 1
      %s393 = smul.addr %s392, 3
      %s394 = smul.addr %s393, 4
      %s395 = scalar_lea.vmem %s0, %s394
      %p396 = scmp.lt.s32.totalorder %s23, 1
      %s397 = scalar_select %p396, %s23, 1
      %s398 = smul.addr %s397, 3
      %s399 = smul.addr %s398, 8
      %s400 = scalar_lea.vmem %s9, %s399
      %p401 = scmp.lt.s32.totalorder %s23, 1
      %s402 = scalar_select %p401, %s23, 1
      %s403 = smul.addr %s402, 3
      %s404 = smul.addr %s403, 8
      %s405 = scalar_lea.vmem %s10, %s404
      %p406 = scmp.lt.s32.totalorder %s23, 1
      %s407 = scalar_select %p406, %s23, 1
      %s408 = smul.addr %s407, 8
      %s409 = scalar_lea.vmem %s11, %s408
      %v410 = vld [vmem:[%s395] sm:$0xff]
      %v411 = vld [vmem:[%s395 + $0x8] sm:$0xf]
      %v412 = vld [vmem:[%s3] sm:$0xf]
      %414 = vset.pattern.permute.xlu0 0
      %415 = vperm.xlu0 %414, %v412
      %v416 = vpop.permute.xlu0 %415
      %v418 = vunpack.c.l.s4 839922192
      %v419 = vunpack.c.0.s8 %v418
      %v420 = vlaneseq
      %v421 = vshrl.u32 %v420, 7
      %v422 = vsub.s32 %v419, %v421
      %v423 = vrot.slane %v416, %v422
      %v425 = vmul.f32 %v410, %v423
      %v426 = vmul.f32 %v411, %v423
      %v427 = vld [vmem:[%s4] sm:$0xf]
      %429 = vset.pattern.permute.xlu0 0
      %430 = vperm.xlu0 %429, %v427
      %v431 = vpop.permute.xlu0 %430
      %v433 = vunpack.c.l.s4 839922192
      %v434 = vunpack.c.0.s8 %v433
      %v435 = vlaneseq
      %v436 = vshrl.u32 %v435, 7
      %v437 = vsub.s32 %v434, %v436
      %v438 = vrot.slane %v431, %v437
      %v440 = vadd.f32 %v425, %v438
      %v441 = vadd.f32 %v426, %v438
      %v442 = vmax.f32 %v440, 0.0
      %v443 = vmax.f32 %v441, 0.0
      %v444 = vld [vmem:[%s1] sm:$0x7]
      %v446 = vlaneseq
      %v447 = vshrl.u32 %v446, 7
      %v448 = vsub.s32 0, %v447
      %v449 = vrot.slane %v444, %v448
      %v450 = vlaneseq
      %v451 = vshrl.u32 %v450, 7
      %v452 = vsub.s32 1, %v451
      %v453 = vrot.slane %v444, %v452
      %v454 = vlaneseq
      %v455 = vshrl.u32 %v454, 7
      %v456 = vsub.s32 2, %v455
      %v457 = vrot.slane %v444, %v456
      %v459 = vcombine.low %v449, %v453
      %v461 = vmul.f32 %v442, %v459
      %v462 = vmul.f32 %v443, %v457
      %v463 = vld [vmem:[%s5] sm:$0xff]
      %v464 = vld [vmem:[%s7] sm:$0xff]
      %s465 = scalar_lea.vmem %s5, 8
      %v466 = vld [vmem:[%s465] sm:$0xff]
      %v469 = vcombine.high %v461, %v461
      %470 = vrot.lane.b32.xlu0 %v461, 127
      %v471 = vpop.permute.xlu0 %470
      %472 = vrot.lane.b32.xlu0 %v469, 127
      %v473 = vpop.permute.xlu0 %472
      %474 = vrot.lane.b32.xlu0 %v462, 127
      %v475 = vpop.permute.xlu0 %474
      %vm476 = vcmask 1039360
      %v477 = vsel %vm476, %v471, %v473
      %v478 = vsel %vm476, %v473, %v475
      %vm479 = vcmask 31744
      %v481 = vsel %vm479, %v466, 0
      %vm483 = vcmask 1043456
      %v484 = vsel %vm483, %v477, 0
      %v486 = vsel %vm483, %v478, 0
      %v488 = vsel %vm483, %v475, 0
      %490 = vmatprep.subr.mxu0 %v486
      %491 = vmatpush1.msra.mxu0 %v484
      %492 = vmatprep.subr.mxu0 0.0
      %493 = vmatpush1.msra.mxu0 0.0
      %494 = vmatprep.subr.mxu0 0.0
      %495 = vmatpush1.msra.mxu0 0.0
      %496 = vmatprep.subr.mxu0 0.0
      %497 = vmatpush1.msra.mxu0 0.0
      %498 = vmatprep.subr.mxu0 0.0
      %499 = vmatpush1.msra.mxu0 0.0
      %500 = vmatprep.subr.mxu0 0.0
      %501 = vmatpush1.msra.mxu0 0.0
      %502 = vmatprep.subr.mxu0 0.0
      %503 = vmatpush1.msra.mxu0 0.0
      %504 = vmatprep.subr.mxu0 0.0
      %505 = vmatpush1.msra.mxu0 0.0
      %506 = vmatprep.subr.mxu0 0.0
      %507 = vmatpush1.msra.mxu0 0.0
      %508 = vmatprep.subr.mxu0 0.0
      %509 = vmatpush1.msra.mxu0 0.0
      %510 = vmatprep.subr.mxu0 0.0
      %511 = vmatpush1.msra.mxu0 0.0
      %512 = vmatprep.subr.mxu0 0.0
      %513 = vmatpush1.msra.mxu0 0.0
      %514 = vmatprep.subr.mxu0 0.0
      %515 = vmatpush1.msra.mxu0 0.0
      %516 = vmatprep.subr.mxu0 0.0
      %517 = vmatpush1.msra.mxu0 0.0
      %518 = vmatprep.subr.mxu0 0.0
      %519 = vmatpush1.msra.mxu0 0.0
      %520 = vmatprep.subr.mxu0 0.0
      %521 = vmatpush1.msra.mxu0 0.0
      %522 = vmatprep.subr.mxu0 0.0
      %523 = vmatpush1.msra.mxu0 0.0
      %524 = vmatprep.subr.mxu0 0.0
      %525 = vmatpush1.msra.mxu0 0.0
      %526 = vmatprep.subr.mxu0 0.0
      %527 = vmatpush1.msra.mxu0 0.0
      %528 = vmatprep.subr.mxu0 0.0
      %529 = vmatpush1.msra.mxu0 0.0
      %530 = vmatprep.subr.mxu0 0.0
      %531 = vmatpush1.msra.mxu0 0.0
      %532 = vmatprep.subr.mxu0 0.0
      %533 = vmatpush1.msra.mxu0 0.0
      %534 = vmatprep.subr.mxu0 0.0
      %535 = vmatpush1.msra.mxu0 0.0
      %536 = vmatprep.subr.mxu0 0.0
      %537 = vmatpush1.msra.mxu0 0.0
      %538 = vmatprep.subr.mxu0 0.0
      %539 = vmatpush1.msra.mxu0 0.0
      %540 = vmatprep.subr.mxu0 0.0
      %541 = vmatpush1.msra.mxu0 0.0
      %542 = vmatprep.subr.mxu0 0.0
      %543 = vmatpush1.msra.mxu0 0.0
      %544 = vmatprep.subr.mxu0 0.0
      %545 = vmatpush1.msra.mxu0 0.0
      %546 = vmatprep.subr.mxu0 0.0
      %547 = vmatpush1.msra.mxu0 0.0
      %548 = vmatprep.subr.mxu0 0.0
      %549 = vmatpush1.msra.mxu0 0.0
      %550 = vmatprep.subr.mxu0 0.0
      %551 = vmatpush1.msra.mxu0 0.0
      %552 = vmatprep.subr.mxu0 0.0
      %553 = vmatpush1.msra.mxu0 0.0
      %554 = vmatprep.mubr.f32.mxu0 0.0
      %555 = vmatmul.mubr.f32.gmra.mrb[0].mxu0 %v481
      %v556 = vpop.f32.mrb[0].mxu0
      %v557 = vadd.f32 0.0, %v556
      %v558 = vpop.f32.mrb[0].mxu0
      %v559 = vadd.f32 0.0, %v558
      %560 = vdwg.mxu0
      %561 = vmatprep.subr.mxu0 0.0
      %562 = vmatpush1.msra.mxu0 %v488
      %563 = vmatprep.subr.mxu0 0.0
      %564 = vmatpush1.msra.mxu0 0.0
      %565 = vmatprep.subr.mxu0 0.0
      %566 = vmatpush1.msra.mxu0 0.0
      %567 = vmatprep.subr.mxu0 0.0
      %568 = vmatpush1.msra.mxu0 0.0
      %569 = vmatprep.subr.mxu0 0.0
      %570 = vmatpush1.msra.mxu0 0.0
      %571 = vmatprep.subr.mxu0 0.0
      %572 = vmatpush1.msra.mxu0 0.0
      %573 = vmatprep.subr.mxu0 0.0
      %574 = vmatpush1.msra.mxu0 0.0
      %575 = vmatprep.subr.mxu0 0.0
      %576 = vmatpush1.msra.mxu0 0.0
      %577 = vmatprep.subr.mxu0 0.0
      %578 = vmatpush1.msra.mxu0 0.0
      %579 = vmatprep.subr.mxu0 0.0
      %580 = vmatpush1.msra.mxu0 0.0
      %581 = vmatprep.subr.mxu0 0.0
      %582 = vmatpush1.msra.mxu0 0.0
      %583 = vmatprep.subr.mxu0 0.0
      %584 = vmatpush1.msra.mxu0 0.0
      %585 = vmatprep.subr.mxu0 0.0
      %586 = vmatpush1.msra.mxu0 0.0
      %587 = vmatprep.subr.mxu0 0.0
      %588 = vmatpush1.msra.mxu0 0.0
      %589 = vmatprep.subr.mxu0 0.0
      %590 = vmatpush1.msra.mxu0 0.0
      %591 = vmatprep.subr.mxu0 0.0
      %592 = vmatpush1.msra.mxu0 0.0
      %593 = vmatprep.subr.mxu0 0.0
      %594 = vmatpush1.msra.mxu0 0.0
      %595 = vmatprep.subr.mxu0 0.0
      %596 = vmatpush1.msra.mxu0 0.0
      %597 = vmatprep.subr.mxu0 0.0
      %598 = vmatpush1.msra.mxu0 0.0
      %599 = vmatprep.subr.mxu0 0.0
      %600 = vmatpush1.msra.mxu0 0.0
      %601 = vmatprep.subr.mxu0 0.0
      %602 = vmatpush1.msra.mxu0 0.0
      %603 = vmatprep.subr.mxu0 0.0
      %604 = vmatpush1.msra.mxu0 0.0
      %605 = vmatprep.subr.mxu0 0.0
      %606 = vmatpush1.msra.mxu0 0.0
      %607 = vmatprep.subr.mxu0 0.0
      %608 = vmatpush1.msra.mxu0 0.0
      %609 = vmatprep.subr.mxu0 0.0
      %610 = vmatpush1.msra.mxu0 0.0
      %611 = vmatprep.subr.mxu0 0.0
      %612 = vmatpush1.msra.mxu0 0.0
      %613 = vmatprep.subr.mxu0 0.0
      %614 = vmatpush1.msra.mxu0 0.0
      %615 = vmatprep.subr.mxu0 0.0
      %616 = vmatpush1.msra.mxu0 0.0
      %617 = vmatprep.subr.mxu0 0.0
      %618 = vmatpush1.msra.mxu0 0.0
      %619 = vmatprep.subr.mxu0 0.0
      %620 = vmatpush1.msra.mxu0 0.0
      %621 = vmatprep.subr.mxu0 0.0
      %622 = vmatpush1.msra.mxu0 0.0
      %623 = vmatprep.subr.mxu0 0.0
      %624 = vmatpush1.msra.mxu0 0.0
      %625 = vmatprep.mubr.f32.mxu0 0.0
      %626 = vmatmul.mubr.f32.gmra.mrb[0].mxu0 %v481
      %v627 = vpop.f32.mrb[0].mxu0
      %v628 = vadd.f32 0.0, %v627
      %v629 = vpop.f32.mrb[0].mxu0
      %630 = vdwg.mxu0
      %v632 = vsel %vm479, %v463, 0
      %v634 = vsel %vm483, %v461, 0
      %v636 = vsel %vm483, %v469, 0
      %v638 = vsel %vm483, %v462, 0
      %640 = vmatprep.subr.mxu0 %v636
      %641 = vmatpush1.msra.mxu0 %v634
      %642 = vmatprep.subr.mxu0 0.0
      %643 = vmatpush1.msra.mxu0 0.0
      %644 = vmatprep.subr.mxu0 0.0
      %645 = vmatpush1.msra.mxu0 0.0
      %646 = vmatprep.subr.mxu0 0.0
      %647 = vmatpush1.msra.mxu0 0.0
      %648 = vmatprep.subr.mxu0 0.0
      %649 = vmatpush1.msra.mxu0 0.0
      %650 = vmatprep.subr.mxu0 0.0
      %651 = vmatpush1.msra.mxu0 0.0
      %652 = vmatprep.subr.mxu0 0.0
      %653 = vmatpush1.msra.mxu0 0.0
      %654 = vmatprep.subr.mxu0 0.0
      %655 = vmatpush1.msra.mxu0 0.0
      %656 = vmatprep.subr.mxu0 0.0
      %657 = vmatpush1.msra.mxu0 0.0
      %658 = vmatprep.subr.mxu0 0.0
      %659 = vmatpush1.msra.mxu0 0.0
      %660 = vmatprep.subr.mxu0 0.0
      %661 = vmatpush1.msra.mxu0 0.0
      %662 = vmatprep.subr.mxu0 0.0
      %663 = vmatpush1.msra.mxu0 0.0
      %664 = vmatprep.subr.mxu0 0.0
      %665 = vmatpush1.msra.mxu0 0.0
      %666 = vmatprep.subr.mxu0 0.0
      %667 = vmatpush1.msra.mxu0 0.0
      %668 = vmatprep.subr.mxu0 0.0
      %669 = vmatpush1.msra.mxu0 0.0
      %670 = vmatprep.subr.mxu0 0.0
      %671 = vmatpush1.msra.mxu0 0.0
      %672 = vmatprep.subr.mxu0 0.0
      %673 = vmatpush1.msra.mxu0 0.0
      %674 = vmatprep.subr.mxu0 0.0
      %675 = vmatpush1.msra.mxu0 0.0
      %676 = vmatprep.subr.mxu0 0.0
      %677 = vmatpush1.msra.mxu0 0.0
      %678 = vmatprep.subr.mxu0 0.0
      %679 = vmatpush1.msra.mxu0 0.0
      %680 = vmatprep.subr.mxu0 0.0
      %681 = vmatpush1.msra.mxu0 0.0
      %682 = vmatprep.subr.mxu0 0.0
      %683 = vmatpush1.msra.mxu0 0.0
      %684 = vmatprep.subr.mxu0 0.0
      %685 = vmatpush1.msra.mxu0 0.0
      %686 = vmatprep.subr.mxu0 0.0
      %687 = vmatpush1.msra.mxu0 0.0
      %688 = vmatprep.subr.mxu0 0.0
      %689 = vmatpush1.msra.mxu0 0.0
      %690 = vmatprep.subr.mxu0 0.0
      %691 = vmatpush1.msra.mxu0 0.0
      %692 = vmatprep.subr.mxu0 0.0
      %693 = vmatpush1.msra.mxu0 0.0
      %694 = vmatprep.subr.mxu0 0.0
      %695 = vmatpush1.msra.mxu0 0.0
      %696 = vmatprep.subr.mxu0 0.0
      %697 = vmatpush1.msra.mxu0 0.0
      %698 = vmatprep.subr.mxu0 0.0
      %699 = vmatpush1.msra.mxu0 0.0
      %700 = vmatprep.subr.mxu0 0.0
      %701 = vmatpush1.msra.mxu0 0.0
      %702 = vmatprep.subr.mxu0 0.0
      %703 = vmatpush1.msra.mxu0 0.0
      %704 = vmatprep.mubr.f32.mxu0 0.0
      %705 = vmatmul.mubr.f32.gmra.mrb[0].mxu0 %v632
      %v706 = vpop.f32.mrb[0].mxu0
      %v707 = vadd.f32 %v557, %v706
      %v708 = vpop.f32.mrb[0].mxu0
      %v709 = vadd.f32 %v559, %v708
      %710 = vdwg.mxu0
      %711 = vmatprep.subr.mxu0 0.0
      %712 = vmatpush1.msra.mxu0 %v638
      %713 = vmatprep.subr.mxu0 0.0
      %714 = vmatpush1.msra.mxu0 0.0
      %715 = vmatprep.subr.mxu0 0.0
      %716 = vmatpush1.msra.mxu0 0.0
      %717 = vmatprep.subr.mxu0 0.0
      %718 = vmatpush1.msra.mxu0 0.0
      %719 = vmatprep.subr.mxu0 0.0
      %720 = vmatpush1.msra.mxu0 0.0
      %721 = vmatprep.subr.mxu0 0.0
      %722 = vmatpush1.msra.mxu0 0.0
      %723 = vmatprep.subr.mxu0 0.0
      %724 = vmatpush1.msra.mxu0 0.0
      %725 = vmatprep.subr.mxu0 0.0
      %726 = vmatpush1.msra.mxu0 0.0
      %727 = vmatprep.subr.mxu0 0.0
      %728 = vmatpush1.msra.mxu0 0.0
      %729 = vmatprep.subr.mxu0 0.0
      %730 = vmatpush1.msra.mxu0 0.0
      %731 = vmatprep.subr.mxu0 0.0
      %732 = vmatpush1.msra.mxu0 0.0
      %733 = vmatprep.subr.mxu0 0.0
      %734 = vmatpush1.msra.mxu0 0.0
      %735 = vmatprep.subr.mxu0 0.0
      %736 = vmatpush1.msra.mxu0 0.0
      %737 = vmatprep.subr.mxu0 0.0
      %738 = vmatpush1.msra.mxu0 0.0
      %739 = vmatprep.subr.mxu0 0.0
      %740 = vmatpush1.msra.mxu0 0.0
      %741 = vmatprep.subr.mxu0 0.0
      %742 = vmatpush1.msra.mxu0 0.0
      %743 = vmatprep.subr.mxu0 0.0
      %744 = vmatpush1.msra.mxu0 0.0
      %745 = vmatprep.subr.mxu0 0.0
      %746 = vmatpush1.msra.mxu0 0.0
      %747 = vmatprep.subr.mxu0 0.0
      %748 = vmatpush1.msra.mxu0 0.0
      %749 = vmatprep.subr.mxu0 0.0
      %750 = vmatpush1.msra.mxu0 0.0
      %751 = vmatprep.subr.mxu0 0.0
      %752 = vmatpush1.msra.mxu0 0.0
      %753 = vmatprep.subr.mxu0 0.0
      %754 = vmatpush1.msra.mxu0 0.0
      %755 = vmatprep.subr.mxu0 0.0
      %756 = vmatpush1.msra.mxu0 0.0
      %757 = vmatprep.subr.mxu0 0.0
      %758 = vmatpush1.msra.mxu0 0.0
      %759 = vmatprep.subr.mxu0 0.0
      %760 = vmatpush1.msra.mxu0 0.0
      %761 = vmatprep.subr.mxu0 0.0
      %762 = vmatpush1.msra.mxu0 0.0
      %763 = vmatprep.subr.mxu0 0.0
      %764 = vmatpush1.msra.mxu0 0.0
      %765 = vmatprep.subr.mxu0 0.0
      %766 = vmatpush1.msra.mxu0 0.0
      %767 = vmatprep.subr.mxu0 0.0
      %768 = vmatpush1.msra.mxu0 0.0
      %769 = vmatprep.subr.mxu0 0.0
      %770 = vmatpush1.msra.mxu0 0.0
      %771 = vmatprep.subr.mxu0 0.0
      %772 = vmatpush1.msra.mxu0 0.0
      %773 = vmatprep.subr.mxu0 0.0
      %774 = vmatpush1.msra.mxu0 0.0
      %775 = vmatprep.mubr.f32.mxu0 0.0
      %776 = vmatmul.mubr.f32.gmra.mrb[0].mxu0 %v632
      %v777 = vpop.f32.mrb[0].mxu0
      %v778 = vadd.f32 %v628, %v777
      %v779 = vpop.f32.mrb[0].mxu0
      %780 = vdwg.mxu0
      %s781 = scalar_lea.vmem %s7, 8
      %v782 = vld [vmem:[%s781] sm:$0xff]
      %v785 = vcombine.high %v410, %v410
      %786 = vrot.lane.b32.xlu0 %v410, 127
      %v787 = vpop.permute.xlu0 %786
      %788 = vrot.lane.b32.xlu0 %v785, 127
      %v789 = vpop.permute.xlu0 %788
      %790 = vrot.lane.b32.xlu0 %v411, 127
      %v791 = vpop.permute.xlu0 %790
      %v792 = vsel %vm476, %v787, %v789
      %v793 = vsel %vm476, %v789, %v791
      %v795 = vsel %vm479, %v782, 0
      %v797 = vsel %vm483, %v792, 0
      %v799 = vsel %vm483, %v793, 0
      %v801 = vsel %vm483, %v791, 0
      %803 = vmatprep.subr.mxu0 %v799
      %804 = vmatpush1.msra.mxu0 %v797
      %805 = vmatprep.subr.mxu0 0.0
      %806 = vmatpush1.msra.mxu0 0.0
      %807 = vmatprep.subr.mxu0 0.0
      %808 = vmatpush1.msra.mxu0 0.0
      %809 = vmatprep.subr.mxu0 0.0
      %810 = vmatpush1.msra.mxu0 0.0
      %811 = vmatprep.subr.mxu0 0.0
      %812 = vmatpush1.msra.mxu0 0.0
      %813 = vmatprep.subr.mxu0 0.0
      %814 = vmatpush1.msra.mxu0 0.0
      %815 = vmatprep.subr.mxu0 0.0
      %816 = vmatpush1.msra.mxu0 0.0
      %817 = vmatprep.subr.mxu0 0.0
      %818 = vmatpush1.msra.mxu0 0.0
      %819 = vmatprep.subr.mxu0 0.0
      %820 = vmatpush1.msra.mxu0 0.0
      %821 = vmatprep.subr.mxu0 0.0
      %822 = vmatpush1.msra.mxu0 0.0
      %823 = vmatprep.subr.mxu0 0.0
      %824 = vmatpush1.msra.mxu0 0.0
      %825 = vmatprep.subr.mxu0 0.0
      %826 = vmatpush1.msra.mxu0 0.0
      %827 = vmatprep.subr.mxu0 0.0
      %828 = vmatpush1.msra.mxu0 0.0
      %829 = vmatprep.subr.mxu0 0.0
      %830 = vmatpush1.msra.mxu0 0.0
      %831 = vmatprep.subr.mxu0 0.0
      %832 = vmatpush1.msra.mxu0 0.0
      %833 = vmatprep.subr.mxu0 0.0
      %834 = vmatpush1.msra.mxu0 0.0
      %835 = vmatprep.subr.mxu0 0.0
      %836 = vmatpush1.msra.mxu0 0.0
      %837 = vmatprep.subr.mxu0 0.0
      %838 = vmatpush1.msra.mxu0 0.0
      %839 = vmatprep.subr.mxu0 0.0
      %840 = vmatpush1.msra.mxu0 0.0
      %841 = vmatprep.subr.mxu0 0.0
      %842 = vmatpush1.msra.mxu0 0.0
      %843 = vmatprep.subr.mxu0 0.0
      %844 = vmatpush1.msra.mxu0 0.0
      %845 = vmatprep.subr.mxu0 0.0
      %846 = vmatpush1.msra.mxu0 0.0
      %847 = vmatprep.subr.mxu0 0.0
      %848 = vmatpush1.msra.mxu0 0.0
      %849 = vmatprep.subr.mxu0 0.0
      %850 = vmatpush1.msra.mxu0 0.0
      %851 = vmatprep.subr.mxu0 0.0
      %852 = vmatpush1.msra.mxu0 0.0
      %853 = vmatprep.subr.mxu0 0.0
      %854 = vmatpush1.msra.mxu0 0.0
      %855 = vmatprep.subr.mxu0 0.0
      %856 = vmatpush1.msra.mxu0 0.0
      %857 = vmatprep.subr.mxu0 0.0
      %858 = vmatpush1.msra.mxu0 0.0
      %859 = vmatprep.subr.mxu0 0.0
      %860 = vmatpush1.msra.mxu0 0.0
      %861 = vmatprep.subr.mxu0 0.0
      %862 = vmatpush1.msra.mxu0 0.0
      %863 = vmatprep.subr.mxu0 0.0
      %864 = vmatpush1.msra.mxu0 0.0
      %865 = vmatprep.subr.mxu0 0.0
      %866 = vmatpush1.msra.mxu0 0.0
      %867 = vmatprep.mubr.f32.mxu0 0.0
      %868 = vmatmul.mubr.f32.gmra.mrb[0].mxu0 %v795
      %v869 = vpop.f32.mrb[0].mxu0
      %v870 = vadd.f32 0.0, %v869
      %v871 = vpop.f32.mrb[0].mxu0
      %v872 = vadd.f32 0.0, %v871
      %873 = vdwg.mxu0
      %874 = vmatprep.subr.mxu0 0.0
      %875 = vmatpush1.msra.mxu0 %v801
      %876 = vmatprep.subr.mxu0 0.0
      %877 = vmatpush1.msra.mxu0 0.0
      %878 = vmatprep.subr.mxu0 0.0
      %879 = vmatpush1.msra.mxu0 0.0
      %880 = vmatprep.subr.mxu0 0.0
      %881 = vmatpush1.msra.mxu0 0.0
      %882 = vmatprep.subr.mxu0 0.0
      %883 = vmatpush1.msra.mxu0 0.0
      %884 = vmatprep.subr.mxu0 0.0
      %885 = vmatpush1.msra.mxu0 0.0
      %886 = vmatprep.subr.mxu0 0.0
      %887 = vmatpush1.msra.mxu0 0.0
      %888 = vmatprep.subr.mxu0 0.0
      %889 = vmatpush1.msra.mxu0 0.0
      %890 = vmatprep.subr.mxu0 0.0
      %891 = vmatpush1.msra.mxu0 0.0
      %892 = vmatprep.subr.mxu0 0.0
      %893 = vmatpush1.msra.mxu0 0.0
      %894 = vmatprep.subr.mxu0 0.0
      %895 = vmatpush1.msra.mxu0 0.0
      %896 = vmatprep.subr.mxu0 0.0
      %897 = vmatpush1.msra.mxu0 0.0
      %898 = vmatprep.subr.mxu0 0.0
      %899 = vmatpush1.msra.mxu0 0.0
      %900 = vmatprep.subr.mxu0 0.0
      %901 = vmatpush1.msra.mxu0 0.0
      %902 = vmatprep.subr.mxu0 0.0
      %903 = vmatpush1.msra.mxu0 0.0
      %904 = vmatprep.subr.mxu0 0.0
      %905 = vmatpush1.msra.mxu0 0.0
      %906 = vmatprep.subr.mxu0 0.0
      %907 = vmatpush1.msra.mxu0 0.0
      %908 = vmatprep.subr.mxu0 0.0
      %909 = vmatpush1.msra.mxu0 0.0
      %910 = vmatprep.subr.mxu0 0.0
      %911 = vmatpush1.msra.mxu0 0.0
      %912 = vmatprep.subr.mxu0 0.0
      %913 = vmatpush1.msra.mxu0 0.0
      %914 = vmatprep.subr.mxu0 0.0
      %915 = vmatpush1.msra.mxu0 0.0
      %916 = vmatprep.subr.mxu0 0.0
      %917 = vmatpush1.msra.mxu0 0.0
      %918 = vmatprep.subr.mxu0 0.0
      %919 = vmatpush1.msra.mxu0 0.0
      %920 = vmatprep.subr.mxu0 0.0
      %921 = vmatpush1.msra.mxu0 0.0
      %922 = vmatprep.subr.mxu0 0.0
      %923 = vmatpush1.msra.mxu0 0.0
      %924 = vmatprep.subr.mxu0 0.0
      %925 = vmatpush1.msra.mxu0 0.0
      %926 = vmatprep.subr.mxu0 0.0
      %927 = vmatpush1.msra.mxu0 0.0
      %928 = vmatprep.subr.mxu0 0.0
      %929 = vmatpush1.msra.mxu0 0.0
      %930 = vmatprep.subr.mxu0 0.0
      %931 = vmatpush1.msra.mxu0 0.0
      %932 = vmatprep.subr.mxu0 0.0
      %933 = vmatpush1.msra.mxu0 0.0
      %934 = vmatprep.subr.mxu0 0.0
      %935 = vmatpush1.msra.mxu0 0.0
      %936 = vmatprep.subr.mxu0 0.0
      %937 = vmatpush1.msra.mxu0 0.0
      %938 = vmatprep.mubr.f32.mxu0 0.0
      %939 = vmatmul.mubr.f32.gmra.mrb[0].mxu0 %v795
      %v940 = vpop.f32.mrb[0].mxu0
      %v941 = vadd.f32 0.0, %v940
      %v942 = vpop.f32.mrb[0].mxu0
      %943 = vdwg.mxu0
      %v945 = vsel %vm479, %v464, 0
      %v947 = vsel %vm483, %v410, 0
      %v949 = vsel %vm483, %v785, 0
      %v951 = vsel %vm483, %v411, 0
      %953 = vmatprep.subr.mxu0 %v949
      %954 = vmatpush1.msra.mxu0 %v947
      %955 = vmatprep.subr.mxu0 0.0
      %956 = vmatpush1.msra.mxu0 0.0
      %957 = vmatprep.subr.mxu0 0.0
      %958 = vmatpush1.msra.mxu0 0.0
      %959 = vmatprep.subr.mxu0 0.0
      %960 = vmatpush1.msra.mxu0 0.0
      %961 = vmatprep.subr.mxu0 0.0
      %962 = vmatpush1.msra.mxu0 0.0
      %963 = vmatprep.subr.mxu0 0.0
      %964 = vmatpush1.msra.mxu0 0.0
      %965 = vmatprep.subr.mxu0 0.0
      %966 = vmatpush1.msra.mxu0 0.0
      %967 = vmatprep.subr.mxu0 0.0
      %968 = vmatpush1.msra.mxu0 0.0
      %969 = vmatprep.subr.mxu0 0.0
      %970 = vmatpush1.msra.mxu0 0.0
      %971 = vmatprep.subr.mxu0 0.0
      %972 = vmatpush1.msra.mxu0 0.0
      %973 = vmatprep.subr.mxu0 0.0
      %974 = vmatpush1.msra.mxu0 0.0
      %975 = vmatprep.subr.mxu0 0.0
      %976 = vmatpush1.msra.mxu0 0.0
      %977 = vmatprep.subr.mxu0 0.0
      %978 = vmatpush1.msra.mxu0 0.0
      %979 = vmatprep.subr.mxu0 0.0
      %980 = vmatpush1.msra.mxu0 0.0
      %981 = vmatprep.subr.mxu0 0.0
      %982 = vmatpush1.msra.mxu0 0.0
      %983 = vmatprep.subr.mxu0 0.0
      %984 = vmatpush1.msra.mxu0 0.0
      %985 = vmatprep.subr.mxu0 0.0
      %986 = vmatpush1.msra.mxu0 0.0
      %987 = vmatprep.subr.mxu0 0.0
      %988 = vmatpush1.msra.mxu0 0.0
      %989 = vmatprep.subr.mxu0 0.0
      %990 = vmatpush1.msra.mxu0 0.0
      %991 = vmatprep.subr.mxu0 0.0
      %992 = vmatpush1.msra.mxu0 0.0
      %993 = vmatprep.subr.mxu0 0.0
      %994 = vmatpush1.msra.mxu0 0.0
      %995 = vmatprep.subr.mxu0 0.0
      %996 = vmatpush1.msra.mxu0 0.0
      %997 = vmatprep.subr.mxu0 0.0
      %998 = vmatpush1.msra.mxu0 0.0
      %999 = vmatprep.subr.mxu0 0.0
      %1000 = vmatpush1.msra.mxu0 0.0
      %1001 = vmatprep.subr.mxu0 0.0
      %1002 = vmatpush1.msra.mxu0 0.0
      %1003 = vmatprep.subr.mxu0 0.0
      %1004 = vmatpush1.msra.mxu0 0.0
      %1005 = vmatprep.subr.mxu0 0.0
      %1006 = vmatpush1.msra.mxu0 0.0
      %1007 = vmatprep.subr.mxu0 0.0
      %1008 = vmatpush1.msra.mxu0 0.0
      %1009 = vmatprep.subr.mxu0 0.0
      %1010 = vmatpush1.msra.mxu0 0.0
      %1011 = vmatprep.subr.mxu0 0.0
      %1012 = vmatpush1.msra.mxu0 0.0
      %1013 = vmatprep.subr.mxu0 0.0
      %1014 = vmatpush1.msra.mxu0 0.0
      %1015 = vmatprep.subr.mxu0 0.0
      %1016 = vmatpush1.msra.mxu0 0.0
      %1017 = vmatprep.mubr.f32.mxu0 0.0
      %1018 = vmatmul.mubr.f32.gmra.mrb[0].mxu0 %v945
      %v1019 = vpop.f32.mrb[0].mxu0
      %v1020 = vadd.f32 %v870, %v1019
      %v1021 = vpop.f32.mrb[0].mxu0
      %v1022 = vadd.f32 %v872, %v1021
      %1023 = vdwg.mxu0
      %1024 = vmatprep.subr.mxu0 0.0
      %1025 = vmatpush1.msra.mxu0 %v951
      %1026 = vmatprep.subr.mxu0 0.0
      %1027 = vmatpush1.msra.mxu0 0.0
      %1028 = vmatprep.subr.mxu0 0.0
      %1029 = vmatpush1.msra.mxu0 0.0
      %1030 = vmatprep.subr.mxu0 0.0
      %1031 = vmatpush1.msra.mxu0 0.0
      %1032 = vmatprep.subr.mxu0 0.0
      %1033 = vmatpush1.msra.mxu0 0.0
      %1034 = vmatprep.subr.mxu0 0.0
      %1035 = vmatpush1.msra.mxu0 0.0
      %1036 = vmatprep.subr.mxu0 0.0
      %1037 = vmatpush1.msra.mxu0 0.0
      %1038 = vmatprep.subr.mxu0 0.0
      %1039 = vmatpush1.msra.mxu0 0.0
      %1040 = vmatprep.subr.mxu0 0.0
      %1041 = vmatpush1.msra.mxu0 0.0
      %1042 = vmatprep.subr.mxu0 0.0
      %1043 = vmatpush1.msra.mxu0 0.0
      %1044 = vmatprep.subr.mxu0 0.0
      %1045 = vmatpush1.msra.mxu0 0.0
      %1046 = vmatprep.subr.mxu0 0.0
      %1047 = vmatpush1.msra.mxu0 0.0
      %1048 = vmatprep.subr.mxu0 0.0
      %1049 = vmatpush1.msra.mxu0 0.0
      %1050 = vmatprep.subr.mxu0 0.0
      %1051 = vmatpush1.msra.mxu0 0.0
      %1052 = vmatprep.subr.mxu0 0.0
      %1053 = vmatpush1.msra.mxu0 0.0
      %1054 = vmatprep.subr.mxu0 0.0
      %1055 = vmatpush1.msra.mxu0 0.0
      %1056 = vmatprep.subr.mxu0 0.0
      %1057 = vmatpush1.msra.mxu0 0.0
      %1058 = vmatprep.subr.mxu0 0.0
      %1059 = vmatpush1.msra.mxu0 0.0
      %1060 = vmatprep.subr.mxu0 0.0
      %1061 = vmatpush1.msra.mxu0 0.0
      %1062 = vmatprep.subr.mxu0 0.0
      %1063 = vmatpush1.msra.mxu0 0.0
      %1064 = vmatprep.subr.mxu0 0.0
      %1065 = vmatpush1.msra.mxu0 0.0
      %1066 = vmatprep.subr.mxu0 0.0
      %1067 = vmatpush1.msra.mxu0 0.0
      %1068 = vmatprep.subr.mxu0 0.0
      %1069 = vmatpush1.msra.mxu0 0.0
      %1070 = vmatprep.subr.mxu0 0.0
      %1071 = vmatpush1.msra.mxu0 0.0
      %1072 = vmatprep.subr.mxu0 0.0
      %1073 = vmatpush1.msra.mxu0 0.0
      %1074 = vmatprep.subr.mxu0 0.0
      %1075 = vmatpush1.msra.mxu0 0.0
      %1076 = vmatprep.subr.mxu0 0.0
      %1077 = vmatpush1.msra.mxu0 0.0
      %1078 = vmatprep.subr.mxu0 0.0
      %1079 = vmatpush1.msra.mxu0 0.0
      %1080 = vmatprep.subr.mxu0 0.0
      %1081 = vmatpush1.msra.mxu0 0.0
      %1082 = vmatprep.subr.mxu0 0.0
      %1083 = vmatpush1.msra.mxu0 0.0
      %1084 = vmatprep.subr.mxu0 0.0
      %1085 = vmatpush1.msra.mxu0 0.0
      %1086 = vmatprep.subr.mxu0 0.0
      %1087 = vmatpush1.msra.mxu0 0.0
      %1088 = vmatprep.mubr.f32.mxu0 0.0
      %1089 = vmatmul.mubr.f32.gmra.mrb[0].mxu0 %v945
      %v1090 = vpop.f32.mrb[0].mxu0
      %v1091 = vadd.f32 %v941, %v1090
      %v1092 = vpop.f32.mrb[0].mxu0
      %1093 = vdwg.mxu0
      %s1094 = scalar_lea.vmem %s5, 16
      %v1095 = vld [vmem:[%s1094] sm:$0xff]
      %1096 = vrot.lane.b32.xlu0 %v461, 126
      %v1097 = vpop.permute.xlu0 %1096
      %1098 = vrot.lane.b32.xlu0 %v469, 126
      %v1099 = vpop.permute.xlu0 %1098
      %1100 = vrot.lane.b32.xlu0 %v462, 126
      %v1101 = vpop.permute.xlu0 %1100
      %vm1102 = vcmask 1031168
      %v1103 = vsel %vm1102, %v1097, %v1099
      %v1104 = vsel %vm1102, %v1099, %v1101
      %v1106 = vsel %vm479, %v1095, 0
      %v1108 = vsel %vm483, %v1103, 0
      %v1110 = vsel %vm483, %v1104, 0
      %v1112 = vsel %vm483, %v1101, 0
      %1114 = vmatprep.subr.mxu0 %v1110
      %1115 = vmatpush1.msra.mxu0 %v1108
      %1116 = vmatprep.subr.mxu0 0.0
      %1117 = vmatpush1.msra.mxu0 0.0
      %1118 = vmatprep.subr.mxu0 0.0
      %1119 = vmatpush1.msra.mxu0 0.0
      %1120 = vmatprep.subr.mxu0 0.0
      %1121 = vmatpush1.msra.mxu0 0.0
      %1122 = vmatprep.subr.mxu0 0.0
      %1123 = vmatpush1.msra.mxu0 0.0
      %1124 = vmatprep.subr.mxu0 0.0
      %1125 = vmatpush1.msra.mxu0 0.0
      %1126 = vmatprep.subr.mxu0 0.0
      %1127 = vmatpush1.msra.mxu0 0.0
      %1128 = vmatprep.subr.mxu0 0.0
      %1129 = vmatpush1.msra.mxu0 0.0
      %1130 = vmatprep.subr.mxu0 0.0
      %1131 = vmatpush1.msra.mxu0 0.0
      %1132 = vmatprep.subr.mxu0 0.0
      %1133 = vmatpush1.msra.mxu0 0.0
      %1134 = vmatprep.subr.mxu0 0.0
      %1135 = vmatpush1.msra.mxu0 0.0
      %1136 = vmatprep.subr.mxu0 0.0
      %1137 = vmatpush1.msra.mxu0 0.0
      %1138 = vmatprep.subr.mxu0 0.0
      %1139 = vmatpush1.msra.mxu0 0.0
      %1140 = vmatprep.subr.mxu0 0.0
      %1141 = vmatpush1.msra.mxu0 0.0
      %1142 = vmatprep.subr.mxu0 0.0
      %1143 = vmatpush1.msra.mxu0 0.0
      %1144 = vmatprep.subr.mxu0 0.0
      %1145 = vmatpush1.msra.mxu0 0.0
      %1146 = vmatprep.subr.mxu0 0.0
      %1147 = vmatpush1.msra.mxu0 0.0
      %1148 = vmatprep.subr.mxu0 0.0
      %1149 = vmatpush1.msra.mxu0 0.0
      %1150 = vmatprep.subr.mxu0 0.0
      %1151 = vmatpush1.msra.mxu0 0.0
      %1152 = vmatprep.subr.mxu0 0.0
      %1153 = vmatpush1.msra.mxu0 0.0
      %1154 = vmatprep.subr.mxu0 0.0
      %1155 = vmatpush1.msra.mxu0 0.0
      %1156 = vmatprep.subr.mxu0 0.0
      %1157 = vmatpush1.msra.mxu0 0.0
      %1158 = vmatprep.subr.mxu0 0.0
      %1159 = vmatpush1.msra.mxu0 0.0
      %1160 = vmatprep.subr.mxu0 0.0
      %1161 = vmatpush1.msra.mxu0 0.0
      %1162 = vmatprep.subr.mxu0 0.0
      %1163 = vmatpush1.msra.mxu0 0.0
      %1164 = vmatprep.subr.mxu0 0.0
      %1165 = vmatpush1.msra.mxu0 0.0
      %1166 = vmatprep.subr.mxu0 0.0
      %1167 = vmatpush1.msra.mxu0 0.0
      %1168 = vmatprep.subr.mxu0 0.0
      %1169 = vmatpush1.msra.mxu0 0.0
      %1170 = vmatprep.subr.mxu0 0.0
      %1171 = vmatpush1.msra.mxu0 0.0
      %1172 = vmatprep.subr.mxu0 0.0
      %1173 = vmatpush1.msra.mxu0 0.0
      %1174 = vmatprep.subr.mxu0 0.0
      %1175 = vmatpush1.msra.mxu0 0.0
      %1176 = vmatprep.subr.mxu0 0.0
      %1177 = vmatpush1.msra.mxu0 0.0
      %1178 = vmatprep.mubr.f32.mxu0 0.0
      %1179 = vmatmul.mubr.f32.gmra.mrb[0].mxu0 %v1106
      %v1180 = vpop.f32.mrb[0].mxu0
      %v1181 = vadd.f32 0.0, %v1180
      %v1182 = vpop.f32.mrb[0].mxu0
      %v1183 = vadd.f32 0.0, %v1182
      %1184 = vdwg.mxu0
      %1185 = vmatprep.subr.mxu0 0.0
      %1186 = vmatpush1.msra.mxu0 %v1112
      %1187 = vmatprep.subr.mxu0 0.0
      %1188 = vmatpush1.msra.mxu0 0.0
      %1189 = vmatprep.subr.mxu0 0.0
      %1190 = vmatpush1.msra.mxu0 0.0
      %1191 = vmatprep.subr.mxu0 0.0
      %1192 = vmatpush1.msra.mxu0 0.0
      %1193 = vmatprep.subr.mxu0 0.0
      %1194 = vmatpush1.msra.mxu0 0.0
      %1195 = vmatprep.subr.mxu0 0.0
      %1196 = vmatpush1.msra.mxu0 0.0
      %1197 = vmatprep.subr.mxu0 0.0
      %1198 = vmatpush1.msra.mxu0 0.0
      %1199 = vmatprep.subr.mxu0 0.0
      %1200 = vmatpush1.msra.mxu0 0.0
      %1201 = vmatprep.subr.mxu0 0.0
      %1202 = vmatpush1.msra.mxu0 0.0
      %1203 = vmatprep.subr.mxu0 0.0
      %1204 = vmatpush1.msra.mxu0 0.0
      %1205 = vmatprep.subr.mxu0 0.0
      %1206 = vmatpush1.msra.mxu0 0.0
      %1207 = vmatprep.subr.mxu0 0.0
      %1208 = vmatpush1.msra.mxu0 0.0
      %1209 = vmatprep.subr.mxu0 0.0
      %1210 = vmatpush1.msra.mxu0 0.0
      %1211 = vmatprep.subr.mxu0 0.0
      %1212 = vmatpush1.msra.mxu0 0.0
      %1213 = vmatprep.subr.mxu0 0.0
      %1214 = vmatpush1.msra.mxu0 0.0
      %1215 = vmatprep.subr.mxu0 0.0
      %1216 = vmatpush1.msra.mxu0 0.0
      %1217 = vmatprep.subr.mxu0 0.0
      %1218 = vmatpush1.msra.mxu0 0.0
      %1219 = vmatprep.subr.mxu0 0.0
      %1220 = vmatpush1.msra.mxu0 0.0
      %1221 = vmatprep.subr.mxu0 0.0
      %1222 = vmatpush1.msra.mxu0 0.0
      %1223 = vmatprep.subr.mxu0 0.0
      %1224 = vmatpush1.msra.mxu0 0.0
      %1225 = vmatprep.subr.mxu0 0.0
      %1226 = vmatpush1.msra.mxu0 0.0
      %1227 = vmatprep.subr.mxu0 0.0
      %1228 = vmatpush1.msra.mxu0 0.0
      %1229 = vmatprep.subr.mxu0 0.0
      %1230 = vmatpush1.msra.mxu0 0.0
      %1231 = vmatprep.subr.mxu0 0.0
      %1232 = vmatpush1.msra.mxu0 0.0
      %1233 = vmatprep.subr.mxu0 0.0
      %1234 = vmatpush1.msra.mxu0 0.0
      %1235 = vmatprep.subr.mxu0 0.0
      %1236 = vmatpush1.msra.mxu0 0.0
      %1237 = vmatprep.subr.mxu0 0.0
      %1238 = vmatpush1.msra.mxu0 0.0
      %1239 = vmatprep.subr.mxu0 0.0
      %1240 = vmatpush1.msra.mxu0 0.0
      %1241 = vmatprep.subr.mxu0 0.0
      %1242 = vmatpush1.msra.mxu0 0.0
      %1243 = vmatprep.subr.mxu0 0.0
      %1244 = vmatpush1.msra.mxu0 0.0
      %1245 = vmatprep.subr.mxu0 0.0
      %1246 = vmatpush1.msra.mxu0 0.0
      %1247 = vmatprep.subr.mxu0 0.0
      %1248 = vmatpush1.msra.mxu0 0.0
      %1249 = vmatprep.mubr.f32.mxu0 0.0
      %1250 = vmatmul.mubr.f32.gmra.mrb[0].mxu0 %v1106
      %v1251 = vpop.f32.mrb[0].mxu0
      %v1252 = vadd.f32 0.0, %v1251
      %v1253 = vpop.f32.mrb[0].mxu0
      %1254 = vdwg.mxu0
      %v1255 = vadd.f32 %v707, %v1181
      %v1256 = vadd.f32 %v709, %v1183
      %v1257 = vadd.f32 %v778, %v1252
      %s1258 = scalar_lea.vmem %s7, 16
      %v1259 = vld [vmem:[%s1258] sm:$0xff]
      %1260 = vrot.lane.b32.xlu0 %v410, 126
      %v1261 = vpop.permute.xlu0 %1260
      %1262 = vrot.lane.b32.xlu0 %v785, 126
      %v1263 = vpop.permute.xlu0 %1262
      %1264 = vrot.lane.b32.xlu0 %v411, 126
      %v1265 = vpop.permute.xlu0 %1264
      %v1266 = vsel %vm1102, %v1261, %v1263
      %v1267 = vsel %vm1102, %v1263, %v1265
      %v1269 = vsel %vm479, %v1259, 0
      %v1271 = vsel %vm483, %v1266, 0
      %v1273 = vsel %vm483, %v1267, 0
      %v1275 = vsel %vm483, %v1265, 0
      %1277 = vmatprep.subr.mxu0 %v1273
      %1278 = vmatpush1.msra.mxu0 %v1271
      %1279 = vmatprep.subr.mxu0 0.0
      %1280 = vmatpush1.msra.mxu0 0.0
      %1281 = vmatprep.subr.mxu0 0.0
      %1282 = vmatpush1.msra.mxu0 0.0
      %1283 = vmatprep.subr.mxu0 0.0
      %1284 = vmatpush1.msra.mxu0 0.0
      %1285 = vmatprep.subr.mxu0 0.0
      %1286 = vmatpush1.msra.mxu0 0.0
      %1287 = vmatprep.subr.mxu0 0.0
      %1288 = vmatpush1.msra.mxu0 0.0
      %1289 = vmatprep.subr.mxu0 0.0
      %1290 = vmatpush1.msra.mxu0 0.0
      %1291 = vmatprep.subr.mxu0 0.0
      %1292 = vmatpush1.msra.mxu0 0.0
      %1293 = vmatprep.subr.mxu0 0.0
      %1294 = vmatpush1.msra.mxu0 0.0
      %1295 = vmatprep.subr.mxu0 0.0
      %1296 = vmatpush1.msra.mxu0 0.0
      %1297 = vmatprep.subr.mxu0 0.0
      %1298 = vmatpush1.msra.mxu0 0.0
      %1299 = vmatprep.subr.mxu0 0.0
      %1300 = vmatpush1.msra.mxu0 0.0
      %1301 = vmatprep.subr.mxu0 0.0
      %1302 = vmatpush1.msra.mxu0 0.0
      %1303 = vmatprep.subr.mxu0 0.0
      %1304 = vmatpush1.msra.mxu0 0.0
      %1305 = vmatprep.subr.mxu0 0.0
      %1306 = vmatpush1.msra.mxu0 0.0
      %1307 = vmatprep.subr.mxu0 0.0
      %1308 = vmatpush1.msra.mxu0 0.0
      %1309 = vmatprep.subr.mxu0 0.0
      %1310 = vmatpush1.msra.mxu0 0.0
      %1311 = vmatprep.subr.mxu0 0.0
      %1312 = vmatpush1.msra.mxu0 0.0
      %1313 = vmatprep.subr.mxu0 0.0
      %1314 = vmatpush1.msra.mxu0 0.0
      %1315 = vmatprep.subr.mxu0 0.0
      %1316 = vmatpush1.msra.mxu0 0.0
      %1317 = vmatprep.subr.mxu0 0.0
      %1318 = vmatpush1.msra.mxu0 0.0
      %1319 = vmatprep.subr.mxu0 0.0
      %1320 = vmatpush1.msra.mxu0 0.0
      %1321 = vmatprep.subr.mxu0 0.0
      %1322 = vmatpush1.msra.mxu0 0.0
      %1323 = vmatprep.subr.mxu0 0.0
      %1324 = vmatpush1.msra.mxu0 0.0
      %1325 = vmatprep.subr.mxu0 0.0
      %1326 = vmatpush1.msra.mxu0 0.0
      %1327 = vmatprep.subr.mxu0 0.0
      %1328 = vmatpush1.msra.mxu0 0.0
      %1329 = vmatprep.subr.mxu0 0.0
      %1330 = vmatpush1.msra.mxu0 0.0
      %1331 = vmatprep.subr.mxu0 0.0
      %1332 = vmatpush1.msra.mxu0 0.0
      %1333 = vmatprep.subr.mxu0 0.0
      %1334 = vmatpush1.msra.mxu0 0.0
      %1335 = vmatprep.subr.mxu0 0.0
      %1336 = vmatpush1.msra.mxu0 0.0
      %1337 = vmatprep.subr.mxu0 0.0
      %1338 = vmatpush1.msra.mxu0 0.0
      %1339 = vmatprep.subr.mxu0 0.0
      %1340 = vmatpush1.msra.mxu0 0.0
      %1341 = vmatprep.mubr.f32.mxu0 0.0
      %1342 = vmatmul.mubr.f32.gmra.mrb[0].mxu0 %v1269
      %v1343 = vpop.f32.mrb[0].mxu0
      %v1344 = vadd.f32 0.0, %v1343
      %v1345 = vpop.f32.mrb[0].mxu0
      %v1346 = vadd.f32 0.0, %v1345
      %1347 = vdwg.mxu0
      %1348 = vmatprep.subr.mxu0 0.0
      %1349 = vmatpush1.msra.mxu0 %v1275
      %1350 = vmatprep.subr.mxu0 0.0
      %1351 = vmatpush1.msra.mxu0 0.0
      %1352 = vmatprep.subr.mxu0 0.0
      %1353 = vmatpush1.msra.mxu0 0.0
      %1354 = vmatprep.subr.mxu0 0.0
      %1355 = vmatpush1.msra.mxu0 0.0
      %1356 = vmatprep.subr.mxu0 0.0
      %1357 = vmatpush1.msra.mxu0 0.0
      %1358 = vmatprep.subr.mxu0 0.0
      %1359 = vmatpush1.msra.mxu0 0.0
      %1360 = vmatprep.subr.mxu0 0.0
      %1361 = vmatpush1.msra.mxu0 0.0
      %1362 = vmatprep.subr.mxu0 0.0
      %1363 = vmatpush1.msra.mxu0 0.0
      %1364 = vmatprep.subr.mxu0 0.0
      %1365 = vmatpush1.msra.mxu0 0.0
      %1366 = vmatprep.subr.mxu0 0.0
      %1367 = vmatpush1.msra.mxu0 0.0
      %1368 = vmatprep.subr.mxu0 0.0
      %1369 = vmatpush1.msra.mxu0 0.0
      %1370 = vmatprep.subr.mxu0 0.0
      %1371 = vmatpush1.msra.mxu0 0.0
      %1372 = vmatprep.subr.mxu0 0.0
      %1373 = vmatpush1.msra.mxu0 0.0
      %1374 = vmatprep.subr.mxu0 0.0
      %1375 = vmatpush1.msra.mxu0 0.0
      %1376 = vmatprep.subr.mxu0 0.0
      %1377 = vmatpush1.msra.mxu0 0.0
      %1378 = vmatprep.subr.mxu0 0.0
      %1379 = vmatpush1.msra.mxu0 0.0
      %1380 = vmatprep.subr.mxu0 0.0
      %1381 = vmatpush1.msra.mxu0 0.0
      %1382 = vmatprep.subr.mxu0 0.0
      %1383 = vmatpush1.msra.mxu0 0.0
      %1384 = vmatprep.subr.mxu0 0.0
      %1385 = vmatpush1.msra.mxu0 0.0
      %1386 = vmatprep.subr.mxu0 0.0
      %1387 = vmatpush1.msra.mxu0 0.0
      %1388 = vmatprep.subr.mxu0 0.0
      %1389 = vmatpush1.msra.mxu0 0.0
      %1390 = vmatprep.subr.mxu0 0.0
      %1391 = vmatpush1.msra.mxu0 0.0
      %1392 = vmatprep.subr.mxu0 0.0
      %1393 = vmatpush1.msra.mxu0 0.0
      %1394 = vmatprep.subr.mxu0 0.0
      %1395 = vmatpush1.msra.mxu0 0.0
      %1396 = vmatprep.subr.mxu0 0.0
      %1397 = vmatpush1.msra.mxu0 0.0
      %1398 = vmatprep.subr.mxu0 0.0
      %1399 = vmatpush1.msra.mxu0 0.0
      %1400 = vmatprep.subr.mxu0 0.0
      %1401 = vmatpush1.msra.mxu0 0.0
      %1402 = vmatprep.subr.mxu0 0.0
      %1403 = vmatpush1.msra.mxu0 0.0
      %1404 = vmatprep.subr.mxu0 0.0
      %1405 = vmatpush1.msra.mxu0 0.0
      %1406 = vmatprep.subr.mxu0 0.0
      %1407 = vmatpush1.msra.mxu0 0.0
      %1408 = vmatprep.subr.mxu0 0.0
      %1409 = vmatpush1.msra.mxu0 0.0
      %1410 = vmatprep.subr.mxu0 0.0
      %1411 = vmatpush1.msra.mxu0 0.0
      %1412 = vmatprep.mubr.f32.mxu0 0.0
      %1413 = vmatmul.mubr.f32.gmra.mrb[0].mxu0 %v1269
      %v1414 = vpop.f32.mrb[0].mxu0
      %v1415 = vadd.f32 0.0, %v1414
      %v1416 = vpop.f32.mrb[0].mxu0
      %1417 = vdwg.mxu0
      %v1418 = vadd.f32 %v1020, %v1344
      %v1419 = vadd.f32 %v1022, %v1346
      %v1420 = vadd.f32 %v1091, %v1415
      %s1421 = scalar_lea.vmem %s5, 24
      %v1422 = vld [vmem:[%s1421] sm:$0xff]
      %1423 = vrot.lane.b32.xlu0 %v461, 110
      %v1424 = vpop.permute.xlu0 %1423
      %1425 = vrot.lane.b32.xlu0 %v469, 110
      %v1426 = vpop.permute.xlu0 %1425
      %1427 = vrot.lane.b32.xlu0 %v462, 110
      %v1428 = vpop.permute.xlu0 %1427
      %vm1429 = vcmask 900096
      %v1430 = vsel %vm1429, %v1424, %v1426
      %v1431 = vsel %vm1429, %v1426, %v1428
      %v1433 = vsel %vm479, %v1422, 0
      %v1435 = vsel %vm483, %v1430, 0
      %v1437 = vsel %vm483, %v1431, 0
      %v1439 = vsel %vm483, %v1428, 0
      %1441 = vmatprep.subr.mxu0 %v1437
      %1442 = vmatpush1.msra.mxu0 %v1435
      %1443 = vmatprep.subr.mxu0 0.0
      %1444 = vmatpush1.msra.mxu0 0.0
      %1445 = vmatprep.subr.mxu0 0.0
      %1446 = vmatpush1.msra.mxu0 0.0
      %1447 = vmatprep.subr.mxu0 0.0
      %1448 = vmatpush1.msra.mxu0 0.0
      %1449 = vmatprep.subr.mxu0 0.0
      %1450 = vmatpush1.msra.mxu0 0.0
      %1451 = vmatprep.subr.mxu0 0.0
      %1452 = vmatpush1.msra.mxu0 0.0
      %1453 = vmatprep.subr.mxu0 0.0
      %1454 = vmatpush1.msra.mxu0 0.0
      %1455 = vmatprep.subr.mxu0 0.0
      %1456 = vmatpush1.msra.mxu0 0.0
      %1457 = vmatprep.subr.mxu0 0.0
      %1458 = vmatpush1.msra.mxu0 0.0
      %1459 = vmatprep.subr.mxu0 0.0
      %1460 = vmatpush1.msra.mxu0 0.0
      %1461 = vmatprep.subr.mxu0 0.0
      %1462 = vmatpush1.msra.mxu0 0.0
      %1463 = vmatprep.subr.mxu0 0.0
      %1464 = vmatpush1.msra.mxu0 0.0
      %1465 = vmatprep.subr.mxu0 0.0
      %1466 = vmatpush1.msra.mxu0 0.0
      %1467 = vmatprep.subr.mxu0 0.0
      %1468 = vmatpush1.msra.mxu0 0.0
      %1469 = vmatprep.subr.mxu0 0.0
      %1470 = vmatpush1.msra.mxu0 0.0
      %1471 = vmatprep.subr.mxu0 0.0
      %1472 = vmatpush1.msra.mxu0 0.0
      %1473 = vmatprep.subr.mxu0 0.0
      %1474 = vmatpush1.msra.mxu0 0.0
      %1475 = vmatprep.subr.mxu0 0.0
      %1476 = vmatpush1.msra.mxu0 0.0
      %1477 = vmatprep.subr.mxu0 0.0
      %1478 = vmatpush1.msra.mxu0 0.0
      %1479 = vmatprep.subr.mxu0 0.0
      %1480 = vmatpush1.msra.mxu0 0.0
      %1481 = vmatprep.subr.mxu0 0.0
      %1482 = vmatpush1.msra.mxu0 0.0
      %1483 = vmatprep.subr.mxu0 0.0
      %1484 = vmatpush1.msra.mxu0 0.0
      %1485 = vmatprep.subr.mxu0 0.0
      %1486 = vmatpush1.msra.mxu0 0.0
      %1487 = vmatprep.subr.mxu0 0.0
      %1488 = vmatpush1.msra.mxu0 0.0
      %1489 = vmatprep.subr.mxu0 0.0
      %1490 = vmatpush1.msra.mxu0 0.0
      %1491 = vmatprep.subr.mxu0 0.0
      %1492 = vmatpush1.msra.mxu0 0.0
      %1493 = vmatprep.subr.mxu0 0.0
      %1494 = vmatpush1.msra.mxu0 0.0
      %1495 = vmatprep.subr.mxu0 0.0
      %1496 = vmatpush1.msra.mxu0 0.0
      %1497 = vmatprep.subr.mxu0 0.0
      %1498 = vmatpush1.msra.mxu0 0.0
      %1499 = vmatprep.subr.mxu0 0.0
      %1500 = vmatpush1.msra.mxu0 0.0
      %1501 = vmatprep.subr.mxu0 0.0
      %1502 = vmatpush1.msra.mxu0 0.0
      %1503 = vmatprep.subr.mxu0 0.0
      %1504 = vmatpush1.msra.mxu0 0.0
      %1505 = vmatprep.mubr.f32.mxu0 0.0
      %1506 = vmatmul.mubr.f32.gmra.mrb[0].mxu0 %v1433
      %v1507 = vpop.f32.mrb[0].mxu0
      %v1508 = vadd.f32 0.0, %v1507
      %v1509 = vpop.f32.mrb[0].mxu0
      %v1510 = vadd.f32 0.0, %v1509
      %1511 = vdwg.mxu0
      %1512 = vmatprep.subr.mxu0 0.0
      %1513 = vmatpush1.msra.mxu0 %v1439
      %1514 = vmatprep.subr.mxu0 0.0
      %1515 = vmatpush1.msra.mxu0 0.0
      %1516 = vmatprep.subr.mxu0 0.0
      %1517 = vmatpush1.msra.mxu0 0.0
      %1518 = vmatprep.subr.mxu0 0.0
      %1519 = vmatpush1.msra.mxu0 0.0
      %1520 = vmatprep.subr.mxu0 0.0
      %1521 = vmatpush1.msra.mxu0 0.0
      %1522 = vmatprep.subr.mxu0 0.0
      %1523 = vmatpush1.msra.mxu0 0.0
      %1524 = vmatprep.subr.mxu0 0.0
      %1525 = vmatpush1.msra.mxu0 0.0
      %1526 = vmatprep.subr.mxu0 0.0
      %1527 = vmatpush1.msra.mxu0 0.0
      %1528 = vmatprep.subr.mxu0 0.0
      %1529 = vmatpush1.msra.mxu0 0.0
      %1530 = vmatprep.subr.mxu0 0.0
      %1531 = vmatpush1.msra.mxu0 0.0
      %1532 = vmatprep.subr.mxu0 0.0
      %1533 = vmatpush1.msra.mxu0 0.0
      %1534 = vmatprep.subr.mxu0 0.0
      %1535 = vmatpush1.msra.mxu0 0.0
      %1536 = vmatprep.subr.mxu0 0.0
      %1537 = vmatpush1.msra.mxu0 0.0
      %1538 = vmatprep.subr.mxu0 0.0
      %1539 = vmatpush1.msra.mxu0 0.0
      %1540 = vmatprep.subr.mxu0 0.0
      %1541 = vmatpush1.msra.mxu0 0.0
      %1542 = vmatprep.subr.mxu0 0.0
      %1543 = vmatpush1.msra.mxu0 0.0
      %1544 = vmatprep.subr.mxu0 0.0
      %1545 = vmatpush1.msra.mxu0 0.0
      %1546 = vmatprep.subr.mxu0 0.0
      %1547 = vmatpush1.msra.mxu0 0.0
      %1548 = vmatprep.subr.mxu0 0.0
      %1549 = vmatpush1.msra.mxu0 0.0
      %1550 = vmatprep.subr.mxu0 0.0
      %1551 = vmatpush1.msra.mxu0 0.0
      %1552 = vmatprep.subr.mxu0 0.0
      %1553 = vmatpush1.msra.mxu0 0.0
      %1554 = vmatprep.subr.mxu0 0.0
      %1555 = vmatpush1.msra.mxu0 0.0
      %1556 = vmatprep.subr.mxu0 0.0
      %1557 = vmatpush1.msra.mxu0 0.0
      %1558 = vmatprep.subr.mxu0 0.0
      %1559 = vmatpush1.msra.mxu0 0.0
      %1560 = vmatprep.subr.mxu0 0.0
      %1561 = vmatpush1.msra.mxu0 0.0
      %1562 = vmatprep.subr.mxu0 0.0
      %1563 = vmatpush1.msra.mxu0 0.0
      %1564 = vmatprep.subr.mxu0 0.0
      %1565 = vmatpush1.msra.mxu0 0.0
      %1566 = vmatprep.subr.mxu0 0.0
      %1567 = vmatpush1.msra.mxu0 0.0
      %1568 = vmatprep.subr.mxu0 0.0
      %1569 = vmatpush1.msra.mxu0 0.0
      %1570 = vmatprep.subr.mxu0 0.0
      %1571 = vmatpush1.msra.mxu0 0.0
      %1572 = vmatprep.subr.mxu0 0.0
      %1573 = vmatpush1.msra.mxu0 0.0
      %1574 = vmatprep.subr.mxu0 0.0
      %1575 = vmatpush1.msra.mxu0 0.0
      %1576 = vmatprep.mubr.f32.mxu0 0.0
      %1577 = vmatmul.mubr.f32.gmra.mrb[0].mxu0 %v1433
      %v1578 = vpop.f32.mrb[0].mxu0
      %v1579 = vadd.f32 0.0, %v1578
      %v1580 = vpop.f32.mrb[0].mxu0
      %1581 = vdwg.mxu0
      %v1582 = vadd.f32 %v1255, %v1508
      %v1583 = vadd.f32 %v1256, %v1510
      %v1584 = vadd.f32 %v1257, %v1579
      %s1585 = scalar_lea.vmem %s7, 24
      %v1586 = vld [vmem:[%s1585] sm:$0xff]
      %1587 = vrot.lane.b32.xlu0 %v410, 110
      %v1588 = vpop.permute.xlu0 %1587
      %1589 = vrot.lane.b32.xlu0 %v785, 110
      %v1590 = vpop.permute.xlu0 %1589
      %1591 = vrot.lane.b32.xlu0 %v411, 110
      %v1592 = vpop.permute.xlu0 %1591
      %v1593 = vsel %vm1429, %v1588, %v1590
      %v1594 = vsel %vm1429, %v1590, %v1592
      %v1596 = vsel %vm479, %v1586, 0
      %v1598 = vsel %vm483, %v1593, 0
      %v1600 = vsel %vm483, %v1594, 0
      %v1602 = vsel %vm483, %v1592, 0
      %1604 = vmatprep.subr.mxu0 %v1600
      %1605 = vmatpush1.msra.mxu0 %v1598
      %1606 = vmatprep.subr.mxu0 0.0
      %1607 = vmatpush1.msra.mxu0 0.0
      %1608 = vmatprep.subr.mxu0 0.0
      %1609 = vmatpush1.msra.mxu0 0.0
      %1610 = vmatprep.subr.mxu0 0.0
      %1611 = vmatpush1.msra.mxu0 0.0
      %1612 = vmatprep.subr.mxu0 0.0
      %1613 = vmatpush1.msra.mxu0 0.0
      %1614 = vmatprep.subr.mxu0 0.0
      %1615 = vmatpush1.msra.mxu0 0.0
      %1616 = vmatprep.subr.mxu0 0.0
      %1617 = vmatpush1.msra.mxu0 0.0
      %1618 = vmatprep.subr.mxu0 0.0
      %1619 = vmatpush1.msra.mxu0 0.0
      %1620 = vmatprep.subr.mxu0 0.0
      %1621 = vmatpush1.msra.mxu0 0.0
      %1622 = vmatprep.subr.mxu0 0.0
      %1623 = vmatpush1.msra.mxu0 0.0
      %1624 = vmatprep.subr.mxu0 0.0
      %1625 = vmatpush1.msra.mxu0 0.0
      %1626 = vmatprep.subr.mxu0 0.0
      %1627 = vmatpush1.msra.mxu0 0.0
      %1628 = vmatprep.subr.mxu0 0.0
      %1629 = vmatpush1.msra.mxu0 0.0
      %1630 = vmatprep.subr.mxu0 0.0
      %1631 = vmatpush1.msra.mxu0 0.0
      %1632 = vmatprep.subr.mxu0 0.0
      %1633 = vmatpush1.msra.mxu0 0.0
      %1634 = vmatprep.subr.mxu0 0.0
      %1635 = vmatpush1.msra.mxu0 0.0
      %1636 = vmatprep.subr.mxu0 0.0
      %1637 = vmatpush1.msra.mxu0 0.0
      %1638 = vmatprep.subr.mxu0 0.0
      %1639 = vmatpush1.msra.mxu0 0.0
      %1640 = vmatprep.subr.mxu0 0.0
      %1641 = vmatpush1.msra.mxu0 0.0
      %1642 = vmatprep.subr.mxu0 0.0
      %1643 = vmatpush1.msra.mxu0 0.0
      %1644 = vmatprep.subr.mxu0 0.0
      %1645 = vmatpush1.msra.mxu0 0.0
      %1646 = vmatprep.subr.mxu0 0.0
      %1647 = vmatpush1.msra.mxu0 0.0
      %1648 = vmatprep.subr.mxu0 0.0
      %1649 = vmatpush1.msra.mxu0 0.0
      %1650 = vmatprep.subr.mxu0 0.0
      %1651 = vmatpush1.msra.mxu0 0.0
      %1652 = vmatprep.subr.mxu0 0.0
      %1653 = vmatpush1.msra.mxu0 0.0
      %1654 = vmatprep.subr.mxu0 0.0
      %1655 = vmatpush1.msra.mxu0 0.0
      %1656 = vmatprep.subr.mxu0 0.0
      %1657 = vmatpush1.msra.mxu0 0.0
      %1658 = vmatprep.subr.mxu0 0.0
      %1659 = vmatpush1.msra.mxu0 0.0
      %1660 = vmatprep.subr.mxu0 0.0
      %1661 = vmatpush1.msra.mxu0 0.0
      %1662 = vmatprep.subr.mxu0 0.0
      %1663 = vmatpush1.msra.mxu0 0.0
      %1664 = vmatprep.subr.mxu0 0.0
      %1665 = vmatpush1.msra.mxu0 0.0
      %1666 = vmatprep.subr.mxu0 0.0
      %1667 = vmatpush1.msra.mxu0 0.0
      %1668 = vmatprep.mubr.f32.mxu0 0.0
      %1669 = vmatmul.mubr.f32.gmra.mrb[0].mxu0 %v1596
      %v1670 = vpop.f32.mrb[0].mxu0
      %v1671 = vadd.f32 0.0, %v1670
      %v1672 = vpop.f32.mrb[0].mxu0
      %v1673 = vadd.f32 0.0, %v1672
      %1674 = vdwg.mxu0
      %1675 = vmatprep.subr.mxu0 0.0
      %1676 = vmatpush1.msra.mxu0 %v1602
      %1677 = vmatprep.subr.mxu0 0.0
      %1678 = vmatpush1.msra.mxu0 0.0
      %1679 = vmatprep.subr.mxu0 0.0
      %1680 = vmatpush1.msra.mxu0 0.0
      %1681 = vmatprep.subr.mxu0 0.0
      %1682 = vmatpush1.msra.mxu0 0.0
      %1683 = vmatprep.subr.mxu0 0.0
      %1684 = vmatpush1.msra.mxu0 0.0
      %1685 = vmatprep.subr.mxu0 0.0
      %1686 = vmatpush1.msra.mxu0 0.0
      %1687 = vmatprep.subr.mxu0 0.0
      %1688 = vmatpush1.msra.mxu0 0.0
      %1689 = vmatprep.subr.mxu0 0.0
      %1690 = vmatpush1.msra.mxu0 0.0
      %1691 = vmatprep.subr.mxu0 0.0
      %1692 = vmatpush1.msra.mxu0 0.0
      %1693 = vmatprep.subr.mxu0 0.0
      %1694 = vmatpush1.msra.mxu0 0.0
      %1695 = vmatprep.subr.mxu0 0.0
      %1696 = vmatpush1.msra.mxu0 0.0
      %1697 = vmatprep.subr.mxu0 0.0
      %1698 = vmatpush1.msra.mxu0 0.0
      %1699 = vmatprep.subr.mxu0 0.0
      %1700 = vmatpush1.msra.mxu0 0.0
      %1701 = vmatprep.subr.mxu0 0.0
      %1702 = vmatpush1.msra.mxu0 0.0
      %1703 = vmatprep.subr.mxu0 0.0
      %1704 = vmatpush1.msra.mxu0 0.0
      %1705 = vmatprep.subr.mxu0 0.0
      %1706 = vmatpush1.msra.mxu0 0.0
      %1707 = vmatprep.subr.mxu0 0.0
      %1708 = vmatpush1.msra.mxu0 0.0
      %1709 = vmatprep.subr.mxu0 0.0
      %1710 = vmatpush1.msra.mxu0 0.0
      %1711 = vmatprep.subr.mxu0 0.0
      %1712 = vmatpush1.msra.mxu0 0.0
      %1713 = vmatprep.subr.mxu0 0.0
      %1714 = vmatpush1.msra.mxu0 0.0
      %1715 = vmatprep.subr.mxu0 0.0
      %1716 = vmatpush1.msra.mxu0 0.0
      %1717 = vmatprep.subr.mxu0 0.0
      %1718 = vmatpush1.msra.mxu0 0.0
      %1719 = vmatprep.subr.mxu0 0.0
      %1720 = vmatpush1.msra.mxu0 0.0
      %1721 = vmatprep.subr.mxu0 0.0
      %1722 = vmatpush1.msra.mxu0 0.0
      %1723 = vmatprep.subr.mxu0 0.0
      %1724 = vmatpush1.msra.mxu0 0.0
      %1725 = vmatprep.subr.mxu0 0.0
      %1726 = vmatpush1.msra.mxu0 0.0
      %1727 = vmatprep.subr.mxu0 0.0
      %1728 = vmatpush1.msra.mxu0 0.0
      %1729 = vmatprep.subr.mxu0 0.0
      %1730 = vmatpush1.msra.mxu0 0.0
      %1731 = vmatprep.subr.mxu0 0.0
      %1732 = vmatpush1.msra.mxu0 0.0
      %1733 = vmatprep.subr.mxu0 0.0
      %1734 = vmatpush1.msra.mxu0 0.0
      %1735 = vmatprep.subr.mxu0 0.0
      %1736 = vmatpush1.msra.mxu0 0.0
      %1737 = vmatprep.subr.mxu0 0.0
      %1738 = vmatpush1.msra.mxu0 0.0
      %1739 = vmatprep.mubr.f32.mxu0 0.0
      %1740 = vmatmul.mubr.f32.gmra.mrb[0].mxu0 %v1596
      %v1741 = vpop.f32.mrb[0].mxu0
      %v1742 = vadd.f32 0.0, %v1741
      %v1743 = vpop.f32.mrb[0].mxu0
      %1744 = vdwg.mxu0
      %v1745 = vadd.f32 %v1418, %v1671
      %v1746 = vadd.f32 %v1419, %v1673
      %v1747 = vadd.f32 %v1420, %v1742
      %s1748 = scalar_lea.vmem %s5, 32
      %v1749 = vld [vmem:[%s1748] sm:$0xff]
      %1750 = vrot.lane.b32.xlu0 %v461, 109
      %v1751 = vpop.permute.xlu0 %1750
      %1752 = vrot.lane.b32.xlu0 %v469, 109
      %v1753 = vpop.permute.xlu0 %1752
      %1754 = vrot.lane.b32.xlu0 %v462, 109
      %v1755 = vpop.permute.xlu0 %1754
      %vm1756 = vcmask 891904
      %v1757 = vsel %vm1756, %v1751, %v1753
      %v1758 = vsel %vm1756, %v1753, %v1755
      %v1760 = vsel %vm479, %v1749, 0
      %v1762 = vsel %vm483, %v1757, 0
      %v1764 = vsel %vm483, %v1758, 0
      %v1766 = vsel %vm483, %v1755, 0
      %1768 = vmatprep.subr.mxu0 %v1764
      %1769 = vmatpush1.msra.mxu0 %v1762
      %1770 = vmatprep.subr.mxu0 0.0
      %1771 = vmatpush1.msra.mxu0 0.0
      %1772 = vmatprep.subr.mxu0 0.0
      %1773 = vmatpush1.msra.mxu0 0.0
      %1774 = vmatprep.subr.mxu0 0.0
      %1775 = vmatpush1.msra.mxu0 0.0
      %1776 = vmatprep.subr.mxu0 0.0
      %1777 = vmatpush1.msra.mxu0 0.0
      %1778 = vmatprep.subr.mxu0 0.0
      %1779 = vmatpush1.msra.mxu0 0.0
      %1780 = vmatprep.subr.mxu0 0.0
      %1781 = vmatpush1.msra.mxu0 0.0
      %1782 = vmatprep.subr.mxu0 0.0
      %1783 = vmatpush1.msra.mxu0 0.0
      %1784 = vmatprep.subr.mxu0 0.0
      %1785 = vmatpush1.msra.mxu0 0.0
      %1786 = vmatprep.subr.mxu0 0.0
      %1787 = vmatpush1.msra.mxu0 0.0
      %1788 = vmatprep.subr.mxu0 0.0
      %1789 = vmatpush1.msra.mxu0 0.0
      %1790 = vmatprep.subr.mxu0 0.0
      %1791 = vmatpush1.msra.mxu0 0.0
      %1792 = vmatprep.subr.mxu0 0.0
      %1793 = vmatpush1.msra.mxu0 0.0
      %1794 = vmatprep.subr.mxu0 0.0
      %1795 = vmatpush1.msra.mxu0 0.0
      %1796 = vmatprep.subr.mxu0 0.0
      %1797 = vmatpush1.msra.mxu0 0.0
      %1798 = vmatprep.subr.mxu0 0.0
      %1799 = vmatpush1.msra.mxu0 0.0
      %1800 = vmatprep.subr.mxu0 0.0
      %1801 = vmatpush1.msra.mxu0 0.0
      %1802 = vmatprep.subr.mxu0 0.0
      %1803 = vmatpush1.msra.mxu0 0.0
      %1804 = vmatprep.subr.mxu0 0.0
      %1805 = vmatpush1.msra.mxu0 0.0
      %1806 = vmatprep.subr.mxu0 0.0
      %1807 = vmatpush1.msra.mxu0 0.0
      %1808 = vmatprep.subr.mxu0 0.0
      %1809 = vmatpush1.msra.mxu0 0.0
      %1810 = vmatprep.subr.mxu0 0.0
      %1811 = vmatpush1.msra.mxu0 0.0
      %1812 = vmatprep.subr.mxu0 0.0
      %1813 = vmatpush1.msra.mxu0 0.0
      %1814 = vmatprep.subr.mxu0 0.0
      %1815 = vmatpush1.msra.mxu0 0.0
      %1816 = vmatprep.subr.mxu0 0.0
      %1817 = vmatpush1.msra.mxu0 0.0
      %1818 = vmatprep.subr.mxu0 0.0
      %1819 = vmatpush1.msra.mxu0 0.0
      %1820 = vmatprep.subr.mxu0 0.0
      %1821 = vmatpush1.msra.mxu0 0.0
      %1822 = vmatprep.subr.mxu0 0.0
      %1823 = vmatpush1.msra.mxu0 0.0
      %1824 = vmatprep.subr.mxu0 0.0
      %1825 = vmatpush1.msra.mxu0 0.0
      %1826 = vmatprep.subr.mxu0 0.0
      %1827 = vmatpush1.msra.mxu0 0.0
      %1828 = vmatprep.subr.mxu0 0.0
      %1829 = vmatpush1.msra.mxu0 0.0
      %1830 = vmatprep.subr.mxu0 0.0
      %1831 = vmatpush1.msra.mxu0 0.0
      %1832 = vmatprep.mubr.f32.mxu0 0.0
      %1833 = vmatmul.mubr.f32.gmra.mrb[0].mxu0 %v1760
      %v1834 = vpop.f32.mrb[0].mxu0
      %v1835 = vadd.f32 0.0, %v1834
      %v1836 = vpop.f32.mrb[0].mxu0
      %v1837 = vadd.f32 0.0, %v1836
      %1838 = vdwg.mxu0
      %1839 = vmatprep.subr.mxu0 0.0
      %1840 = vmatpush1.msra.mxu0 %v1766
      %1841 = vmatprep.subr.mxu0 0.0
      %1842 = vmatpush1.msra.mxu0 0.0
      %1843 = vmatprep.subr.mxu0 0.0
      %1844 = vmatpush1.msra.mxu0 0.0
      %1845 = vmatprep.subr.mxu0 0.0
      %1846 = vmatpush1.msra.mxu0 0.0
      %1847 = vmatprep.subr.mxu0 0.0
      %1848 = vmatpush1.msra.mxu0 0.0
      %1849 = vmatprep.subr.mxu0 0.0
      %1850 = vmatpush1.msra.mxu0 0.0
      %1851 = vmatprep.subr.mxu0 0.0
      %1852 = vmatpush1.msra.mxu0 0.0
      %1853 = vmatprep.subr.mxu0 0.0
      %1854 = vmatpush1.msra.mxu0 0.0
      %1855 = vmatprep.subr.mxu0 0.0
      %1856 = vmatpush1.msra.mxu0 0.0
      %1857 = vmatprep.subr.mxu0 0.0
      %1858 = vmatpush1.msra.mxu0 0.0
      %1859 = vmatprep.subr.mxu0 0.0
      %1860 = vmatpush1.msra.mxu0 0.0
      %1861 = vmatprep.subr.mxu0 0.0
      %1862 = vmatpush1.msra.mxu0 0.0
      %1863 = vmatprep.subr.mxu0 0.0
      %1864 = vmatpush1.msra.mxu0 0.0
      %1865 = vmatprep.subr.mxu0 0.0
      %1866 = vmatpush1.msra.mxu0 0.0
      %1867 = vmatprep.subr.mxu0 0.0
      %1868 = vmatpush1.msra.mxu0 0.0
      %1869 = vmatprep.subr.mxu0 0.0
      %1870 = vmatpush1.msra.mxu0 0.0
      %1871 = vmatprep.subr.mxu0 0.0
      %1872 = vmatpush1.msra.mxu0 0.0
      %1873 = vmatprep.subr.mxu0 0.0
      %1874 = vmatpush1.msra.mxu0 0.0
      %1875 = vmatprep.subr.mxu0 0.0
      %1876 = vmatpush1.msra.mxu0 0.0
      %1877 = vmatprep.subr.mxu0 0.0
      %1878 = vmatpush1.msra.mxu0 0.0
      %1879 = vmatprep.subr.mxu0 0.0
      %1880 = vmatpush1.msra.mxu0 0.0
      %1881 = vmatprep.subr.mxu0 0.0
      %1882 = vmatpush1.msra.mxu0 0.0
      %1883 = vmatprep.subr.mxu0 0.0
      %1884 = vmatpush1.msra.mxu0 0.0
      %1885 = vmatprep.subr.mxu0 0.0
      %1886 = vmatpush1.msra.mxu0 0.0
      %1887 = vmatprep.subr.mxu0 0.0
      %1888 = vmatpush1.msra.mxu0 0.0
      %1889 = vmatprep.subr.mxu0 0.0
      %1890 = vmatpush1.msra.mxu0 0.0
      %1891 = vmatprep.subr.mxu0 0.0
      %1892 = vmatpush1.msra.mxu0 0.0
      %1893 = vmatprep.subr.mxu0 0.0
      %1894 = vmatpush1.msra.mxu0 0.0
      %1895 = vmatprep.subr.mxu0 0.0
      %1896 = vmatpush1.msra.mxu0 0.0
      %1897 = vmatprep.subr.mxu0 0.0
      %1898 = vmatpush1.msra.mxu0 0.0
      %1899 = vmatprep.subr.mxu0 0.0
      %1900 = vmatpush1.msra.mxu0 0.0
      %1901 = vmatprep.subr.mxu0 0.0
      %1902 = vmatpush1.msra.mxu0 0.0
      %1903 = vmatprep.mubr.f32.mxu0 0.0
      %1904 = vmatmul.mubr.f32.gmra.mrb[0].mxu0 %v1760
      %v1905 = vpop.f32.mrb[0].mxu0
      %v1906 = vadd.f32 0.0, %v1905
      %v1907 = vpop.f32.mrb[0].mxu0
      %1908 = vdwg.mxu0
      %v1909 = vadd.f32 %v1582, %v1835
      %v1910 = vadd.f32 %v1583, %v1837
      %v1911 = vadd.f32 %v1584, %v1906
      %s1912 = scalar_lea.vmem %s7, 32
      %v1913 = vld [vmem:[%s1912] sm:$0xff]
      %1914 = vrot.lane.b32.xlu0 %v410, 109
      %v1915 = vpop.permute.xlu0 %1914
      %1916 = vrot.lane.b32.xlu0 %v785, 109
      %v1917 = vpop.permute.xlu0 %1916
      %1918 = vrot.lane.b32.xlu0 %v411, 109
      %v1919 = vpop.permute.xlu0 %1918
      %v1920 = vsel %vm1756, %v1915, %v1917
      %v1921 = vsel %vm1756, %v1917, %v1919
      %v1923 = vsel %vm479, %v1913, 0
      %v1925 = vsel %vm483, %v1920, 0
      %v1927 = vsel %vm483, %v1921, 0
      %v1929 = vsel %vm483, %v1919, 0
      %1931 = vmatprep.subr.mxu0 %v1927
      %1932 = vmatpush1.msra.mxu0 %v1925
      %1933 = vmatprep.subr.mxu0 0.0
      %1934 = vmatpush1.msra.mxu0 0.0
      %1935 = vmatprep.subr.mxu0 0.0
      %1936 = vmatpush1.msra.mxu0 0.0
      %1937 = vmatprep.subr.mxu0 0.0
      %1938 = vmatpush1.msra.mxu0 0.0
      %1939 = vmatprep.subr.mxu0 0.0
      %1940 = vmatpush1.msra.mxu0 0.0
      %1941 = vmatprep.subr.mxu0 0.0
      %1942 = vmatpush1.msra.mxu0 0.0
      %1943 = vmatprep.subr.mxu0 0.0
      %1944 = vmatpush1.msra.mxu0 0.0
      %1945 = vmatprep.subr.mxu0 0.0
      %1946 = vmatpush1.msra.mxu0 0.0
      %1947 = vmatprep.subr.mxu0 0.0
      %1948 = vmatpush1.msra.mxu0 0.0
      %1949 = vmatprep.subr.mxu0 0.0
      %1950 = vmatpush1.msra.mxu0 0.0
      %1951 = vmatprep.subr.mxu0 0.0
      %1952 = vmatpush1.msra.mxu0 0.0
      %1953 = vmatprep.subr.mxu0 0.0
      %1954 = vmatpush1.msra.mxu0 0.0
      %1955 = vmatprep.subr.mxu0 0.0
      %1956 = vmatpush1.msra.mxu0 0.0
      %1957 = vmatprep.subr.mxu0 0.0
      %1958 = vmatpush1.msra.mxu0 0.0
      %1959 = vmatprep.subr.mxu0 0.0
      %1960 = vmatpush1.msra.mxu0 0.0
      %1961 = vmatprep.subr.mxu0 0.0
      %1962 = vmatpush1.msra.mxu0 0.0
      %1963 = vmatprep.subr.mxu0 0.0
      %1964 = vmatpush1.msra.mxu0 0.0
      %1965 = vmatprep.subr.mxu0 0.0
      %1966 = vmatpush1.msra.mxu0 0.0
      %1967 = vmatprep.subr.mxu0 0.0
      %1968 = vmatpush1.msra.mxu0 0.0
      %1969 = vmatprep.subr.mxu0 0.0
      %1970 = vmatpush1.msra.mxu0 0.0
      %1971 = vmatprep.subr.mxu0 0.0
      %1972 = vmatpush1.msra.mxu0 0.0
      %1973 = vmatprep.subr.mxu0 0.0
      %1974 = vmatpush1.msra.mxu0 0.0
      %1975 = vmatprep.subr.mxu0 0.0
      %1976 = vmatpush1.msra.mxu0 0.0
      %1977 = vmatprep.subr.mxu0 0.0
      %1978 = vmatpush1.msra.mxu0 0.0
      %1979 = vmatprep.subr.mxu0 0.0
      %1980 = vmatpush1.msra.mxu0 0.0
      %1981 = vmatprep.subr.mxu0 0.0
      %1982 = vmatpush1.msra.mxu0 0.0
      %1983 = vmatprep.subr.mxu0 0.0
      %1984 = vmatpush1.msra.mxu0 0.0
      %1985 = vmatprep.subr.mxu0 0.0
      %1986 = vmatpush1.msra.mxu0 0.0
      %1987 = vmatprep.subr.mxu0 0.0
      %1988 = vmatpush1.msra.mxu0 0.0
      %1989 = vmatprep.subr.mxu0 0.0
      %1990 = vmatpush1.msra.mxu0 0.0
      %1991 = vmatprep.subr.mxu0 0.0
      %1992 = vmatpush1.msra.mxu0 0.0
      %1993 = vmatprep.subr.mxu0 0.0
      %1994 = vmatpush1.msra.mxu0 0.0
      %1995 = vmatprep.mubr.f32.mxu0 0.0
      %1996 = vmatmul.mubr.f32.gmra.mrb[0].mxu0 %v1923
      %v1997 = vpop.f32.mrb[0].mxu0
      %v1998 = vadd.f32 0.0, %v1997
      %v1999 = vpop.f32.mrb[0].mxu0
      %v2000 = vadd.f32 0.0, %v1999
      %2001 = vdwg.mxu0
      %2002 = vmatprep.subr.mxu0 0.0
      %2003 = vmatpush1.msra.mxu0 %v1929
      %2004 = vmatprep.subr.mxu0 0.0
      %2005 = vmatpush1.msra.mxu0 0.0
      %2006 = vmatprep.subr.mxu0 0.0
      %2007 = vmatpush1.msra.mxu0 0.0
      %2008 = vmatprep.subr.mxu0 0.0
      %2009 = vmatpush1.msra.mxu0 0.0
      %2010 = vmatprep.subr.mxu0 0.0
      %2011 = vmatpush1.msra.mxu0 0.0
      %2012 = vmatprep.subr.mxu0 0.0
      %2013 = vmatpush1.msra.mxu0 0.0
      %2014 = vmatprep.subr.mxu0 0.0
      %2015 = vmatpush1.msra.mxu0 0.0
      %2016 = vmatprep.subr.mxu0 0.0
      %2017 = vmatpush1.msra.mxu0 0.0
      %2018 = vmatprep.subr.mxu0 0.0
      %2019 = vmatpush1.msra.mxu0 0.0
      %2020 = vmatprep.subr.mxu0 0.0
      %2021 = vmatpush1.msra.mxu0 0.0
      %2022 = vmatprep.subr.mxu0 0.0
      %2023 = vmatpush1.msra.mxu0 0.0
      %2024 = vmatprep.subr.mxu0 0.0
      %2025 = vmatpush1.msra.mxu0 0.0
      %2026 = vmatprep.subr.mxu0 0.0
      %2027 = vmatpush1.msra.mxu0 0.0
      %2028 = vmatprep.subr.mxu0 0.0
      %2029 = vmatpush1.msra.mxu0 0.0
      %2030 = vmatprep.subr.mxu0 0.0
      %2031 = vmatpush1.msra.mxu0 0.0
      %2032 = vmatprep.subr.mxu0 0.0
      %2033 = vmatpush1.msra.mxu0 0.0
      %2034 = vmatprep.subr.mxu0 0.0
      %2035 = vmatpush1.msra.mxu0 0.0
      %2036 = vmatprep.subr.mxu0 0.0
      %2037 = vmatpush1.msra.mxu0 0.0
      %2038 = vmatprep.subr.mxu0 0.0
      %2039 = vmatpush1.msra.mxu0 0.0
      %2040 = vmatprep.subr.mxu0 0.0
      %2041 = vmatpush1.msra.mxu0 0.0
      %2042 = vmatprep.subr.mxu0 0.0
      %2043 = vmatpush1.msra.mxu0 0.0
      %2044 = vmatprep.subr.mxu0 0.0
      %2045 = vmatpush1.msra.mxu0 0.0
      %2046 = vmatprep.subr.mxu0 0.0
      %2047 = vmatpush1.msra.mxu0 0.0
      %2048 = vmatprep.subr.mxu0 0.0
      %2049 = vmatpush1.msra.mxu0 0.0
      %2050 = vmatprep.subr.mxu0 0.0
      %2051 = vmatpush1.msra.mxu0 0.0
      %2052 = vmatprep.subr.mxu0 0.0
      %2053 = vmatpush1.msra.mxu0 0.0
      %2054 = vmatprep.subr.mxu0 0.0
      %2055 = vmatpush1.msra.mxu0 0.0
      %2056 = vmatprep.subr.mxu0 0.0
      %2057 = vmatpush1.msra.mxu0 0.0
      %2058 = vmatprep.subr.mxu0 0.0
      %2059 = vmatpush1.msra.mxu0 0.0
      %2060 = vmatprep.subr.mxu0 0.0
      %2061 = vmatpush1.msra.mxu0 0.0
      %2062 = vmatprep.subr.mxu0 0.0
      %2063 = vmatpush1.msra.mxu0 0.0
      %2064 = vmatprep.subr.mxu0 0.0
      %2065 = vmatpush1.msra.mxu0 0.0
      %2066 = vmatprep.mubr.f32.mxu0 0.0
      %2067 = vmatmul.mubr.f32.gmra.mrb[0].mxu0 %v1923
      %v2068 = vpop.f32.mrb[0].mxu0
      %v2069 = vadd.f32 0.0, %v2068
      %v2070 = vpop.f32.mrb[0].mxu0
      %2071 = vdwg.mxu0
      %v2072 = vadd.f32 %v1745, %v1998
      %v2073 = vadd.f32 %v1746, %v2000
      %v2074 = vadd.f32 %v1747, %v2069
      %s2075 = scalar_lea.vmem %s5, 40
      %v2076 = vld [vmem:[%s2075] sm:$0xff]
      %2077 = vrot.lane.b32.xlu0 %v461, 108
      %v2078 = vpop.permute.xlu0 %2077
      %2079 = vrot.lane.b32.xlu0 %v469, 108
      %v2080 = vpop.permute.xlu0 %2079
      %2081 = vrot.lane.b32.xlu0 %v462, 108
      %v2082 = vpop.permute.xlu0 %2081
      %vm2083 = vcmask 883712
      %v2084 = vsel %vm2083, %v2078, %v2080
      %v2085 = vsel %vm2083, %v2080, %v2082
      %v2087 = vsel %vm479, %v2076, 0
      %v2089 = vsel %vm483, %v2084, 0
      %v2091 = vsel %vm483, %v2085, 0
      %v2093 = vsel %vm483, %v2082, 0
      %2095 = vmatprep.subr.mxu0 %v2091
      %2096 = vmatpush1.msra.mxu0 %v2089
      %2097 = vmatprep.subr.mxu0 0.0
      %2098 = vmatpush1.msra.mxu0 0.0
      %2099 = vmatprep.subr.mxu0 0.0
      %2100 = vmatpush1.msra.mxu0 0.0
      %2101 = vmatprep.subr.mxu0 0.0
      %2102 = vmatpush1.msra.mxu0 0.0
      %2103 = vmatprep.subr.mxu0 0.0
      %2104 = vmatpush1.msra.mxu0 0.0
      %2105 = vmatprep.subr.mxu0 0.0
      %2106 = vmatpush1.msra.mxu0 0.0
      %2107 = vmatprep.subr.mxu0 0.0
      %2108 = vmatpush1.msra.mxu0 0.0
      %2109 = vmatprep.subr.mxu0 0.0
      %2110 = vmatpush1.msra.mxu0 0.0
      %2111 = vmatprep.subr.mxu0 0.0
      %2112 = vmatpush1.msra.mxu0 0.0
      %2113 = vmatprep.subr.mxu0 0.0
      %2114 = vmatpush1.msra.mxu0 0.0
      %2115 = vmatprep.subr.mxu0 0.0
      %2116 = vmatpush1.msra.mxu0 0.0
      %2117 = vmatprep.subr.mxu0 0.0
      %2118 = vmatpush1.msra.mxu0 0.0
      %2119 = vmatprep.subr.mxu0 0.0
      %2120 = vmatpush1.msra.mxu0 0.0
      %2121 = vmatprep.subr.mxu0 0.0
      %2122 = vmatpush1.msra.mxu0 0.0
      %2123 = vmatprep.subr.mxu0 0.0
      %2124 = vmatpush1.msra.mxu0 0.0
      %2125 = vmatprep.subr.mxu0 0.0
      %2126 = vmatpush1.msra.mxu0 0.0
      %2127 = vmatprep.subr.mxu0 0.0
      %2128 = vmatpush1.msra.mxu0 0.0
      %2129 = vmatprep.subr.mxu0 0.0
      %2130 = vmatpush1.msra.mxu0 0.0
      %2131 = vmatprep.subr.mxu0 0.0
      %2132 = vmatpush1.msra.mxu0 0.0
      %2133 = vmatprep.subr.mxu0 0.0
      %2134 = vmatpush1.msra.mxu0 0.0
      %2135 = vmatprep.subr.mxu0 0.0
      %2136 = vmatpush1.msra.mxu0 0.0
      %2137 = vmatprep.subr.mxu0 0.0
      %2138 = vmatpush1.msra.mxu0 0.0
      %2139 = vmatprep.subr.mxu0 0.0
      %2140 = vmatpush1.msra.mxu0 0.0
      %2141 = vmatprep.subr.mxu0 0.0
      %2142 = vmatpush1.msra.mxu0 0.0
      %2143 = vmatprep.subr.mxu0 0.0
      %2144 = vmatpush1.msra.mxu0 0.0
      %2145 = vmatprep.subr.mxu0 0.0
      %2146 = vmatpush1.msra.mxu0 0.0
      %2147 = vmatprep.subr.mxu0 0.0
      %2148 = vmatpush1.msra.mxu0 0.0
      %2149 = vmatprep.subr.mxu0 0.0
      %2150 = vmatpush1.msra.mxu0 0.0
      %2151 = vmatprep.subr.mxu0 0.0
      %2152 = vmatpush1.msra.mxu0 0.0
      %2153 = vmatprep.subr.mxu0 0.0
      %2154 = vmatpush1.msra.mxu0 0.0
      %2155 = vmatprep.subr.mxu0 0.0
      %2156 = vmatpush1.msra.mxu0 0.0
      %2157 = vmatprep.subr.mxu0 0.0
      %2158 = vmatpush1.msra.mxu0 0.0
      %2159 = vmatprep.mubr.f32.mxu0 0.0
      %2160 = vmatmul.mubr.f32.gmra.mrb[0].mxu0 %v2087
      %v2161 = vpop.f32.mrb[0].mxu0
      %v2162 = vadd.f32 0.0, %v2161
      %v2163 = vpop.f32.mrb[0].mxu0
      %v2164 = vadd.f32 0.0, %v2163
      %2165 = vdwg.mxu0
      %2166 = vmatprep.subr.mxu0 0.0
      %2167 = vmatpush1.msra.mxu0 %v2093
      %2168 = vmatprep.subr.mxu0 0.0
      %2169 = vmatpush1.msra.mxu0 0.0
      %2170 = vmatprep.subr.mxu0 0.0
      %2171 = vmatpush1.msra.mxu0 0.0
      %2172 = vmatprep.subr.mxu0 0.0
      %2173 = vmatpush1.msra.mxu0 0.0
      %2174 = vmatprep.subr.mxu0 0.0
      %2175 = vmatpush1.msra.mxu0 0.0
      %2176 = vmatprep.subr.mxu0 0.0
      %2177 = vmatpush1.msra.mxu0 0.0
      %2178 = vmatprep.subr.mxu0 0.0
      %2179 = vmatpush1.msra.mxu0 0.0
      %2180 = vmatprep.subr.mxu0 0.0
      %2181 = vmatpush1.msra.mxu0 0.0
      %2182 = vmatprep.subr.mxu0 0.0
      %2183 = vmatpush1.msra.mxu0 0.0
      %2184 = vmatprep.subr.mxu0 0.0
      %2185 = vmatpush1.msra.mxu0 0.0
      %2186 = vmatprep.subr.mxu0 0.0
      %2187 = vmatpush1.msra.mxu0 0.0
      %2188 = vmatprep.subr.mxu0 0.0
      %2189 = vmatpush1.msra.mxu0 0.0
      %2190 = vmatprep.subr.mxu0 0.0
      %2191 = vmatpush1.msra.mxu0 0.0
      %2192 = vmatprep.subr.mxu0 0.0
      %2193 = vmatpush1.msra.mxu0 0.0
      %2194 = vmatprep.subr.mxu0 0.0
      %2195 = vmatpush1.msra.mxu0 0.0
      %2196 = vmatprep.subr.mxu0 0.0
      %2197 = vmatpush1.msra.mxu0 0.0
      %2198 = vmatprep.subr.mxu0 0.0
      %2199 = vmatpush1.msra.mxu0 0.0
      %2200 = vmatprep.subr.mxu0 0.0
      %2201 = vmatpush1.msra.mxu0 0.0
      %2202 = vmatprep.subr.mxu0 0.0
      %2203 = vmatpush1.msra.mxu0 0.0
      %2204 = vmatprep.subr.mxu0 0.0
      %2205 = vmatpush1.msra.mxu0 0.0
      %2206 = vmatprep.subr.mxu0 0.0
      %2207 = vmatpush1.msra.mxu0 0.0
      %2208 = vmatprep.subr.mxu0 0.0
      %2209 = vmatpush1.msra.mxu0 0.0
      %2210 = vmatprep.subr.mxu0 0.0
      %2211 = vmatpush1.msra.mxu0 0.0
      %2212 = vmatprep.subr.mxu0 0.0
      %2213 = vmatpush1.msra.mxu0 0.0
      %2214 = vmatprep.subr.mxu0 0.0
      %2215 = vmatpush1.msra.mxu0 0.0
      %2216 = vmatprep.subr.mxu0 0.0
      %2217 = vmatpush1.msra.mxu0 0.0
      %2218 = vmatprep.subr.mxu0 0.0
      %2219 = vmatpush1.msra.mxu0 0.0
      %2220 = vmatprep.subr.mxu0 0.0
      %2221 = vmatpush1.msra.mxu0 0.0
      %2222 = vmatprep.subr.mxu0 0.0
      %2223 = vmatpush1.msra.mxu0 0.0
      %2224 = vmatprep.subr.mxu0 0.0
      %2225 = vmatpush1.msra.mxu0 0.0
      %2226 = vmatprep.subr.mxu0 0.0
      %2227 = vmatpush1.msra.mxu0 0.0
      %2228 = vmatprep.subr.mxu0 0.0
      %2229 = vmatpush1.msra.mxu0 0.0
      %2230 = vmatprep.mubr.f32.mxu0 0.0
      %2231 = vmatmul.mubr.f32.gmra.mrb[0].mxu0 %v2087
      %v2232 = vpop.f32.mrb[0].mxu0
      %v2233 = vadd.f32 0.0, %v2232
      %v2234 = vpop.f32.mrb[0].mxu0
      %2235 = vdwg.mxu0
      %v2236 = vadd.f32 %v1909, %v2162
      %v2237 = vadd.f32 %v1910, %v2164
      %v2238 = vadd.f32 %v1911, %v2233
      %s2239 = scalar_lea.vmem %s7, 40
      %v2240 = vld [vmem:[%s2239] sm:$0xff]
      %2241 = vrot.lane.b32.xlu0 %v410, 108
      %v2242 = vpop.permute.xlu0 %2241
      %2243 = vrot.lane.b32.xlu0 %v785, 108
      %v2244 = vpop.permute.xlu0 %2243
      %2245 = vrot.lane.b32.xlu0 %v411, 108
      %v2246 = vpop.permute.xlu0 %2245
      %v2247 = vsel %vm2083, %v2242, %v2244
      %v2248 = vsel %vm2083, %v2244, %v2246
      %v2250 = vsel %vm479, %v2240, 0
      %v2252 = vsel %vm483, %v2247, 0
      %v2254 = vsel %vm483, %v2248, 0
      %v2256 = vsel %vm483, %v2246, 0
      %2258 = vmatprep.subr.mxu0 %v2254
      %2259 = vmatpush1.msra.mxu0 %v2252
      %2260 = vmatprep.subr.mxu0 0.0
      %2261 = vmatpush1.msra.mxu0 0.0
      %2262 = vmatprep.subr.mxu0 0.0
      %2263 = vmatpush1.msra.mxu0 0.0
      %2264 = vmatprep.subr.mxu0 0.0
      %2265 = vmatpush1.msra.mxu0 0.0
      %2266 = vmatprep.subr.mxu0 0.0
      %2267 = vmatpush1.msra.mxu0 0.0
      %2268 = vmatprep.subr.mxu0 0.0
      %2269 = vmatpush1.msra.mxu0 0.0
      %2270 = vmatprep.subr.mxu0 0.0
      %2271 = vmatpush1.msra.mxu0 0.0
      %2272 = vmatprep.subr.mxu0 0.0
      %2273 = vmatpush1.msra.mxu0 0.0
      %2274 = vmatprep.subr.mxu0 0.0
      %2275 = vmatpush1.msra.mxu0 0.0
      %2276 = vmatprep.subr.mxu0 0.0
      %2277 = vmatpush1.msra.mxu0 0.0
      %2278 = vmatprep.subr.mxu0 0.0
      %2279 = vmatpush1.msra.mxu0 0.0
      %2280 = vmatprep.subr.mxu0 0.0
      %2281 = vmatpush1.msra.mxu0 0.0
      %2282 = vmatprep.subr.mxu0 0.0
      %2283 = vmatpush1.msra.mxu0 0.0
      %2284 = vmatprep.subr.mxu0 0.0
      %2285 = vmatpush1.msra.mxu0 0.0
      %2286 = vmatprep.subr.mxu0 0.0
      %2287 = vmatpush1.msra.mxu0 0.0
      %2288 = vmatprep.subr.mxu0 0.0
      %2289 = vmatpush1.msra.mxu0 0.0
      %2290 = vmatprep.subr.mxu0 0.0
      %2291 = vmatpush1.msra.mxu0 0.0
      %2292 = vmatprep.subr.mxu0 0.0
      %2293 = vmatpush1.msra.mxu0 0.0
      %2294 = vmatprep.subr.mxu0 0.0
      %2295 = vmatpush1.msra.mxu0 0.0
      %2296 = vmatprep.subr.mxu0 0.0
      %2297 = vmatpush1.msra.mxu0 0.0
      %2298 = vmatprep.subr.mxu0 0.0
      %2299 = vmatpush1.msra.mxu0 0.0
      %2300 = vmatprep.subr.mxu0 0.0
      %2301 = vmatpush1.msra.mxu0 0.0
      %2302 = vmatprep.subr.mxu0 0.0
      %2303 = vmatpush1.msra.mxu0 0.0
      %2304 = vmatprep.subr.mxu0 0.0
      %2305 = vmatpush1.msra.mxu0 0.0
      %2306 = vmatprep.subr.mxu0 0.0
      %2307 = vmatpush1.msra.mxu0 0.0
      %2308 = vmatprep.subr.mxu0 0.0
      %2309 = vmatpush1.msra.mxu0 0.0
      %2310 = vmatprep.subr.mxu0 0.0
      %2311 = vmatpush1.msra.mxu0 0.0
      %2312 = vmatprep.subr.mxu0 0.0
      %2313 = vmatpush1.msra.mxu0 0.0
      %2314 = vmatprep.subr.mxu0 0.0
      %2315 = vmatpush1.msra.mxu0 0.0
      %2316 = vmatprep.subr.mxu0 0.0
      %2317 = vmatpush1.msra.mxu0 0.0
      %2318 = vmatprep.subr.mxu0 0.0
      %2319 = vmatpush1.msra.mxu0 0.0
      %2320 = vmatprep.subr.mxu0 0.0
      %2321 = vmatpush1.msra.mxu0 0.0
      %2322 = vmatprep.mubr.f32.mxu0 0.0
      %2323 = vmatmul.mubr.f32.gmra.mrb[0].mxu0 %v2250
      %v2324 = vpop.f32.mrb[0].mxu0
      %v2325 = vadd.f32 0.0, %v2324
      %v2326 = vpop.f32.mrb[0].mxu0
      %v2327 = vadd.f32 0.0, %v2326
      %2328 = vdwg.mxu0
      %2329 = vmatprep.subr.mxu0 0.0
      %2330 = vmatpush1.msra.mxu0 %v2256
      %2331 = vmatprep.subr.mxu0 0.0
      %2332 = vmatpush1.msra.mxu0 0.0
      %2333 = vmatprep.subr.mxu0 0.0
      %2334 = vmatpush1.msra.mxu0 0.0
      %2335 = vmatprep.subr.mxu0 0.0
      %2336 = vmatpush1.msra.mxu0 0.0
      %2337 = vmatprep.subr.mxu0 0.0
      %2338 = vmatpush1.msra.mxu0 0.0
      %2339 = vmatprep.subr.mxu0 0.0
      %2340 = vmatpush1.msra.mxu0 0.0
      %2341 = vmatprep.subr.mxu0 0.0
      %2342 = vmatpush1.msra.mxu0 0.0
      %2343 = vmatprep.subr.mxu0 0.0
      %2344 = vmatpush1.msra.mxu0 0.0
      %2345 = vmatprep.subr.mxu0 0.0
      %2346 = vmatpush1.msra.mxu0 0.0
      %2347 = vmatprep.subr.mxu0 0.0
      %2348 = vmatpush1.msra.mxu0 0.0
      %2349 = vmatprep.subr.mxu0 0.0
      %2350 = vmatpush1.msra.mxu0 0.0
      %2351 = vmatprep.subr.mxu0 0.0
      %2352 = vmatpush1.msra.mxu0 0.0
      %2353 = vmatprep.subr.mxu0 0.0
      %2354 = vmatpush1.msra.mxu0 0.0
      %2355 = vmatprep.subr.mxu0 0.0
      %2356 = vmatpush1.msra.mxu0 0.0
      %2357 = vmatprep.subr.mxu0 0.0
      %2358 = vmatpush1.msra.mxu0 0.0
      %2359 = vmatprep.subr.mxu0 0.0
      %2360 = vmatpush1.msra.mxu0 0.0
      %2361 = vmatprep.subr.mxu0 0.0
      %2362 = vmatpush1.msra.mxu0 0.0
      %2363 = vmatprep.subr.mxu0 0.0
      %2364 = vmatpush1.msra.mxu0 0.0
      %2365 = vmatprep.subr.mxu0 0.0
      %2366 = vmatpush1.msra.mxu0 0.0
      %2367 = vmatprep.subr.mxu0 0.0
      %2368 = vmatpush1.msra.mxu0 0.0
      %2369 = vmatprep.subr.mxu0 0.0
      %2370 = vmatpush1.msra.mxu0 0.0
      %2371 = vmatprep.subr.mxu0 0.0
      %2372 = vmatpush1.msra.mxu0 0.0
      %2373 = vmatprep.subr.mxu0 0.0
      %2374 = vmatpush1.msra.mxu0 0.0
      %2375 = vmatprep.subr.mxu0 0.0
      %2376 = vmatpush1.msra.mxu0 0.0
      %2377 = vmatprep.subr.mxu0 0.0
      %2378 = vmatpush1.msra.mxu0 0.0
      %2379 = vmatprep.subr.mxu0 0.0
      %2380 = vmatpush1.msra.mxu0 0.0
      %2381 = vmatprep.subr.mxu0 0.0
      %2382 = vmatpush1.msra.mxu0 0.0
      %2383 = vmatprep.subr.mxu0 0.0
      %2384 = vmatpush1.msra.mxu0 0.0
      %2385 = vmatprep.subr.mxu0 0.0
      %2386 = vmatpush1.msra.mxu0 0.0
      %2387 = vmatprep.subr.mxu0 0.0
      %2388 = vmatpush1.msra.mxu0 0.0
      %2389 = vmatprep.subr.mxu0 0.0
      %2390 = vmatpush1.msra.mxu0 0.0
      %2391 = vmatprep.subr.mxu0 0.0
      %2392 = vmatpush1.msra.mxu0 0.0
      %2393 = vmatprep.mubr.f32.mxu0 0.0
      %2394 = vmatmul.mubr.f32.gmra.mrb[0].mxu0 %v2250
      %v2395 = vpop.f32.mrb[0].mxu0
      %v2396 = vadd.f32 0.0, %v2395
      %v2397 = vpop.f32.mrb[0].mxu0
      %2398 = vdwg.mxu0
      %v2399 = vadd.f32 %v2072, %v2325
      %v2400 = vadd.f32 %v2073, %v2327
      %v2401 = vadd.f32 %v2074, %v2396
      %s2402 = scalar_lea.vmem %s5, 48
      %v2403 = vld [vmem:[%s2402] sm:$0xff]
      %2404 = vrot.lane.b32.xlu0 %v461, 92
      %v2405 = vpop.permute.xlu0 %2404
      %2406 = vrot.lane.b32.xlu0 %v469, 92
      %v2407 = vpop.permute.xlu0 %2406
      %2408 = vrot.lane.b32.xlu0 %v462, 92
      %v2409 = vpop.permute.xlu0 %2408
      %vm2410 = vcmask 752640
      %v2411 = vsel %vm2410, %v2405, %v2407
      %v2412 = vsel %vm2410, %v2407, %v2409
      %v2414 = vsel %vm479, %v2403, 0
      %v2416 = vsel %vm483, %v2411, 0
      %v2418 = vsel %vm483, %v2412, 0
      %v2420 = vsel %vm483, %v2409, 0
      %2422 = vmatprep.subr.mxu0 %v2418
      %2423 = vmatpush1.msra.mxu0 %v2416
      %2424 = vmatprep.subr.mxu0 0.0
      %2425 = vmatpush1.msra.mxu0 0.0
      %2426 = vmatprep.subr.mxu0 0.0
      %2427 = vmatpush1.msra.mxu0 0.0
      %2428 = vmatprep.subr.mxu0 0.0
      %2429 = vmatpush1.msra.mxu0 0.0
      %2430 = vmatprep.subr.mxu0 0.0
      %2431 = vmatpush1.msra.mxu0 0.0
      %2432 = vmatprep.subr.mxu0 0.0
      %2433 = vmatpush1.msra.mxu0 0.0
      %2434 = vmatprep.subr.mxu0 0.0
      %2435 = vmatpush1.msra.mxu0 0.0
      %2436 = vmatprep.subr.mxu0 0.0
      %2437 = vmatpush1.msra.mxu0 0.0
      %2438 = vmatprep.subr.mxu0 0.0
      %2439 = vmatpush1.msra.mxu0 0.0
      %2440 = vmatprep.subr.mxu0 0.0
      %2441 = vmatpush1.msra.mxu0 0.0
      %2442 = vmatprep.subr.mxu0 0.0
      %2443 = vmatpush1.msra.mxu0 0.0
      %2444 = vmatprep.subr.mxu0 0.0
      %2445 = vmatpush1.msra.mxu0 0.0
      %2446 = vmatprep.subr.mxu0 0.0
      %2447 = vmatpush1.msra.mxu0 0.0
      %2448 = vmatprep.subr.mxu0 0.0
      %2449 = vmatpush1.msra.mxu0 0.0
      %2450 = vmatprep.subr.mxu0 0.0
      %2451 = vmatpush1.msra.mxu0 0.0
      %2452 = vmatprep.subr.mxu0 0.0
      %2453 = vmatpush1.msra.mxu0 0.0
      %2454 = vmatprep.subr.mxu0 0.0
      %2455 = vmatpush1.msra.mxu0 0.0
      %2456 = vmatprep.subr.mxu0 0.0
      %2457 = vmatpush1.msra.mxu0 0.0
      %2458 = vmatprep.subr.mxu0 0.0
      %2459 = vmatpush1.msra.mxu0 0.0
      %2460 = vmatprep.subr.mxu0 0.0
      %2461 = vmatpush1.msra.mxu0 0.0
      %2462 = vmatprep.subr.mxu0 0.0
      %2463 = vmatpush1.msra.mxu0 0.0
      %2464 = vmatprep.subr.mxu0 0.0
      %2465 = vmatpush1.msra.mxu0 0.0
      %2466 = vmatprep.subr.mxu0 0.0
      %2467 = vmatpush1.msra.mxu0 0.0
      %2468 = vmatprep.subr.mxu0 0.0
      %2469 = vmatpush1.msra.mxu0 0.0
      %2470 = vmatprep.subr.mxu0 0.0
      %2471 = vmatpush1.msra.mxu0 0.0
      %2472 = vmatprep.subr.mxu0 0.0
      %2473 = vmatpush1.msra.mxu0 0.0
      %2474 = vmatprep.subr.mxu0 0.0
      %2475 = vmatpush1.msra.mxu0 0.0
      %2476 = vmatprep.subr.mxu0 0.0
      %2477 = vmatpush1.msra.mxu0 0.0
      %2478 = vmatprep.subr.mxu0 0.0
      %2479 = vmatpush1.msra.mxu0 0.0
      %2480 = vmatprep.subr.mxu0 0.0
      %2481 = vmatpush1.msra.mxu0 0.0
      %2482 = vmatprep.subr.mxu0 0.0
      %2483 = vmatpush1.msra.mxu0 0.0
      %2484 = vmatprep.subr.mxu0 0.0
      %2485 = vmatpush1.msra.mxu0 0.0
      %2486 = vmatprep.mubr.f32.mxu0 0.0
      %2487 = vmatmul.mubr.f32.gmra.mrb[0].mxu0 %v2414
      %v2488 = vpop.f32.mrb[0].mxu0
      %v2489 = vadd.f32 0.0, %v2488
      %v2490 = vpop.f32.mrb[0].mxu0
      %v2491 = vadd.f32 0.0, %v2490
      %2492 = vdwg.mxu0
      %2493 = vmatprep.subr.mxu0 0.0
      %2494 = vmatpush1.msra.mxu0 %v2420
      %2495 = vmatprep.subr.mxu0 0.0
      %2496 = vmatpush1.msra.mxu0 0.0
      %2497 = vmatprep.subr.mxu0 0.0
      %2498 = vmatpush1.msra.mxu0 0.0
      %2499 = vmatprep.subr.mxu0 0.0
      %2500 = vmatpush1.msra.mxu0 0.0
      %2501 = vmatprep.subr.mxu0 0.0
      %2502 = vmatpush1.msra.mxu0 0.0
      %2503 = vmatprep.subr.mxu0 0.0
      %2504 = vmatpush1.msra.mxu0 0.0
      %2505 = vmatprep.subr.mxu0 0.0
      %2506 = vmatpush1.msra.mxu0 0.0
      %2507 = vmatprep.subr.mxu0 0.0
      %2508 = vmatpush1.msra.mxu0 0.0
      %2509 = vmatprep.subr.mxu0 0.0
      %2510 = vmatpush1.msra.mxu0 0.0
      %2511 = vmatprep.subr.mxu0 0.0
      %2512 = vmatpush1.msra.mxu0 0.0
      %2513 = vmatprep.subr.mxu0 0.0
      %2514 = vmatpush1.msra.mxu0 0.0
      %2515 = vmatprep.subr.mxu0 0.0
      %2516 = vmatpush1.msra.mxu0 0.0
      %2517 = vmatprep.subr.mxu0 0.0
      %2518 = vmatpush1.msra.mxu0 0.0
      %2519 = vmatprep.subr.mxu0 0.0
      %2520 = vmatpush1.msra.mxu0 0.0
      %2521 = vmatprep.subr.mxu0 0.0
      %2522 = vmatpush1.msra.mxu0 0.0
      %2523 = vmatprep.subr.mxu0 0.0
      %2524 = vmatpush1.msra.mxu0 0.0
      %2525 = vmatprep.subr.mxu0 0.0
      %2526 = vmatpush1.msra.mxu0 0.0
      %2527 = vmatprep.subr.mxu0 0.0
      %2528 = vmatpush1.msra.mxu0 0.0
      %2529 = vmatprep.subr.mxu0 0.0
      %2530 = vmatpush1.msra.mxu0 0.0
      %2531 = vmatprep.subr.mxu0 0.0
      %2532 = vmatpush1.msra.mxu0 0.0
      %2533 = vmatprep.subr.mxu0 0.0
      %2534 = vmatpush1.msra.mxu0 0.0
      %2535 = vmatprep.subr.mxu0 0.0
      %2536 = vmatpush1.msra.mxu0 0.0
      %2537 = vmatprep.subr.mxu0 0.0
      %2538 = vmatpush1.msra.mxu0 0.0
      %2539 = vmatprep.subr.mxu0 0.0
      %2540 = vmatpush1.msra.mxu0 0.0
      %2541 = vmatprep.subr.mxu0 0.0
      %2542 = vmatpush1.msra.mxu0 0.0
      %2543 = vmatprep.subr.mxu0 0.0
      %2544 = vmatpush1.msra.mxu0 0.0
      %2545 = vmatprep.subr.mxu0 0.0
      %2546 = vmatpush1.msra.mxu0 0.0
      %2547 = vmatprep.subr.mxu0 0.0
      %2548 = vmatpush1.msra.mxu0 0.0
      %2549 = vmatprep.subr.mxu0 0.0
      %2550 = vmatpush1.msra.mxu0 0.0
      %2551 = vmatprep.subr.mxu0 0.0
      %2552 = vmatpush1.msra.mxu0 0.0
      %2553 = vmatprep.subr.mxu0 0.0
      %2554 = vmatpush1.msra.mxu0 0.0
      %2555 = vmatprep.subr.mxu0 0.0
      %2556 = vmatpush1.msra.mxu0 0.0
      %2557 = vmatprep.mubr.f32.mxu0 0.0
      %2558 = vmatmul.mubr.f32.gmra.mrb[0].mxu0 %v2414
      %v2559 = vpop.f32.mrb[0].mxu0
      %v2560 = vadd.f32 0.0, %v2559
      %v2561 = vpop.f32.mrb[0].mxu0
      %2562 = vdwg.mxu0
      %v2563 = vadd.f32 %v2236, %v2489
      %v2564 = vadd.f32 %v2237, %v2491
      %v2565 = vadd.f32 %v2238, %v2560
      %s2566 = scalar_lea.vmem %s7, 48
      %v2567 = vld [vmem:[%s2566] sm:$0xff]
      %2568 = vrot.lane.b32.xlu0 %v410, 92
      %v2569 = vpop.permute.xlu0 %2568
      %2570 = vrot.lane.b32.xlu0 %v785, 92
      %v2571 = vpop.permute.xlu0 %2570
      %2572 = vrot.lane.b32.xlu0 %v411, 92
      %v2573 = vpop.permute.xlu0 %2572
      %v2574 = vsel %vm2410, %v2569, %v2571
      %v2575 = vsel %vm2410, %v2571, %v2573
      %v2577 = vsel %vm479, %v2567, 0
      %v2579 = vsel %vm483, %v2574, 0
      %v2581 = vsel %vm483, %v2575, 0
      %v2583 = vsel %vm483, %v2573, 0
      %2585 = vmatprep.subr.mxu0 %v2581
      %2586 = vmatpush1.msra.mxu0 %v2579
      %2587 = vmatprep.subr.mxu0 0.0
      %2588 = vmatpush1.msra.mxu0 0.0
      %2589 = vmatprep.subr.mxu0 0.0
      %2590 = vmatpush1.msra.mxu0 0.0
      %2591 = vmatprep.subr.mxu0 0.0
      %2592 = vmatpush1.msra.mxu0 0.0
      %2593 = vmatprep.subr.mxu0 0.0
      %2594 = vmatpush1.msra.mxu0 0.0
      %2595 = vmatprep.subr.mxu0 0.0
      %2596 = vmatpush1.msra.mxu0 0.0
      %2597 = vmatprep.subr.mxu0 0.0
      %2598 = vmatpush1.msra.mxu0 0.0
      %2599 = vmatprep.subr.mxu0 0.0
      %2600 = vmatpush1.msra.mxu0 0.0
      %2601 = vmatprep.subr.mxu0 0.0
      %2602 = vmatpush1.msra.mxu0 0.0
      %2603 = vmatprep.subr.mxu0 0.0
      %2604 = vmatpush1.msra.mxu0 0.0
      %2605 = vmatprep.subr.mxu0 0.0
      %2606 = vmatpush1.msra.mxu0 0.0
      %2607 = vmatprep.subr.mxu0 0.0
      %2608 = vmatpush1.msra.mxu0 0.0
      %2609 = vmatprep.subr.mxu0 0.0
      %2610 = vmatpush1.msra.mxu0 0.0
      %2611 = vmatprep.subr.mxu0 0.0
      %2612 = vmatpush1.msra.mxu0 0.0
      %2613 = vmatprep.subr.mxu0 0.0
      %2614 = vmatpush1.msra.mxu0 0.0
      %2615 = vmatprep.subr.mxu0 0.0
      %2616 = vmatpush1.msra.mxu0 0.0
      %2617 = vmatprep.subr.mxu0 0.0
      %2618 = vmatpush1.msra.mxu0 0.0
      %2619 = vmatprep.subr.mxu0 0.0
      %2620 = vmatpush1.msra.mxu0 0.0
      %2621 = vmatprep.subr.mxu0 0.0
      %2622 = vmatpush1.msra.mxu0 0.0
      %2623 = vmatprep.subr.mxu0 0.0
      %2624 = vmatpush1.msra.mxu0 0.0
      %2625 = vmatprep.subr.mxu0 0.0
      %2626 = vmatpush1.msra.mxu0 0.0
      %2627 = vmatprep.subr.mxu0 0.0
      %2628 = vmatpush1.msra.mxu0 0.0
      %2629 = vmatprep.subr.mxu0 0.0
      %2630 = vmatpush1.msra.mxu0 0.0
      %2631 = vmatprep.subr.mxu0 0.0
      %2632 = vmatpush1.msra.mxu0 0.0
      %2633 = vmatprep.subr.mxu0 0.0
      %2634 = vmatpush1.msra.mxu0 0.0
      %2635 = vmatprep.subr.mxu0 0.0
      %2636 = vmatpush1.msra.mxu0 0.0
      %2637 = vmatprep.subr.mxu0 0.0
      %2638 = vmatpush1.msra.mxu0 0.0
      %2639 = vmatprep.subr.mxu0 0.0
      %2640 = vmatpush1.msra.mxu0 0.0
      %2641 = vmatprep.subr.mxu0 0.0
      %2642 = vmatpush1.msra.mxu0 0.0
      %2643 = vmatprep.subr.mxu0 0.0
      %2644 = vmatpush1.msra.mxu0 0.0
      %2645 = vmatprep.subr.mxu0 0.0
      %2646 = vmatpush1.msra.mxu0 0.0
      %2647 = vmatprep.subr.mxu0 0.0
      %2648 = vmatpush1.msra.mxu0 0.0
      %2649 = vmatprep.mubr.f32.mxu0 0.0
      %2650 = vmatmul.mubr.f32.gmra.mrb[0].mxu0 %v2577
      %v2651 = vpop.f32.mrb[0].mxu0
      %v2652 = vadd.f32 0.0, %v2651
      %v2653 = vpop.f32.mrb[0].mxu0
      %v2654 = vadd.f32 0.0, %v2653
      %2655 = vdwg.mxu0
      %2656 = vmatprep.subr.mxu0 0.0
      %2657 = vmatpush1.msra.mxu0 %v2583
      %2658 = vmatprep.subr.mxu0 0.0
      %2659 = vmatpush1.msra.mxu0 0.0
      %2660 = vmatprep.subr.mxu0 0.0
      %2661 = vmatpush1.msra.mxu0 0.0
      %2662 = vmatprep.subr.mxu0 0.0
      %2663 = vmatpush1.msra.mxu0 0.0
      %2664 = vmatprep.subr.mxu0 0.0
      %2665 = vmatpush1.msra.mxu0 0.0
      %2666 = vmatprep.subr.mxu0 0.0
      %2667 = vmatpush1.msra.mxu0 0.0
      %2668 = vmatprep.subr.mxu0 0.0
      %2669 = vmatpush1.msra.mxu0 0.0
      %2670 = vmatprep.subr.mxu0 0.0
      %2671 = vmatpush1.msra.mxu0 0.0
      %2672 = vmatprep.subr.mxu0 0.0
      %2673 = vmatpush1.msra.mxu0 0.0
      %2674 = vmatprep.subr.mxu0 0.0
      %2675 = vmatpush1.msra.mxu0 0.0
      %2676 = vmatprep.subr.mxu0 0.0
      %2677 = vmatpush1.msra.mxu0 0.0
      %2678 = vmatprep.subr.mxu0 0.0
      %2679 = vmatpush1.msra.mxu0 0.0
      %2680 = vmatprep.subr.mxu0 0.0
      %2681 = vmatpush1.msra.mxu0 0.0
      %2682 = vmatprep.subr.mxu0 0.0
      %2683 = vmatpush1.msra.mxu0 0.0
      %2684 = vmatprep.subr.mxu0 0.0
      %2685 = vmatpush1.msra.mxu0 0.0
      %2686 = vmatprep.subr.mxu0 0.0
      %2687 = vmatpush1.msra.mxu0 0.0
      %2688 = vmatprep.subr.mxu0 0.0
      %2689 = vmatpush1.msra.mxu0 0.0
      %2690 = vmatprep.subr.mxu0 0.0
      %2691 = vmatpush1.msra.mxu0 0.0
      %2692 = vmatprep.subr.mxu0 0.0
      %2693 = vmatpush1.msra.mxu0 0.0
      %2694 = vmatprep.subr.mxu0 0.0
      %2695 = vmatpush1.msra.mxu0 0.0
      %2696 = vmatprep.subr.mxu0 0.0
      %2697 = vmatpush1.msra.mxu0 0.0
      %2698 = vmatprep.subr.mxu0 0.0
      %2699 = vmatpush1.msra.mxu0 0.0
      %2700 = vmatprep.subr.mxu0 0.0
      %2701 = vmatpush1.msra.mxu0 0.0
      %2702 = vmatprep.subr.mxu0 0.0
      %2703 = vmatpush1.msra.mxu0 0.0
      %2704 = vmatprep.subr.mxu0 0.0
      %2705 = vmatpush1.msra.mxu0 0.0
      %2706 = vmatprep.subr.mxu0 0.0
      %2707 = vmatpush1.msra.mxu0 0.0
      %2708 = vmatprep.subr.mxu0 0.0
      %2709 = vmatpush1.msra.mxu0 0.0
      %2710 = vmatprep.subr.mxu0 0.0
      %2711 = vmatpush1.msra.mxu0 0.0
      %2712 = vmatprep.subr.mxu0 0.0
      %2713 = vmatpush1.msra.mxu0 0.0
      %2714 = vmatprep.subr.mxu0 0.0
      %2715 = vmatpush1.msra.mxu0 0.0
      %2716 = vmatprep.subr.mxu0 0.0
      %2717 = vmatpush1.msra.mxu0 0.0
      %2718 = vmatprep.subr.mxu0 0.0
      %2719 = vmatpush1.msra.mxu0 0.0
      %2720 = vmatprep.mubr.f32.mxu0 0.0
      %2721 = vmatmul.mubr.f32.gmra.mrb[0].mxu0 %v2577
      %v2722 = vpop.f32.mrb[0].mxu0
      %v2723 = vadd.f32 0.0, %v2722
      %v2724 = vpop.f32.mrb[0].mxu0
      %2725 = vdwg.mxu0
      %v2726 = vadd.f32 %v2399, %v2652
      %v2727 = vadd.f32 %v2400, %v2654
      %v2728 = vadd.f32 %v2401, %v2723
      %s2729 = scalar_lea.vmem %s5, 56
      %v2730 = vld [vmem:[%s2729] sm:$0xff]
      %2731 = vrot.lane.b32.xlu0 %v461, 91
      %v2732 = vpop.permute.xlu0 %2731
      %2733 = vrot.lane.b32.xlu0 %v469, 91
      %v2734 = vpop.permute.xlu0 %2733
      %2735 = vrot.lane.b32.xlu0 %v462, 91
      %v2736 = vpop.permute.xlu0 %2735
      %vm2737 = vcmask 744448
      %v2738 = vsel %vm2737, %v2732, %v2734
      %v2739 = vsel %vm2737, %v2734, %v2736
      %v2741 = vsel %vm479, %v2730, 0
      %v2743 = vsel %vm483, %v2738, 0
      %v2745 = vsel %vm483, %v2739, 0
      %v2747 = vsel %vm483, %v2736, 0
      %2749 = vmatprep.subr.mxu0 %v2745
      %2750 = vmatpush1.msra.mxu0 %v2743
      %2751 = vmatprep.subr.mxu0 0.0
      %2752 = vmatpush1.msra.mxu0 0.0
      %2753 = vmatprep.subr.mxu0 0.0
      %2754 = vmatpush1.msra.mxu0 0.0
      %2755 = vmatprep.subr.mxu0 0.0
      %2756 = vmatpush1.msra.mxu0 0.0
      %2757 = vmatprep.subr.mxu0 0.0
      %2758 = vmatpush1.msra.mxu0 0.0
      %2759 = vmatprep.subr.mxu0 0.0
      %2760 = vmatpush1.msra.mxu0 0.0
      %2761 = vmatprep.subr.mxu0 0.0
      %2762 = vmatpush1.msra.mxu0 0.0
      %2763 = vmatprep.subr.mxu0 0.0
      %2764 = vmatpush1.msra.mxu0 0.0
      %2765 = vmatprep.subr.mxu0 0.0
      %2766 = vmatpush1.msra.mxu0 0.0
      %2767 = vmatprep.subr.mxu0 0.0
      %2768 = vmatpush1.msra.mxu0 0.0
      %2769 = vmatprep.subr.mxu0 0.0
      %2770 = vmatpush1.msra.mxu0 0.0
      %2771 = vmatprep.subr.mxu0 0.0
      %2772 = vmatpush1.msra.mxu0 0.0
      %2773 = vmatprep.subr.mxu0 0.0
      %2774 = vmatpush1.msra.mxu0 0.0
      %2775 = vmatprep.subr.mxu0 0.0
      %2776 = vmatpush1.msra.mxu0 0.0
      %2777 = vmatprep.subr.mxu0 0.0
      %2778 = vmatpush1.msra.mxu0 0.0
      %2779 = vmatprep.subr.mxu0 0.0
      %2780 = vmatpush1.msra.mxu0 0.0
      %2781 = vmatprep.subr.mxu0 0.0
      %2782 = vmatpush1.msra.mxu0 0.0
      %2783 = vmatprep.subr.mxu0 0.0
      %2784 = vmatpush1.msra.mxu0 0.0
      %2785 = vmatprep.subr.mxu0 0.0
      %2786 = vmatpush1.msra.mxu0 0.0
      %2787 = vmatprep.subr.mxu0 0.0
      %2788 = vmatpush1.msra.mxu0 0.0
      %2789 = vmatprep.subr.mxu0 0.0
      %2790 = vmatpush1.msra.mxu0 0.0
      %2791 = vmatprep.subr.mxu0 0.0
      %2792 = vmatpush1.msra.mxu0 0.0
      %2793 = vmatprep.subr.mxu0 0.0
      %2794 = vmatpush1.msra.mxu0 0.0
      %2795 = vmatprep.subr.mxu0 0.0
      %2796 = vmatpush1.msra.mxu0 0.0
      %2797 = vmatprep.subr.mxu0 0.0
      %2798 = vmatpush1.msra.mxu0 0.0
      %2799 = vmatprep.subr.mxu0 0.0
      %2800 = vmatpush1.msra.mxu0 0.0
      %2801 = vmatprep.subr.mxu0 0.0
      %2802 = vmatpush1.msra.mxu0 0.0
      %2803 = vmatprep.subr.mxu0 0.0
      %2804 = vmatpush1.msra.mxu0 0.0
      %2805 = vmatprep.subr.mxu0 0.0
      %2806 = vmatpush1.msra.mxu0 0.0
      %2807 = vmatprep.subr.mxu0 0.0
      %2808 = vmatpush1.msra.mxu0 0.0
      %2809 = vmatprep.subr.mxu0 0.0
      %2810 = vmatpush1.msra.mxu0 0.0
      %2811 = vmatprep.subr.mxu0 0.0
      %2812 = vmatpush1.msra.mxu0 0.0
      %2813 = vmatprep.mubr.f32.mxu0 0.0
      %2814 = vmatmul.mubr.f32.gmra.mrb[0].mxu0 %v2741
      %v2815 = vpop.f32.mrb[0].mxu0
      %v2816 = vadd.f32 0.0, %v2815
      %v2817 = vpop.f32.mrb[0].mxu0
      %v2818 = vadd.f32 0.0, %v2817
      %2819 = vdwg.mxu0
      %2820 = vmatprep.subr.mxu0 0.0
      %2821 = vmatpush1.msra.mxu0 %v2747
      %2822 = vmatprep.subr.mxu0 0.0
      %2823 = vmatpush1.msra.mxu0 0.0
      %2824 = vmatprep.subr.mxu0 0.0
      %2825 = vmatpush1.msra.mxu0 0.0
      %2826 = vmatprep.subr.mxu0 0.0
      %2827 = vmatpush1.msra.mxu0 0.0
      %2828 = vmatprep.subr.mxu0 0.0
      %2829 = vmatpush1.msra.mxu0 0.0
      %2830 = vmatprep.subr.mxu0 0.0
      %2831 = vmatpush1.msra.mxu0 0.0
      %2832 = vmatprep.subr.mxu0 0.0
      %2833 = vmatpush1.msra.mxu0 0.0
      %2834 = vmatprep.subr.mxu0 0.0
      %2835 = vmatpush1.msra.mxu0 0.0
      %2836 = vmatprep.subr.mxu0 0.0
      %2837 = vmatpush1.msra.mxu0 0.0
      %2838 = vmatprep.subr.mxu0 0.0
      %2839 = vmatpush1.msra.mxu0 0.0
      %2840 = vmatprep.subr.mxu0 0.0
      %2841 = vmatpush1.msra.mxu0 0.0
      %2842 = vmatprep.subr.mxu0 0.0
      %2843 = vmatpush1.msra.mxu0 0.0
      %2844 = vmatprep.subr.mxu0 0.0
      %2845 = vmatpush1.msra.mxu0 0.0
      %2846 = vmatprep.subr.mxu0 0.0
      %2847 = vmatpush1.msra.mxu0 0.0
      %2848 = vmatprep.subr.mxu0 0.0
      %2849 = vmatpush1.msra.mxu0 0.0
      %2850 = vmatprep.subr.mxu0 0.0
      %2851 = vmatpush1.msra.mxu0 0.0
      %2852 = vmatprep.subr.mxu0 0.0
      %2853 = vmatpush1.msra.mxu0 0.0
      %2854 = vmatprep.subr.mxu0 0.0
      %2855 = vmatpush1.msra.mxu0 0.0
      %2856 = vmatprep.subr.mxu0 0.0
      %2857 = vmatpush1.msra.mxu0 0.0
      %2858 = vmatprep.subr.mxu0 0.0
      %2859 = vmatpush1.msra.mxu0 0.0
      %2860 = vmatprep.subr.mxu0 0.0
      %2861 = vmatpush1.msra.mxu0 0.0
      %2862 = vmatprep.subr.mxu0 0.0
      %2863 = vmatpush1.msra.mxu0 0.0
      %2864 = vmatprep.subr.mxu0 0.0
      %2865 = vmatpush1.msra.mxu0 0.0
      %2866 = vmatprep.subr.mxu0 0.0
      %2867 = vmatpush1.msra.mxu0 0.0
      %2868 = vmatprep.subr.mxu0 0.0
      %2869 = vmatpush1.msra.mxu0 0.0
      %2870 = vmatprep.subr.mxu0 0.0
      %2871 = vmatpush1.msra.mxu0 0.0
      %2872 = vmatprep.subr.mxu0 0.0
      %2873 = vmatpush1.msra.mxu0 0.0
      %2874 = vmatprep.subr.mxu0 0.0
      %2875 = vmatpush1.msra.mxu0 0.0
      %2876 = vmatprep.subr.mxu0 0.0
      %2877 = vmatpush1.msra.mxu0 0.0
      %2878 = vmatprep.subr.mxu0 0.0
      %2879 = vmatpush1.msra.mxu0 0.0
      %2880 = vmatprep.subr.mxu0 0.0
      %2881 = vmatpush1.msra.mxu0 0.0
      %2882 = vmatprep.subr.mxu0 0.0
      %2883 = vmatpush1.msra.mxu0 0.0
      %2884 = vmatprep.mubr.f32.mxu0 0.0
      %2885 = vmatmul.mubr.f32.gmra.mrb[0].mxu0 %v2741
      %v2886 = vpop.f32.mrb[0].mxu0
      %v2887 = vadd.f32 0.0, %v2886
      %v2888 = vpop.f32.mrb[0].mxu0
      %2889 = vdwg.mxu0
      %v2890 = vadd.f32 %v2563, %v2816
      %v2891 = vadd.f32 %v2564, %v2818
      %v2892 = vadd.f32 %v2565, %v2887
      %s2893 = scalar_lea.vmem %s7, 56
      %v2894 = vld [vmem:[%s2893] sm:$0xff]
      %2895 = vrot.lane.b32.xlu0 %v410, 91
      %v2896 = vpop.permute.xlu0 %2895
      %2897 = vrot.lane.b32.xlu0 %v785, 91
      %v2898 = vpop.permute.xlu0 %2897
      %2899 = vrot.lane.b32.xlu0 %v411, 91
      %v2900 = vpop.permute.xlu0 %2899
      %v2901 = vsel %vm2737, %v2896, %v2898
      %v2902 = vsel %vm2737, %v2898, %v2900
      %v2904 = vsel %vm479, %v2894, 0
      %v2906 = vsel %vm483, %v2901, 0
      %v2908 = vsel %vm483, %v2902, 0
      %v2910 = vsel %vm483, %v2900, 0
      %2912 = vmatprep.subr.mxu0 %v2908
      %2913 = vmatpush1.msra.mxu0 %v2906
      %2914 = vmatprep.subr.mxu0 0.0
      %2915 = vmatpush1.msra.mxu0 0.0
      %2916 = vmatprep.subr.mxu0 0.0
      %2917 = vmatpush1.msra.mxu0 0.0
      %2918 = vmatprep.subr.mxu0 0.0
      %2919 = vmatpush1.msra.mxu0 0.0
      %2920 = vmatprep.subr.mxu0 0.0
      %2921 = vmatpush1.msra.mxu0 0.0
      %2922 = vmatprep.subr.mxu0 0.0
      %2923 = vmatpush1.msra.mxu0 0.0
      %2924 = vmatprep.subr.mxu0 0.0
      %2925 = vmatpush1.msra.mxu0 0.0
      %2926 = vmatprep.subr.mxu0 0.0
      %2927 = vmatpush1.msra.mxu0 0.0
      %2928 = vmatprep.subr.mxu0 0.0
      %2929 = vmatpush1.msra.mxu0 0.0
      %2930 = vmatprep.subr.mxu0 0.0
      %2931 = vmatpush1.msra.mxu0 0.0
      %2932 = vmatprep.subr.mxu0 0.0
      %2933 = vmatpush1.msra.mxu0 0.0
      %2934 = vmatprep.subr.mxu0 0.0
      %2935 = vmatpush1.msra.mxu0 0.0
      %2936 = vmatprep.subr.mxu0 0.0
      %2937 = vmatpush1.msra.mxu0 0.0
      %2938 = vmatprep.subr.mxu0 0.0
      %2939 = vmatpush1.msra.mxu0 0.0
      %2940 = vmatprep.subr.mxu0 0.0
      %2941 = vmatpush1.msra.mxu0 0.0
      %2942 = vmatprep.subr.mxu0 0.0
      %2943 = vmatpush1.msra.mxu0 0.0
      %2944 = vmatprep.subr.mxu0 0.0
      %2945 = vmatpush1.msra.mxu0 0.0
      %2946 = vmatprep.subr.mxu0 0.0
      %2947 = vmatpush1.msra.mxu0 0.0
      %2948 = vmatprep.subr.mxu0 0.0
      %2949 = vmatpush1.msra.mxu0 0.0
      %2950 = vmatprep.subr.mxu0 0.0
      %2951 = vmatpush1.msra.mxu0 0.0
      %2952 = vmatprep.subr.mxu0 0.0
      %2953 = vmatpush1.msra.mxu0 0.0
      %2954 = vmatprep.subr.mxu0 0.0
      %2955 = vmatpush1.msra.mxu0 0.0
      %2956 = vmatprep.subr.mxu0 0.0
      %2957 = vmatpush1.msra.mxu0 0.0
      %2958 = vmatprep.subr.mxu0 0.0
      %2959 = vmatpush1.msra.mxu0 0.0
      %2960 = vmatprep.subr.mxu0 0.0
      %2961 = vmatpush1.msra.mxu0 0.0
      %2962 = vmatprep.subr.mxu0 0.0
      %2963 = vmatpush1.msra.mxu0 0.0
      %2964 = vmatprep.subr.mxu0 0.0
      %2965 = vmatpush1.msra.mxu0 0.0
      %2966 = vmatprep.subr.mxu0 0.0
      %2967 = vmatpush1.msra.mxu0 0.0
      %2968 = vmatprep.subr.mxu0 0.0
      %2969 = vmatpush1.msra.mxu0 0.0
      %2970 = vmatprep.subr.mxu0 0.0
      %2971 = vmatpush1.msra.mxu0 0.0
      %2972 = vmatprep.subr.mxu0 0.0
      %2973 = vmatpush1.msra.mxu0 0.0
      %2974 = vmatprep.subr.mxu0 0.0
      %2975 = vmatpush1.msra.mxu0 0.0
      %2976 = vmatprep.mubr.f32.mxu0 0.0
      %2977 = vmatmul.mubr.f32.gmra.mrb[0].mxu0 %v2904
      %v2978 = vpop.f32.mrb[0].mxu0
      %v2979 = vadd.f32 0.0, %v2978
      %v2980 = vpop.f32.mrb[0].mxu0
      %v2981 = vadd.f32 0.0, %v2980
      %2982 = vdwg.mxu0
      %2983 = vmatprep.subr.mxu0 0.0
      %2984 = vmatpush1.msra.mxu0 %v2910
      %2985 = vmatprep.subr.mxu0 0.0
      %2986 = vmatpush1.msra.mxu0 0.0
      %2987 = vmatprep.subr.mxu0 0.0
      %2988 = vmatpush1.msra.mxu0 0.0
      %2989 = vmatprep.subr.mxu0 0.0
      %2990 = vmatpush1.msra.mxu0 0.0
      %2991 = vmatprep.subr.mxu0 0.0
      %2992 = vmatpush1.msra.mxu0 0.0
      %2993 = vmatprep.subr.mxu0 0.0
      %2994 = vmatpush1.msra.mxu0 0.0
      %2995 = vmatprep.subr.mxu0 0.0
      %2996 = vmatpush1.msra.mxu0 0.0
      %2997 = vmatprep.subr.mxu0 0.0
      %2998 = vmatpush1.msra.mxu0 0.0
      %2999 = vmatprep.subr.mxu0 0.0
      %3000 = vmatpush1.msra.mxu0 0.0
      %3001 = vmatprep.subr.mxu0 0.0
      %3002 = vmatpush1.msra.mxu0 0.0
      %3003 = vmatprep.subr.mxu0 0.0
      %3004 = vmatpush1.msra.mxu0 0.0
      %3005 = vmatprep.subr.mxu0 0.0
      %3006 = vmatpush1.msra.mxu0 0.0
      %3007 = vmatprep.subr.mxu0 0.0
      %3008 = vmatpush1.msra.mxu0 0.0
      %3009 = vmatprep.subr.mxu0 0.0
      %3010 = vmatpush1.msra.mxu0 0.0
      %3011 = vmatprep.subr.mxu0 0.0
      %3012 = vmatpush1.msra.mxu0 0.0
      %3013 = vmatprep.subr.mxu0 0.0
      %3014 = vmatpush1.msra.mxu0 0.0
      %3015 = vmatprep.subr.mxu0 0.0
      %3016 = vmatpush1.msra.mxu0 0.0
      %3017 = vmatprep.subr.mxu0 0.0
      %3018 = vmatpush1.msra.mxu0 0.0
      %3019 = vmatprep.subr.mxu0 0.0
      %3020 = vmatpush1.msra.mxu0 0.0
      %3021 = vmatprep.subr.mxu0 0.0
      %3022 = vmatpush1.msra.mxu0 0.0
      %3023 = vmatprep.subr.mxu0 0.0
      %3024 = vmatpush1.msra.mxu0 0.0
      %3025 = vmatprep.subr.mxu0 0.0
      %3026 = vmatpush1.msra.mxu0 0.0
      %3027 = vmatprep.subr.mxu0 0.0
      %3028 = vmatpush1.msra.mxu0 0.0
      %3029 = vmatprep.subr.mxu0 0.0
      %3030 = vmatpush1.msra.mxu0 0.0
      %3031 = vmatprep.subr.mxu0 0.0
      %3032 = vmatpush1.msra.mxu0 0.0
      %3033 = vmatprep.subr.mxu0 0.0
      %3034 = vmatpush1.msra.mxu0 0.0
      %3035 = vmatprep.subr.mxu0 0.0
      %3036 = vmatpush1.msra.mxu0 0.0
      %3037 = vmatprep.subr.mxu0 0.0
      %3038 = vmatpush1.msra.mxu0 0.0
      %3039 = vmatprep.subr.mxu0 0.0
      %3040 = vmatpush1.msra.mxu0 0.0
      %3041 = vmatprep.subr.mxu0 0.0
      %3042 = vmatpush1.msra.mxu0 0.0
      %3043 = vmatprep.subr.mxu0 0.0
      %3044 = vmatpush1.msra.mxu0 0.0
      %3045 = vmatprep.subr.mxu0 0.0
      %3046 = vmatpush1.msra.mxu0 0.0
      %3047 = vmatprep.mubr.f32.mxu0 0.0
      %3048 = vmatmul.mubr.f32.gmra.mrb[0].mxu0 %v2904
      %v3049 = vpop.f32.mrb[0].mxu0
      %v3050 = vadd.f32 0.0, %v3049
      %v3051 = vpop.f32.mrb[0].mxu0
      %3052 = vdwg.mxu0
      %v3053 = vadd.f32 %v2726, %v2979
      %v3054 = vadd.f32 %v2727, %v2981
      %v3055 = vadd.f32 %v2728, %v3050
      %s3056 = scalar_lea.vmem %s5, 64
      %v3057 = vld [vmem:[%s3056] sm:$0xff]
      %3058 = vrot.lane.b32.xlu0 %v461, 90
      %v3059 = vpop.permute.xlu0 %3058
      %3060 = vrot.lane.b32.xlu0 %v469, 90
      %v3061 = vpop.permute.xlu0 %3060
      %3062 = vrot.lane.b32.xlu0 %v462, 90
      %v3063 = vpop.permute.xlu0 %3062
      %vm3064 = vcmask 736256
      %v3065 = vsel %vm3064, %v3059, %v3061
      %v3066 = vsel %vm3064, %v3061, %v3063
      %v3068 = vsel %vm479, %v3057, 0
      %v3070 = vsel %vm483, %v3065, 0
      %v3072 = vsel %vm483, %v3066, 0
      %v3074 = vsel %vm483, %v3063, 0
      %3076 = vmatprep.subr.mxu0 %v3072
      %3077 = vmatpush1.msra.mxu0 %v3070
      %3078 = vmatprep.subr.mxu0 0.0
      %3079 = vmatpush1.msra.mxu0 0.0
      %3080 = vmatprep.subr.mxu0 0.0
      %3081 = vmatpush1.msra.mxu0 0.0
      %3082 = vmatprep.subr.mxu0 0.0
      %3083 = vmatpush1.msra.mxu0 0.0
      %3084 = vmatprep.subr.mxu0 0.0
      %3085 = vmatpush1.msra.mxu0 0.0
      %3086 = vmatprep.subr.mxu0 0.0
      %3087 = vmatpush1.msra.mxu0 0.0
      %3088 = vmatprep.subr.mxu0 0.0
      %3089 = vmatpush1.msra.mxu0 0.0
      %3090 = vmatprep.subr.mxu0 0.0
      %3091 = vmatpush1.msra.mxu0 0.0
      %3092 = vmatprep.subr.mxu0 0.0
      %3093 = vmatpush1.msra.mxu0 0.0
      %3094 = vmatprep.subr.mxu0 0.0
      %3095 = vmatpush1.msra.mxu0 0.0
      %3096 = vmatprep.subr.mxu0 0.0
      %3097 = vmatpush1.msra.mxu0 0.0
      %3098 = vmatprep.subr.mxu0 0.0
      %3099 = vmatpush1.msra.mxu0 0.0
      %3100 = vmatprep.subr.mxu0 0.0
      %3101 = vmatpush1.msra.mxu0 0.0
      %3102 = vmatprep.subr.mxu0 0.0
      %3103 = vmatpush1.msra.mxu0 0.0
      %3104 = vmatprep.subr.mxu0 0.0
      %3105 = vmatpush1.msra.mxu0 0.0
      %3106 = vmatprep.subr.mxu0 0.0
      %3107 = vmatpush1.msra.mxu0 0.0
      %3108 = vmatprep.subr.mxu0 0.0
      %3109 = vmatpush1.msra.mxu0 0.0
      %3110 = vmatprep.subr.mxu0 0.0
      %3111 = vmatpush1.msra.mxu0 0.0
      %3112 = vmatprep.subr.mxu0 0.0
      %3113 = vmatpush1.msra.mxu0 0.0
      %3114 = vmatprep.subr.mxu0 0.0
      %3115 = vmatpush1.msra.mxu0 0.0
      %3116 = vmatprep.subr.mxu0 0.0
      %3117 = vmatpush1.msra.mxu0 0.0
      %3118 = vmatprep.subr.mxu0 0.0
      %3119 = vmatpush1.msra.mxu0 0.0
      %3120 = vmatprep.subr.mxu0 0.0
      %3121 = vmatpush1.msra.mxu0 0.0
      %3122 = vmatprep.subr.mxu0 0.0
      %3123 = vmatpush1.msra.mxu0 0.0
      %3124 = vmatprep.subr.mxu0 0.0
      %3125 = vmatpush1.msra.mxu0 0.0
      %3126 = vmatprep.subr.mxu0 0.0
      %3127 = vmatpush1.msra.mxu0 0.0
      %3128 = vmatprep.subr.mxu0 0.0
      %3129 = vmatpush1.msra.mxu0 0.0
      %3130 = vmatprep.subr.mxu0 0.0
      %3131 = vmatpush1.msra.mxu0 0.0
      %3132 = vmatprep.subr.mxu0 0.0
      %3133 = vmatpush1.msra.mxu0 0.0
      %3134 = vmatprep.subr.mxu0 0.0
      %3135 = vmatpush1.msra.mxu0 0.0
      %3136 = vmatprep.subr.mxu0 0.0
      %3137 = vmatpush1.msra.mxu0 0.0
      %3138 = vmatprep.subr.mxu0 0.0
      %3139 = vmatpush1.msra.mxu0 0.0
      %3140 = vmatprep.mubr.f32.mxu0 0.0
      %3141 = vmatmul.mubr.f32.gmra.mrb[0].mxu0 %v3068
      %v3142 = vpop.f32.mrb[0].mxu0
      %v3143 = vadd.f32 0.0, %v3142
      %v3144 = vpop.f32.mrb[0].mxu0
      %v3145 = vadd.f32 0.0, %v3144
      %3146 = vdwg.mxu0
      %3147 = vmatprep.subr.mxu0 0.0
      %3148 = vmatpush1.msra.mxu0 %v3074
      %3149 = vmatprep.subr.mxu0 0.0
      %3150 = vmatpush1.msra.mxu0 0.0
      %3151 = vmatprep.subr.mxu0 0.0
      %3152 = vmatpush1.msra.mxu0 0.0
      %3153 = vmatprep.subr.mxu0 0.0
      %3154 = vmatpush1.msra.mxu0 0.0
      %3155 = vmatprep.subr.mxu0 0.0
      %3156 = vmatpush1.msra.mxu0 0.0
      %3157 = vmatprep.subr.mxu0 0.0
      %3158 = vmatpush1.msra.mxu0 0.0
      %3159 = vmatprep.subr.mxu0 0.0
      %3160 = vmatpush1.msra.mxu0 0.0
      %3161 = vmatprep.subr.mxu0 0.0
      %3162 = vmatpush1.msra.mxu0 0.0
      %3163 = vmatprep.subr.mxu0 0.0
      %3164 = vmatpush1.msra.mxu0 0.0
      %3165 = vmatprep.subr.mxu0 0.0
      %3166 = vmatpush1.msra.mxu0 0.0
      %3167 = vmatprep.subr.mxu0 0.0
      %3168 = vmatpush1.msra.mxu0 0.0
      %3169 = vmatprep.subr.mxu0 0.0
      %3170 = vmatpush1.msra.mxu0 0.0
      %3171 = vmatprep.subr.mxu0 0.0
      %3172 = vmatpush1.msra.mxu0 0.0
      %3173 = vmatprep.subr.mxu0 0.0
      %3174 = vmatpush1.msra.mxu0 0.0
      %3175 = vmatprep.subr.mxu0 0.0
      %3176 = vmatpush1.msra.mxu0 0.0
      %3177 = vmatprep.subr.mxu0 0.0
      %3178 = vmatpush1.msra.mxu0 0.0
      %3179 = vmatprep.subr.mxu0 0.0
      %3180 = vmatpush1.msra.mxu0 0.0
      %3181 = vmatprep.subr.mxu0 0.0
      %3182 = vmatpush1.msra.mxu0 0.0
      %3183 = vmatprep.subr.mxu0 0.0
      %3184 = vmatpush1.msra.mxu0 0.0
      %3185 = vmatprep.subr.mxu0 0.0
      %3186 = vmatpush1.msra.mxu0 0.0
      %3187 = vmatprep.subr.mxu0 0.0
      %3188 = vmatpush1.msra.mxu0 0.0
      %3189 = vmatprep.subr.mxu0 0.0
      %3190 = vmatpush1.msra.mxu0 0.0
      %3191 = vmatprep.subr.mxu0 0.0
      %3192 = vmatpush1.msra.mxu0 0.0
      %3193 = vmatprep.subr.mxu0 0.0
      %3194 = vmatpush1.msra.mxu0 0.0
      %3195 = vmatprep.subr.mxu0 0.0
      %3196 = vmatpush1.msra.mxu0 0.0
      %3197 = vmatprep.subr.mxu0 0.0
      %3198 = vmatpush1.msra.mxu0 0.0
      %3199 = vmatprep.subr.mxu0 0.0
      %3200 = vmatpush1.msra.mxu0 0.0
      %3201 = vmatprep.subr.mxu0 0.0
      %3202 = vmatpush1.msra.mxu0 0.0
      %3203 = vmatprep.subr.mxu0 0.0
      %3204 = vmatpush1.msra.mxu0 0.0
      %3205 = vmatprep.subr.mxu0 0.0
      %3206 = vmatpush1.msra.mxu0 0.0
      %3207 = vmatprep.subr.mxu0 0.0
      %3208 = vmatpush1.msra.mxu0 0.0
      %3209 = vmatprep.subr.mxu0 0.0
      %3210 = vmatpush1.msra.mxu0 0.0
      %3211 = vmatprep.mubr.f32.mxu0 0.0
      %3212 = vmatmul.mubr.f32.gmra.mrb[0].mxu0 %v3068
      %v3213 = vpop.f32.mrb[0].mxu0
      %v3214 = vadd.f32 0.0, %v3213
      %v3215 = vpop.f32.mrb[0].mxu0
      %3216 = vdwg.mxu0
      %v3217 = vadd.f32 %v2890, %v3143
      %v3218 = vadd.f32 %v2891, %v3145
      %v3219 = vadd.f32 %v2892, %v3214
      %s3220 = scalar_lea.vmem %s7, 64
      %v3221 = vld [vmem:[%s3220] sm:$0xff]
      %3222 = vrot.lane.b32.xlu0 %v410, 90
      %v3223 = vpop.permute.xlu0 %3222
      %3224 = vrot.lane.b32.xlu0 %v785, 90
      %v3225 = vpop.permute.xlu0 %3224
      %3226 = vrot.lane.b32.xlu0 %v411, 90
      %v3227 = vpop.permute.xlu0 %3226
      %v3228 = vsel %vm3064, %v3223, %v3225
      %v3229 = vsel %vm3064, %v3225, %v3227
      %v3231 = vsel %vm479, %v3221, 0
      %v3233 = vsel %vm483, %v3228, 0
      %v3235 = vsel %vm483, %v3229, 0
      %v3237 = vsel %vm483, %v3227, 0
      %3239 = vmatprep.subr.mxu0 %v3235
      %3240 = vmatpush1.msra.mxu0 %v3233
      %3241 = vmatprep.subr.mxu0 0.0
      %3242 = vmatpush1.msra.mxu0 0.0
      %3243 = vmatprep.subr.mxu0 0.0
      %3244 = vmatpush1.msra.mxu0 0.0
      %3245 = vmatprep.subr.mxu0 0.0
      %3246 = vmatpush1.msra.mxu0 0.0
      %3247 = vmatprep.subr.mxu0 0.0
      %3248 = vmatpush1.msra.mxu0 0.0
      %3249 = vmatprep.subr.mxu0 0.0
      %3250 = vmatpush1.msra.mxu0 0.0
      %3251 = vmatprep.subr.mxu0 0.0
      %3252 = vmatpush1.msra.mxu0 0.0
      %3253 = vmatprep.subr.mxu0 0.0
      %3254 = vmatpush1.msra.mxu0 0.0
      %3255 = vmatprep.subr.mxu0 0.0
      %3256 = vmatpush1.msra.mxu0 0.0
      %3257 = vmatprep.subr.mxu0 0.0
      %3258 = vmatpush1.msra.mxu0 0.0
      %3259 = vmatprep.subr.mxu0 0.0
      %3260 = vmatpush1.msra.mxu0 0.0
      %3261 = vmatprep.subr.mxu0 0.0
      %3262 = vmatpush1.msra.mxu0 0.0
      %3263 = vmatprep.subr.mxu0 0.0
      %3264 = vmatpush1.msra.mxu0 0.0
      %3265 = vmatprep.subr.mxu0 0.0
      %3266 = vmatpush1.msra.mxu0 0.0
      %3267 = vmatprep.subr.mxu0 0.0
      %3268 = vmatpush1.msra.mxu0 0.0
      %3269 = vmatprep.subr.mxu0 0.0
      %3270 = vmatpush1.msra.mxu0 0.0
      %3271 = vmatprep.subr.mxu0 0.0
      %3272 = vmatpush1.msra.mxu0 0.0
      %3273 = vmatprep.subr.mxu0 0.0
      %3274 = vmatpush1.msra.mxu0 0.0
      %3275 = vmatprep.subr.mxu0 0.0
      %3276 = vmatpush1.msra.mxu0 0.0
      %3277 = vmatprep.subr.mxu0 0.0
      %3278 = vmatpush1.msra.mxu0 0.0
      %3279 = vmatprep.subr.mxu0 0.0
      %3280 = vmatpush1.msra.mxu0 0.0
      %3281 = vmatprep.subr.mxu0 0.0
      %3282 = vmatpush1.msra.mxu0 0.0
      %3283 = vmatprep.subr.mxu0 0.0
      %3284 = vmatpush1.msra.mxu0 0.0
      %3285 = vmatprep.subr.mxu0 0.0
      %3286 = vmatpush1.msra.mxu0 0.0
      %3287 = vmatprep.subr.mxu0 0.0
      %3288 = vmatpush1.msra.mxu0 0.0
      %3289 = vmatprep.subr.mxu0 0.0
      %3290 = vmatpush1.msra.mxu0 0.0
      %3291 = vmatprep.subr.mxu0 0.0
      %3292 = vmatpush1.msra.mxu0 0.0
      %3293 = vmatprep.subr.mxu0 0.0
      %3294 = vmatpush1.msra.mxu0 0.0
      %3295 = vmatprep.subr.mxu0 0.0
      %3296 = vmatpush1.msra.mxu0 0.0
      %3297 = vmatprep.subr.mxu0 0.0
      %3298 = vmatpush1.msra.mxu0 0.0
      %3299 = vmatprep.subr.mxu0 0.0
      %3300 = vmatpush1.msra.mxu0 0.0
      %3301 = vmatprep.subr.mxu0 0.0
      %3302 = vmatpush1.msra.mxu0 0.0
      %3303 = vmatprep.mubr.f32.mxu0 0.0
      %3304 = vmatmul.mubr.f32.gmra.mrb[0].mxu0 %v3231
      %v3305 = vpop.f32.mrb[0].mxu0
      %v3306 = vadd.f32 0.0, %v3305
      %v3307 = vpop.f32.mrb[0].mxu0
      %v3308 = vadd.f32 0.0, %v3307
      %3309 = vdwg.mxu0
      %3310 = vmatprep.subr.mxu0 0.0
      %3311 = vmatpush1.msra.mxu0 %v3237
      %3312 = vmatprep.subr.mxu0 0.0
      %3313 = vmatpush1.msra.mxu0 0.0
      %3314 = vmatprep.subr.mxu0 0.0
      %3315 = vmatpush1.msra.mxu0 0.0
      %3316 = vmatprep.subr.mxu0 0.0
      %3317 = vmatpush1.msra.mxu0 0.0
      %3318 = vmatprep.subr.mxu0 0.0
      %3319 = vmatpush1.msra.mxu0 0.0
      %3320 = vmatprep.subr.mxu0 0.0
      %3321 = vmatpush1.msra.mxu0 0.0
      %3322 = vmatprep.subr.mxu0 0.0
      %3323 = vmatpush1.msra.mxu0 0.0
      %3324 = vmatprep.subr.mxu0 0.0
      %3325 = vmatpush1.msra.mxu0 0.0
      %3326 = vmatprep.subr.mxu0 0.0
      %3327 = vmatpush1.msra.mxu0 0.0
      %3328 = vmatprep.subr.mxu0 0.0
      %3329 = vmatpush1.msra.mxu0 0.0
      %3330 = vmatprep.subr.mxu0 0.0
      %3331 = vmatpush1.msra.mxu0 0.0
      %3332 = vmatprep.subr.mxu0 0.0
      %3333 = vmatpush1.msra.mxu0 0.0
      %3334 = vmatprep.subr.mxu0 0.0
      %3335 = vmatpush1.msra.mxu0 0.0
      %3336 = vmatprep.subr.mxu0 0.0
      %3337 = vmatpush1.msra.mxu0 0.0
      %3338 = vmatprep.subr.mxu0 0.0
      %3339 = vmatpush1.msra.mxu0 0.0
      %3340 = vmatprep.subr.mxu0 0.0
      %3341 = vmatpush1.msra.mxu0 0.0
      %3342 = vmatprep.subr.mxu0 0.0
      %3343 = vmatpush1.msra.mxu0 0.0
      %3344 = vmatprep.subr.mxu0 0.0
      %3345 = vmatpush1.msra.mxu0 0.0
      %3346 = vmatprep.subr.mxu0 0.0
      %3347 = vmatpush1.msra.mxu0 0.0
      %3348 = vmatprep.subr.mxu0 0.0
      %3349 = vmatpush1.msra.mxu0 0.0
      %3350 = vmatprep.subr.mxu0 0.0
      %3351 = vmatpush1.msra.mxu0 0.0
      %3352 = vmatprep.subr.mxu0 0.0
      %3353 = vmatpush1.msra.mxu0 0.0
      %3354 = vmatprep.subr.mxu0 0.0
      %3355 = vmatpush1.msra.mxu0 0.0
      %3356 = vmatprep.subr.mxu0 0.0
      %3357 = vmatpush1.msra.mxu0 0.0
      %3358 = vmatprep.subr.mxu0 0.0
      %3359 = vmatpush1.msra.mxu0 0.0
      %3360 = vmatprep.subr.mxu0 0.0
      %3361 = vmatpush1.msra.mxu0 0.0
      %3362 = vmatprep.subr.mxu0 0.0
      %3363 = vmatpush1.msra.mxu0 0.0
      %3364 = vmatprep.subr.mxu0 0.0
      %3365 = vmatpush1.msra.mxu0 0.0
      %3366 = vmatprep.subr.mxu0 0.0
      %3367 = vmatpush1.msra.mxu0 0.0
      %3368 = vmatprep.subr.mxu0 0.0
      %3369 = vmatpush1.msra.mxu0 0.0
      %3370 = vmatprep.subr.mxu0 0.0
      %3371 = vmatpush1.msra.mxu0 0.0
      %3372 = vmatprep.subr.mxu0 0.0
      %3373 = vmatpush1.msra.mxu0 0.0
      %3374 = vmatprep.mubr.f32.mxu0 0.0
      %3375 = vmatmul.mubr.f32.gmra.mrb[0].mxu0 %v3231
      %v3376 = vpop.f32.mrb[0].mxu0
      %v3377 = vadd.f32 0.0, %v3376
      %v3378 = vpop.f32.mrb[0].mxu0
      %3379 = vdwg.mxu0
      %v3380 = vadd.f32 %v3053, %v3306
      %v3381 = vadd.f32 %v3054, %v3308
      %v3382 = vadd.f32 %v3055, %v3377
      %v3383 = vld [vmem:[%s6] sm:$0xff]
      %3385 = vset.pattern.permute.xlu0 0
      %3386 = vperm.xlu0 %3385, %v3383
      %v3387 = vpop.permute.xlu0 %3386
      %v3389 = vadd.f32 %v3217, %v3387
      %v3390 = vadd.f32 %v3218, %v3387
      %v3391 = vadd.f32 %v3219, %v3387
      %v3392 = vld [vmem:[%s8] sm:$0xff]
      %3394 = vset.pattern.permute.xlu0 0
      %3395 = vperm.xlu0 %3394, %v3392
      %v3396 = vpop.permute.xlu0 %3395
      %v3398 = vadd.f32 %v3380, %v3396
      %v3399 = vadd.f32 %v3381, %v3396
      %v3400 = vadd.f32 %v3382, %v3396
      %3401 = vst [vmem:[%s400] sm:$0xff] %v3389
      %3402 = vst [vmem:[%s400 + $0x8] sm:$0xff] %v3390
      %vm3403 = vcmask 261120
      %3404 = vst.msk [vmem:[%s400 + $0x10] sm:$0xff] %vm3403, %v3391
      %3405 = vst [vmem:[%s405] sm:$0xff] %v3398
      %3406 = vst [vmem:[%s405 + $0x8] sm:$0xff] %v3399
      %3407 = vst.msk [vmem:[%s405 + $0x10] sm:$0xff] %vm3403, %v3400
      %v3408 = vld [vmem:[%s2] sm:$0x7]
      %v3410 = vlaneseq
      %v3411 = vshrl.u32 %v3410, 7
      %v3412 = vsub.s32 0, %v3411
      %v3413 = vrot.slane %v3408, %v3412
      %v3414 = vlaneseq
      %v3415 = vshrl.u32 %v3414, 7
      %v3416 = vsub.s32 1, %v3415
      %v3417 = vrot.slane %v3408, %v3416
      %v3418 = vlaneseq
      %v3419 = vshrl.u32 %v3418, 7
      %v3420 = vsub.s32 2, %v3419
      %v3421 = vrot.slane %v3408, %v3420
      %v3425 = vmul.f32 %v3389, %v3413
      %v3426 = vmul.f32 %v3390, %v3417
      %v3427 = vmul.f32 %v3391, %v3421
      %v3428 = vmul.f32 %v3398, %v3413
      %v3429 = vmul.f32 %v3399, %v3417
      %v3430 = vmul.f32 %v3400, %v3421
      %v3431 = vadd.f32 %v3425, %v3426
      %v3432 = vsel %vm3403, %v3427, 0.0
      %v3433 = vadd.f32 %v3431, %v3432
      %3434 = vadd.xlane.f32.xlu0 %v3433
      %v3435 = vpop.xlane.xlu0 %3434
      %v3436 = vmul.f32 %v3425, %v3389
      %v3437 = vmul.f32 %v3426, %v3390
      %v3438 = vmul.f32 %v3427, %v3391
      %v3439 = vadd.f32 %v3436, %v3437
      %v3440 = vsel %vm3403, %v3438, 0.0
      %v3441 = vadd.f32 %v3439, %v3440
      %3442 = vadd.xlane.f32.xlu0 %v3441
      %v3443 = vpop.xlane.xlu0 %3442
      %v3444 = vadd.f32 %v3428, %v3429
      %v3445 = vsel %vm3403, %v3430, 0.0
      %v3446 = vadd.f32 %v3444, %v3445
      %3447 = vadd.xlane.f32.xlu0 %v3446
      %v3448 = vpop.xlane.xlu0 %3447
      %v3449 = vmul.f32 %v3428, %v3398
      %v3450 = vmul.f32 %v3429, %v3399
      %v3451 = vmul.f32 %v3430, %v3400
      %v3452 = vadd.f32 %v3449, %v3450
      %v3453 = vsel %vm3403, %v3451, 0.0
      %v3454 = vadd.f32 %v3452, %v3453
      %3455 = vadd.xlane.f32.xlu0 %v3454
      %v3456 = vpop.xlane.xlu0 %3455
      %vm3457 = vcmask 7168
      %v3458 = vsel %vm3457, %v3435, %v3443
      %vm3459 = vcmask 15360
      %v3460 = vsel %vm3459, %v3458, %v3448
      %vm3461 = vcmask 23552
      %v3462 = vsel %vm3461, %v3460, %v3456
      %3463 = vst.msk [vmem:[%s409] sm:$0xff] %vm479, %v3462
      %p3464 = scmp.lt.s32.totalorder %s23, 1
      %s3465 = scalar_select %p3464, %s23, 1
      %s3466 = smul.addr %s3465, 3
      %s3467 = smul.addr %s3466, 8
      %s3468 = scalar_lea.vmem %s9, %s3467
      %p3469 = scmp.lt.s32.totalorder %s23, 1
      %s3470 = scalar_select %p3469, %s23, 1
      %s3471 = smul.addr %s3470, 3
      %s3472 = smul.addr %s3471, 8
      %s3473 = scalar_lea.vmem %s10, %s3472
      %p3474 = scmp.lt.s32.totalorder %s23, 1
      %s3475 = scalar_select %p3474, %s23, 1
      %s3476 = smul.addr %s3475, 8
      %s3477 = scalar_lea.vmem %s11, %s3476
      // Predicated region
      $region57: #{residual_conv_forward.4} parent=55 // pred_check
        %p3478 = pneg %p235
      $region58: #{residual_conv_forward.4} parent=55 // pred_check_branch
        %3480 = sbr.rel (%p3478) target = $region60
      $region59: #{residual_conv_forward.4} parent=55 // pred_region
        _
      $region60: #{residual_conv_forward.4} parent=55 // pred_fallthru
        _
      // Predicated region
      $region61: #{residual_conv_forward.4} parent=55 // pred_check
        %p3481 = pneg %p261
      $region62: #{residual_conv_forward.4} parent=55 // pred_check_branch
        %3483 = sbr.rel (%p3481) target = $region64
      $region63: #{residual_conv_forward.4} parent=55 // pred_region
        _
      $region64: #{residual_conv_forward.4} parent=55 // pred_fallthru
        _
      // Predicated region
      $region65: #{residual_conv_forward.4} parent=55 // pred_check
        %p3484 = pneg %p287
      $region66: #{residual_conv_forward.4} parent=55 // pred_check_branch
        %3486 = sbr.rel (%p3484) target = $region68
      $region67: #{residual_conv_forward.4} parent=55 // pred_region
        _
      $region68: #{residual_conv_forward.4} parent=55 // pred_fallthru
        _
    $region56: #{residual_conv_forward.4} parent=5 // pred_fallthru
      _
    %p3487 = scmp.le.s32.totalorder 2, %s18
    // Predicated region
    $region69: #{residual_conv_forward.4} parent=5 // pred_check
      %p3488 = pneg %p3487
    $region70: #{residual_conv_forward.4} parent=5 // pred_check_branch
      %3490 = sbr.rel (%p3488) target = $region72
    $region71: #{residual_conv_forward.4} parent=5 // pred_region
      %s3491 = ssub.s32 %s18, 2
      // Predicated region
      $region73: #{residual_conv_forward.4} parent=71 // pred_check
        %p3492 = pneg %p241
      $region74: #{residual_conv_forward.4} parent=71 // pred_check_branch
        %3494 = sbr.rel (%p3492) target = $region76
      $region75: #{residual_conv_forward.4} parent=71 // pred_region
        %p3495 = scmp.lt.s32.totalorder %s24, 1
        %s3496 = scalar_select %p3495, %s24, 1
        %s3497 = smul.addr %s3496, 3
        %s3498 = smul.addr %s3497, 8
        %s3499 = scalar_lea.vmem %s9, %s3498
      $region76: #{residual_conv_forward.4} parent=71 // pred_fallthru
        _
      // Predicated region
      $region77: #{residual_conv_forward.4} parent=71 // pred_check
        %p3500 = pneg %p267
      $region78: #{residual_conv_forward.4} parent=71 // pred_check_branch
        %3502 = sbr.rel (%p3500) target = $region80
      $region79: #{residual_conv_forward.4} parent=71 // pred_region
        %p3503 = scmp.lt.s32.totalorder %s24, 1
        %s3504 = scalar_select %p3503, %s24, 1
        %s3505 = smul.addr %s3504, 3
        %s3506 = smul.addr %s3505, 8
        %s3507 = scalar_lea.vmem %s10, %s3506
      $region80: #{residual_conv_forward.4} parent=71 // pred_fallthru
        _
      // Predicated region
      $region81: #{residual_conv_forward.4} parent=71 // pred_check
        %p3508 = pneg %p293
      $region82: #{residual_conv_forward.4} parent=71 // pred_check_branch
        %3510 = sbr.rel (%p3508) target = $region84
      $region83: #{residual_conv_forward.4} parent=71 // pred_region
        %p3511 = scmp.lt.s32.totalorder %s24, 1
        %s3512 = scalar_select %p3511, %s24, 1
        %s3513 = smul.addr %s3512, 8
        %s3514 = scalar_lea.vmem %s11, %s3513
      $region84: #{residual_conv_forward.4} parent=71 // pred_fallthru
        _
    $region72: #{residual_conv_forward.4} parent=5 // pred_fallthru
      _
  $region6: #{residual_conv_forward.4} parent=0 // loop_footer
    %s22 = sadd.s32 1, %s18
  $region7: #{residual_conv_forward.4} parent=0 // loop_footer_branch
    %17 = sbr.rel target = $region3
  $region8: #{residual_conv_forward.4} parent=0 // loop_exit
    _

</llo_original>
